<compile_context>
chip_gen: v7x
topology: tpu7x:2x2x1
jax: 0.10.0
libtpu: 0.0.40
codegen_flags: <defaults>
</compile_context>

<pallas_src>
import numpy as np
import jax
import jax.numpy as jnp
from jax.experimental import pallas as pl
from jax.experimental.pallas import tpu as pltpu

EPS = 1e-5
_SQRT2_INV = 0.7071067811865476
LANE = 128

# -------- packed parameter-vector row layout (per layer), each row 128 lanes --------
ROW_N1W, ROW_N1B, ROW_BF, ROW_BB, ROW_MRB = 0, 1, 2, 3, 4
ROW_CB1, ROW_CB2S, ROW_CB2B = 5, 6, 7
ROW_N2W, ROW_N2B, ROW_MB1, ROW_MB2 = 8, 9, 10, 11
ROW_LS1, ROW_LS2 = 12, 13
ROW_GNW, ROW_GNB, ROW_GB1, ROW_GB2 = 14, 15, 16, 17
ROWS_PER_LAYER = 18


def _gelu(v):
    # torch nn.GELU default = exact erf formulation
    return 0.5 * v * (1.0 + jax.lax.erf(v * _SQRT2_INV))


# --------------------------------------------------------------------------------------
# Fused Pallas kernel: DEPTH x (norm1 -> adaptive spectral filter -> residual ->
# norm2 -> MLP -> residual -> spectral gating), then final LayerNorm.  Processes
# B_blk batches per invocation, sublane-stacked as [B_blk*S, D].
# --------------------------------------------------------------------------------------
def make_fused_kernel(depth, B_blk, S, D, hid):
    bs = B_blk * S          # stacked rows per "half" of the spectrum

    def kernel(x_ref, fwd_ref, inv_ref, vec_ref, wa_ref, wb_ref, out_ref):
        f32 = jnp.float32
        # Load & sublane-stack all batches of this block: [B_blk*S, D]
        x = jnp.concatenate([x_ref[b] for b in range(B_blk)], axis=0)
        fwd = fwd_ref[...]          # [2*bs, bs]  rows 0:bs = blockdiag(cos), bs:2bs = blockdiag(-sin)
        inv = inv_ref[...]          # [bs, 2*bs]  cols 0:bs = blockdiag(cos), bs:2bs = blockdiag(-sin); /S

        def mm(a, b):
            return jnp.dot(a, b, preferred_element_type=jnp.float32)

        def ln(v, w, b):
            mu = jnp.mean(v, axis=-1, keepdims=True)
            var = jnp.mean((v - mu) ** 2, axis=-1, keepdims=True)
            return (v - mu) * jax.lax.rsqrt(var + EPS) * w + b

        def rep_rows(m, reps):
            # [B_blk, D] -> [B_blk*reps, D]; row b repeated `reps` times (batch-major blocks)
            return jnp.concatenate(
                [jnp.broadcast_to(m[b:b + 1], (reps, m.shape[1])) for b in range(B_blk)],
                axis=0)

        def batch_means(v):
            # per-batch mean over the S rows of each batch block -> [B_blk, D]
            return jnp.concatenate(
                [jnp.mean(v[b * S:(b + 1) * S], axis=0, keepdims=True) for b in range(B_blk)],
                axis=0)

        # constants for the stacked-spectrum ModReLU (hoisted out of the layer loop)
        row_idx = jax.lax.broadcasted_iota(jnp.int32, (2 * bs, D), 0)
        re_maskf = (row_idx < bs).astype(f32)       # 1 on real rows, 0 on imag rows
        zeros_bs = jnp.zeros((bs, D), f32)

        for l in range(depth):                      # static unrolled layer loop
            base = l * ROWS_PER_LAYER

            def vec(r, w=D, _b=base):
                return vec_ref[_b + r:_b + r + 1, :w]      # (1, w)

            wa = wa_ref[l]                          # (D, 3*128)   = cw1 | mw1 | gw1(pad)
            wb = wb_ref[l]                          # (hid, 4*128) = cw2(scale,bias tiles) | mw2 | gw2
            cw1 = wa[:, 0:LANE]
            mw1 = wa[:, LANE:2 * LANE]
            gw1 = wa[:, 2 * LANE:3 * LANE]
            cw2 = wb[:, 0:2 * LANE]
            mw2 = wb[:, 2 * LANE:3 * LANE]
            gw2 = wb[:, 3 * LANE:4 * LANE]

            # ---------------- AdaptiveSpectralFilter ----------------
            xn = ln(x, vec(ROW_N1W), vec(ROW_N1B))                      # [bs, D]
            ctx = batch_means(xn)                                       # [B, D] global context
            h = _gelu(mm(ctx, cw1) + vec(ROW_CB1, LANE))                # [B, hid]
            mod = mm(h, cw2)                                            # [B, 256] (scale tile | bias tile)
            dscale = mod[:, :D] + vec(ROW_CB2S)                         # [B, D]
            dbias = mod[:, LANE:LANE + D] + vec(ROW_CB2B)               # [B, D]
            eff_f = vec(ROW_BF) * (1.0 + dscale)                        # [B, D]
            eff_b = vec(ROW_BB) + dbias                                 # [B, D]

            # forward DFT for all batches: ONE matmul -> [re-block ; im-block]
            fs = mm(fwd, xn)                                            # [2*bs, D]
            rep_f = rep_rows(eff_f, S)                                  # [bs, D]
            eff_f_full = jnp.concatenate([rep_f, rep_f], axis=0)        # [2*bs, D]
            eff_b_full = jnp.concatenate([rep_rows(eff_b, S), zeros_bs], axis=0)  # bias on re rows only
            f = fs * eff_f_full + eff_b_full

            # ModReLU on the stacked spectrum (no concat; roll pairs re/im rows)
            sq = f * f
            p2 = sq + pltpu.roll(sq, shift=bs, axis=0)                  # |F|^2 replicated on both halves
            inv_mag = jax.lax.rsqrt(p2 + 1e-30)
            mag = p2 * inv_mag
            thr = jnp.maximum(mag + vec(ROW_MRB), 0.0)
            new = thr * jnp.where(p2 > 0.0, f * inv_mag, re_maskf)      # angle(0)=0 fixup

            # inverse DFT (real part) for all batches: ONE matmul
            filt = mm(inv, new)                                         # [bs, D]
            x = x + vec(ROW_LS1) * filt

            # ---------------- MLP branch ----------------
            xn2 = ln(x, vec(ROW_N2W), vec(ROW_N2B))
            h2 = _gelu(mm(xn2, mw1) + vec(ROW_MB1, LANE))               # [bs, hid]
            mlp = (mm(h2, mw2) + vec(ROW_MB2, LANE))[:, :D]             # [bs, D]
            x = x + vec(ROW_LS2) * mlp

            # ---------------- SpectralGating ----------------
            nx = ln(x, vec(ROW_GNW), vec(ROW_GNB))
            gctx = batch_means(nx)                                      # [B, D]
            hg = _gelu(mm(gctx, gw1) + vec(ROW_GB1, LANE))              # [B, 128] (pad lanes stay 0)
            gate = jax.nn.sigmoid((mm(hg, gw2) + vec(ROW_GB2, LANE))[:, :D])   # [B, D]
            x = x * rep_rows(gate, S)

        # ---------------- final LayerNorm ----------------
        fbase = depth * ROWS_PER_LAYER
        y = ln(x, vec_ref[fbase:fbase + 1, :D], vec_ref[fbase + 1:fbase + 2, :D])
        for b in range(B_blk):
            out_ref[b] = y[b * S:(b + 1) * S]

    return kernel


# --------------------------------------------------------------------------------------
# Wrapper: single pallas_call over the whole network; batches_per_step batches / step.
# --------------------------------------------------------------------------------------
def fftnet_forward(x, fwd, inv, vecs, wa, wb, *, depth, D, hid, batches_per_step):
    B, S, _ = x.shape
    nb = batches_per_step
    assert B % nb == 0
    steps = B // nb
    kernel = make_fused_kernel(depth, nb, S, D, hid)

    def full(a):
        return pl.BlockSpec(a.shape, lambda i, _n=a.ndim: (0,) * _n)

    return pl.pallas_call(
        kernel,
        out_shape=jax.ShapeDtypeStruct((B, S, D), x.dtype),
        grid_spec=pltpu.PrefetchScalarGridSpec(
            num_scalar_prefetch=0,
            grid=(steps,),
            in_specs=[pl.BlockSpec((nb, S, D), lambda i: (i, 0, 0)),
                      full(fwd), full(inv), full(vecs), full(wa), full(wb)],
            out_specs=pl.BlockSpec((nb, S, D), lambda i: (i, 0, 0)),
        ),
        compiler_params=pltpu.CompilerParams(dimension_semantics=("parallel",)),
    )(x, fwd, inv, vecs, wa, wb)


# --------------------------------------------------------------------------------------
# Parameter init (shapes follow FFTNet.__init__) and packing
# --------------------------------------------------------------------------------------
def dense_init(key, fan_in, shape):
    bound = 1.0 / np.sqrt(fan_in)
    return jax.random.uniform(key, shape, jnp.float32, -bound, bound)


def init_layer(key, D, mr, ls_init):
    hid = D * mr
    k = jax.random.split(key, 16)
    p = {}
    p["n1w"] = jnp.ones((1, D), jnp.float32)
    p["n1b"] = jnp.zeros((1, D), jnp.float32)
    p["bf"] = 1.0 + 0.1 * jax.random.normal(k[0], (1, D), jnp.float32)
    p["bb"] = jnp.zeros((1, D), jnp.float32)
    p["mrb"] = jnp.zeros((1, D), jnp.float32)
    p["cw1"] = dense_init(k[1], D, (D, hid));       p["cb1"] = dense_init(k[2], D, (1, hid))
    p["cw2"] = dense_init(k[3], hid, (hid, 2 * D)); p["cb2"] = dense_init(k[4], hid, (1, 2 * D))
    p["n2w"] = jnp.ones((1, D), jnp.float32)
    p["n2b"] = jnp.zeros((1, D), jnp.float32)
    p["mw1"] = dense_init(k[5], D, (D, hid));       p["mb1"] = dense_init(k[6], D, (1, hid))
    p["mw2"] = dense_init(k[7], hid, (hid, D));     p["mb2"] = dense_init(k[8], hid, (1, D))
    p["ls1"] = jnp.full((1, D), ls_init, jnp.float32)
    p["ls2"] = jnp.full((1, D), ls_init, jnp.float32)
    p["gnw"] = jnp.ones((1, D), jnp.float32)
    p["gnb"] = jnp.zeros((1, D), jnp.float32)
    p["gw1"] = dense_init(k[9], D, (D, D));   p["gb1"] = dense_init(k[10], D, (1, D))
    p["gw2"] = dense_init(k[11], D, (D, D));  p["gb2"] = dense_init(k[12], D, (1, D))
    return p


def pack_params(layers, final_w, final_b, D, hid):
    def pad_row(v):
        v = np.asarray(v, np.float32).reshape(-1)
        row = np.zeros((LANE,), np.float32)
        row[:v.shape[0]] = v
        return row

    def pad_mat(m, rows, cols):
        m = np.asarray(m, np.float32)
        out = np.zeros((rows, cols), np.float32)
        out[:m.shape[0], :m.shape[1]] = m
        return out

    rows, was, wbs = [], [], []
    for p in layers:
        cb2 = np.asarray(p["cb2"], np.float32).reshape(-1)
        order = [p["n1w"], p["n1b"], p["bf"], p["bb"], p["mrb"],
                 p["cb1"], cb2[:D], cb2[D:],
                 p["n2w"], p["n2b"], p["mb1"], p["mb2"],
                 p["ls1"], p["ls2"], p["gnw"], p["gnb"], p["gb1"], p["gb2"]]
        rows.extend(pad_row(v) for v in order)

        # WA [D, 3*128]: cw1 | mw1 | gw1 (each segment 128-lane aligned, zero-padded)
        was.append(np.concatenate([pad_mat(p["cw1"], D, LANE),
                                   pad_mat(p["mw1"], D, LANE),
                                   pad_mat(p["gw1"], D, LANE)], axis=1))

        # WB [hid, 4*128]: cw2 (scale cols in tile0, bias cols in tile1) | mw2 | gw2
        cw2 = np.asarray(p["cw2"], np.float32)               # [hid, 2D]
        cw2p = np.zeros((hid, 2 * LANE), np.float32)
        cw2p[:, :D] = cw2[:, :D]
        cw2p[:, LANE:LANE + D] = cw2[:, D:]
        wbs.append(np.concatenate([cw2p,
                                   pad_mat(p["mw2"], hid, LANE),
                                   pad_mat(p["gw2"], hid, LANE)], axis=1))

    rows.append(pad_row(final_w))
    rows.append(pad_row(final_b))
    vecs = jnp.asarray(np.stack(rows), jnp.float32)          # [depth*18 + 2, 128]
    wa = jnp.asarray(np.stack(was), jnp.float32)             # [depth, D, 384]
    wb = jnp.asarray(np.stack(wbs), jnp.float32)             # [depth, hid, 512]
    return vecs, wa, wb


def dft_operands(S, nb):
    """Block-diagonal stacked DFT operands for `nb` sublane-stacked batches.

    fwd: [2*nb*S, nb*S]  rows 0:nb*S = blockdiag(cos), rows nb*S: = blockdiag(-sin)
    inv: [nb*S, 2*nb*S]  cols 0:nb*S = blockdiag(cos), cols nb*S: = blockdiag(-sin); scaled 1/S
    """
    n = np.arange(S)
    ang = 2.0 * np.pi * np.outer(n, n) / S
    cos, sin = np.cos(ang), np.sin(ang)

    def blkdiag(m):
        out = np.zeros((nb * S, nb * S), np.float64)
        for b in range(nb):
            out[b * S:(b + 1) * S, b * S:(b + 1) * S] = m
        return out

    fwd = np.concatenate([blkdiag(cos), blkdiag(-sin)], axis=0).astype(np.float32)
    inv = (np.concatenate([blkdiag(cos), blkdiag(-sin)], axis=1) / S).astype(np.float32)
    return jnp.asarray(fwd), jnp.asarray(inv)


# --------------------------------------------------------------------------------------
# Pure-JAX reference (uses jnp.fft) for validation
# --------------------------------------------------------------------------------------
def _ln_ref(v, w, b):
    mu = v.mean(-1, keepdims=True)
    var = ((v - mu) ** 2).mean(-1, keepdims=True)
    return (v - mu) / jnp.sqrt(var + EPS) * w + b


def layer_ref(x, p):
    D = x.shape[-1]
    xn = _ln_ref(x, p["n1w"], p["n1b"])
    ctx = xn.mean(axis=1)                                         # [B, D]
    mod = _gelu(ctx @ p["cw1"] + p["cb1"]) @ p["cw2"] + p["cb2"]  # [B, 2D]
    dscale, dbias = mod[:, :D], mod[:, D:]
    eff_f = (p["bf"] * (1.0 + dscale))[:, None, :]
    eff_b = (p["bb"] + dbias)[:, None, :]
    xf = jnp.fft.fft(xn, axis=1)
    xf = xf * eff_f + eff_b
    mag, ph = jnp.abs(xf), jnp.angle(xf)
    thr = jax.nn.relu(mag + p["mrb"])
    xf = thr * jnp.cos(ph) + 1j * thr * jnp.sin(ph)
    xflt = jnp.fft.ifft(xf, axis=1).real.astype(x.dtype)
    x = x + p["ls1"] * xflt
    xn2 = _ln_ref(x, p["n2w"], p["n2b"])
    x = x + p["ls2"] * (_gelu(xn2 @ p["mw1"] + p["mb1"]) @ p["mw2"] + p["mb2"])
    nx = _ln_ref(x, p["gnw"], p["gnb"])
    gctx = nx.mean(axis=1, keepdims=True)
    gate = jax.nn.sigmoid(_gelu(gctx @ p["gw1"] + p["gb1"]) @ p["gw2"] + p["gb2"])
    return x * gate


def fftnet_ref(x, layers, final_w, final_b):
    for p in layers:
        x = layer_ref(x, p)
    return _ln_ref(x, final_w, final_b)


# --------------------------------------------------------------------------------------
if __name__ == "__main__":
    B, S, D, H, MR, DEPTH = 2, 8, 32, 4, 4, 2   # dim % num_heads == 0
    HID = D * MR

    key = jax.random.PRNGKey(0)
    kx, kp = jax.random.split(key)
    x = jax.random.normal(kx, (B, S, D), jnp.float32)

    layer_keys = jax.random.split(kp, DEPTH)
    layers = [init_layer(k, D, MR, 1e-5) for k in layer_keys]
    final_w = jnp.ones((1, D), jnp.float32)
    final_b = jnp.zeros((1, D), jnp.float32)

    # Single invocation (all batches folded) on single-TC chips; 2-wide parallel grid
    # (one batch chunk per TensorCore) on v7x-class devices.
    try:
        kind = jax.devices()[0].device_kind.lower()
    except Exception:
        kind = ""
    NB = B // 2 if ("v7" in kind and B % 2 == 0) else B

    vecs, wa, wb = pack_params(layers, final_w, final_b, D, HID)
    fwd, inv = dft_operands(S, NB)

    fused = jax.jit(
        lambda x, fwd, inv, vecs, wa, wb: fftnet_forward(
            x, fwd, inv, vecs, wa, wb, depth=DEPTH, D=D, hid=HID, batches_per_step=NB))

    out = jax.block_until_ready(fused(x, fwd, inv, vecs, wa, wb))
    ref = jax.block_until_ready(jax.jit(fftnet_ref)(x, layers, final_w, final_b))

    assert out.shape == (B, S, D) and out.dtype == jnp.float32
    np.testing.assert_allclose(np.asarray(out), np.asarray(ref), rtol=5e-3, atol=5e-3)
    print("KERNEL_OK")
</pallas_src>

<mosaic_0001>
module attributes {stable_mosaic.version = 11 : i64} {
  func.func @kernel(%arg0: i32, %arg1: memref<2x8x32xf32, #tpu.memory_space<vmem>>, %arg2: memref<32x16xf32, #tpu.memory_space<vmem>>, %arg3: memref<16x32xf32, #tpu.memory_space<vmem>>, %arg4: memref<38x128xf32, #tpu.memory_space<vmem>>, %arg5: memref<2x32x384xf32, #tpu.memory_space<vmem>>, %arg6: memref<2x128x512xf32, #tpu.memory_space<vmem>>, %arg7: memref<2x8x32xf32, #tpu.memory_space<vmem>>) attributes {dimension_semantics = [#tpu.dimension_semantics<parallel>], iteration_bounds = array<i64: 1>, scalar_prefetch = 0 : i64, scratch_operands = 0 : i64, tpu.core_type = #tpu.core_type<tc>, window_params = [{transform_indices = @transform_0, window_bounds = array<i64: 2, 8, 32>}, {pipeline_mode = #tpu.pipeline_mode<synchronous>, transform_indices = @transform_1, window_bounds = array<i64: 32, 16>}, {pipeline_mode = #tpu.pipeline_mode<synchronous>, transform_indices = @transform_2, window_bounds = array<i64: 16, 32>}, {pipeline_mode = #tpu.pipeline_mode<synchronous>, transform_indices = @transform_3, window_bounds = array<i64: 38, 128>}, {pipeline_mode = #tpu.pipeline_mode<synchronous>, transform_indices = @transform_4, window_bounds = array<i64: 2, 32, 384>}, {pipeline_mode = #tpu.pipeline_mode<synchronous>, transform_indices = @transform_5, window_bounds = array<i64: 2, 128, 512>}, {transform_indices = @transform_6, window_bounds = array<i64: 2, 8, 32>}]} {
    %c0 = arith.constant 0 : index
    %c0_0 = arith.constant 0 : index
    %c0_1 = arith.constant 0 : index
    %0 = vector.load %arg1[%c0, %c0_0, %c0_1] : memref<2x8x32xf32, #tpu.memory_space<vmem>>, vector<1x8x32xf32>
    %1 = vector.shape_cast %0 : vector<1x8x32xf32> to vector<8x32xf32>
    %c1 = arith.constant 1 : index
    %c0_2 = arith.constant 0 : index
    %c0_3 = arith.constant 0 : index
    %2 = vector.load %arg1[%c1, %c0_2, %c0_3] : memref<2x8x32xf32, #tpu.memory_space<vmem>>, vector<1x8x32xf32>
    %3 = vector.shape_cast %2 : vector<1x8x32xf32> to vector<8x32xf32>
    %4 = tpu.concatenate %1, %3 in 0 : vector<8x32xf32>, vector<8x32xf32> -> vector<16x32xf32>
    %c0_4 = arith.constant 0 : index
    %c0_5 = arith.constant 0 : index
    %5 = vector.load %arg2[%c0_4, %c0_5] : memref<32x16xf32, #tpu.memory_space<vmem>>, vector<32x16xf32>
    %c0_6 = arith.constant 0 : index
    %c0_7 = arith.constant 0 : index
    %6 = vector.load %arg3[%c0_6, %c0_7] : memref<16x32xf32, #tpu.memory_space<vmem>>, vector<16x32xf32>
    %7 = tpu.iota {dimensions = array<i32: 0>} : vector<32x32xi32>
    %c16_i32 = arith.constant 16 : i32
    %8 = vector.broadcast %c16_i32 : i32 to vector<32x32xi32>
    %9 = arith.cmpi slt, %7, %8 : vector<32x32xi32>
    %10 = arith.extui %9 : vector<32x32xi1> to vector<32x32xi32>
    %11 = arith.sitofp %10 : vector<32x32xi32> to vector<32x32xf32>
    %cst = arith.constant 0.000000e+00 : f32
    %12 = vector.broadcast %cst : f32 to vector<16x32xf32>
    %c0_8 = arith.constant 0 : index
    %c0_9 = arith.constant 0 : index
    %c0_10 = arith.constant 0 : index
    %13 = vector.load %arg5[%c0_8, %c0_9, %c0_10] : memref<2x32x384xf32, #tpu.memory_space<vmem>>, vector<1x32x384xf32>
    %14 = vector.shape_cast %13 : vector<1x32x384xf32> to vector<32x384xf32>
    %c0_11 = arith.constant 0 : index
    %c0_12 = arith.constant 0 : index
    %c0_13 = arith.constant 0 : index
    %15 = vector.load %arg6[%c0_11, %c0_12, %c0_13] : memref<2x128x512xf32, #tpu.memory_space<vmem>>, vector<1x128x512xf32>
    %16 = vector.shape_cast %15 : vector<1x128x512xf32> to vector<128x512xf32>
    %17 = vector.extract_strided_slice %14 {offsets = [0, 0], sizes = [32, 128], strides = [1, 1]} : vector<32x384xf32> to vector<32x128xf32>
    %18 = vector.extract_strided_slice %14 {offsets = [0, 128], sizes = [32, 128], strides = [1, 1]} : vector<32x384xf32> to vector<32x128xf32>
    %19 = vector.extract_strided_slice %14 {offsets = [0, 256], sizes = [32, 128], strides = [1, 1]} : vector<32x384xf32> to vector<32x128xf32>
    %20 = vector.extract_strided_slice %16 {offsets = [0, 0], sizes = [128, 256], strides = [1, 1]} : vector<128x512xf32> to vector<128x256xf32>
    %21 = vector.extract_strided_slice %16 {offsets = [0, 256], sizes = [128, 128], strides = [1, 1]} : vector<128x512xf32> to vector<128x128xf32>
    %22 = vector.extract_strided_slice %16 {offsets = [0, 384], sizes = [128, 128], strides = [1, 1]} : vector<128x512xf32> to vector<128x128xf32>
    %c0_14 = arith.constant 0 : index
    %c0_15 = arith.constant 0 : index
    %23 = vector.load %arg4[%c0_14, %c0_15] : memref<38x128xf32, #tpu.memory_space<vmem>>, vector<1x32xf32>
    %c1_16 = arith.constant 1 : index
    %c0_17 = arith.constant 0 : index
    %24 = vector.load %arg4[%c1_16, %c0_17] : memref<38x128xf32, #tpu.memory_space<vmem>>, vector<1x32xf32>
    %cst_18 = arith.constant dense<0.000000e+00> : vector<16xf32>
    %25 = vector.multi_reduction <add>, %4, %cst_18 [1] : vector<16x32xf32> to vector<16xf32>
    %26 = vector.shape_cast %25 : vector<16xf32> to vector<16x1xf32>
    %cst_19 = arith.constant 3.200000e+01 : f32
    %27 = vector.broadcast %cst_19 : f32 to vector<16x1xf32>
    %28 = arith.divf %26, %27 : vector<16x1xf32>
    %29 = vector.broadcast %28 : vector<16x1xf32> to vector<16x32xf32>
    %30 = arith.subf %4, %29 : vector<16x32xf32>
    %31 = arith.mulf %30, %30 : vector<16x32xf32>
    %cst_20 = arith.constant dense<0.000000e+00> : vector<16xf32>
    %32 = vector.multi_reduction <add>, %31, %cst_20 [1] : vector<16x32xf32> to vector<16xf32>
    %33 = vector.shape_cast %32 : vector<16xf32> to vector<16x1xf32>
    %cst_21 = arith.constant 3.200000e+01 : f32
    %34 = vector.broadcast %cst_21 : f32 to vector<16x1xf32>
    %35 = arith.divf %33, %34 : vector<16x1xf32>
    %36 = vector.broadcast %28 : vector<16x1xf32> to vector<16x32xf32>
    %37 = arith.subf %4, %36 : vector<16x32xf32>
    %cst_22 = arith.constant 9.99999974E-6 : f32
    %38 = vector.broadcast %cst_22 : f32 to vector<16x1xf32>
    %39 = arith.addf %35, %38 : vector<16x1xf32>
    %40 = math.rsqrt %39 : vector<16x1xf32>
    %41 = vector.broadcast %40 : vector<16x1xf32> to vector<16x32xf32>
    %42 = arith.mulf %37, %41 : vector<16x32xf32>
    %43 = vector.broadcast %23 : vector<1x32xf32> to vector<16x32xf32>
    %44 = arith.mulf %42, %43 : vector<16x32xf32>
    %45 = vector.broadcast %24 : vector<1x32xf32> to vector<16x32xf32>
    %46 = arith.addf %44, %45 : vector<16x32xf32>
    %47 = vector.extract_strided_slice %46 {offsets = [0, 0], sizes = [8, 32], strides = [1, 1]} : vector<16x32xf32> to vector<8x32xf32>
    %cst_23 = arith.constant dense<0.000000e+00> : vector<32xf32>
    %48 = vector.multi_reduction <add>, %47, %cst_23 [0] : vector<8x32xf32> to vector<32xf32>
    %49 = vector.shape_cast %48 : vector<32xf32> to vector<1x32xf32>
    %cst_24 = arith.constant 8.000000e+00 : f32
    %50 = vector.broadcast %cst_24 : f32 to vector<1x32xf32>
    %51 = arith.divf %49, %50 : vector<1x32xf32>
    %52 = vector.extract_strided_slice %46 {offsets = [8, 0], sizes = [8, 32], strides = [1, 1]} : vector<16x32xf32> to vector<8x32xf32>
    %cst_25 = arith.constant dense<0.000000e+00> : vector<32xf32>
    %53 = vector.multi_reduction <add>, %52, %cst_25 [0] : vector<8x32xf32> to vector<32xf32>
    %54 = vector.shape_cast %53 : vector<32xf32> to vector<1x32xf32>
    %cst_26 = arith.constant 8.000000e+00 : f32
    %55 = vector.broadcast %cst_26 : f32 to vector<1x32xf32>
    %56 = arith.divf %54, %55 : vector<1x32xf32>
    %57 = tpu.concatenate %51, %56 in 0 : vector<1x32xf32>, vector<1x32xf32> -> vector<2x32xf32>
    %cst_27 = arith.constant dense<0.000000e+00> : vector<2x128xf32>
    %58 = tpu.matmul %57, %17, %cst_27 {dimension_numbers = #tpu.dot_dimension_numbers<[1], [0], [0], [1], [0, 0, 1, 1], [], []>} : vector<2x32xf32>, vector<32x128xf32>, vector<2x128xf32> -> vector<2x128xf32>
    %c5 = arith.constant 5 : index
    %c0_28 = arith.constant 0 : index
    %59 = vector.load %arg4[%c5, %c0_28] : memref<38x128xf32, #tpu.memory_space<vmem>>, vector<1x128xf32>
    %60 = vector.broadcast %59 : vector<1x128xf32> to vector<2x128xf32>
    %61 = arith.addf %58, %60 : vector<2x128xf32>
    %cst_29 = arith.constant 5.000000e-01 : f32
    %62 = vector.broadcast %cst_29 : f32 to vector<2x128xf32>
    %63 = arith.mulf %62, %61 : vector<2x128xf32>
    %cst_30 = arith.constant 0.707106769 : f32
    %64 = vector.broadcast %cst_30 : f32 to vector<2x128xf32>
    %65 = arith.mulf %61, %64 : vector<2x128xf32>
    %66 = math.erf %65 : vector<2x128xf32>
    %cst_31 = arith.constant 1.000000e+00 : f32
    %67 = vector.broadcast %cst_31 : f32 to vector<2x128xf32>
    %68 = arith.addf %67, %66 : vector<2x128xf32>
    %69 = arith.mulf %63, %68 : vector<2x128xf32>
    %cst_32 = arith.constant dense<0.000000e+00> : vector<2x256xf32>
    %70 = tpu.matmul %69, %20, %cst_32 {dimension_numbers = #tpu.dot_dimension_numbers<[1], [0], [0], [1], [0, 0, 1, 1], [], []>} : vector<2x128xf32>, vector<128x256xf32>, vector<2x256xf32> -> vector<2x256xf32>
    %71 = vector.extract_strided_slice %70 {offsets = [0, 0], sizes = [2, 32], strides = [1, 1]} : vector<2x256xf32> to vector<2x32xf32>
    %c6 = arith.constant 6 : index
    %c0_33 = arith.constant 0 : index
    %72 = vector.load %arg4[%c6, %c0_33] : memref<38x128xf32, #tpu.memory_space<vmem>>, vector<1x32xf32>
    %73 = vector.broadcast %72 : vector<1x32xf32> to vector<2x32xf32>
    %74 = arith.addf %71, %73 : vector<2x32xf32>
    %75 = vector.extract_strided_slice %70 {offsets = [0, 128], sizes = [2, 32], strides = [1, 1]} : vector<2x256xf32> to vector<2x32xf32>
    %c7 = arith.constant 7 : index
    %c0_34 = arith.constant 0 : index
    %76 = vector.load %arg4[%c7, %c0_34] : memref<38x128xf32, #tpu.memory_space<vmem>>, vector<1x32xf32>
    %77 = vector.broadcast %76 : vector<1x32xf32> to vector<2x32xf32>
    %78 = arith.addf %75, %77 : vector<2x32xf32>
    %c2 = arith.constant 2 : index
    %c0_35 = arith.constant 0 : index
    %79 = vector.load %arg4[%c2, %c0_35] : memref<38x128xf32, #tpu.memory_space<vmem>>, vector<1x32xf32>
    %cst_36 = arith.constant 1.000000e+00 : f32
    %80 = vector.broadcast %cst_36 : f32 to vector<2x32xf32>
    %81 = arith.addf %80, %74 : vector<2x32xf32>
    %82 = vector.broadcast %79 : vector<1x32xf32> to vector<2x32xf32>
    %83 = arith.mulf %82, %81 : vector<2x32xf32>
    %c3 = arith.constant 3 : index
    %c0_37 = arith.constant 0 : index
    %84 = vector.load %arg4[%c3, %c0_37] : memref<38x128xf32, #tpu.memory_space<vmem>>, vector<1x32xf32>
    %85 = vector.broadcast %84 : vector<1x32xf32> to vector<2x32xf32>
    %86 = arith.addf %85, %78 : vector<2x32xf32>
    %cst_38 = arith.constant dense<0.000000e+00> : vector<32x32xf32>
    %87 = tpu.matmul %5, %46, %cst_38 {dimension_numbers = #tpu.dot_dimension_numbers<[1], [0], [0], [1], [0, 0, 1, 1], [], []>} : vector<32x16xf32>, vector<16x32xf32>, vector<32x32xf32> -> vector<32x32xf32>
    %88 = vector.extract_strided_slice %83 {offsets = [0, 0], sizes = [1, 32], strides = [1, 1]} : vector<2x32xf32> to vector<1x32xf32>
    %89 = vector.shape_cast %88 : vector<1x32xf32> to vector<1x32xf32>
    %90 = vector.broadcast %89 : vector<1x32xf32> to vector<8x32xf32>
    %91 = vector.extract_strided_slice %83 {offsets = [1, 0], sizes = [1, 32], strides = [1, 1]} : vector<2x32xf32> to vector<1x32xf32>
    %92 = vector.shape_cast %91 : vector<1x32xf32> to vector<1x32xf32>
    %93 = vector.broadcast %92 : vector<1x32xf32> to vector<8x32xf32>
    %94 = tpu.concatenate %90, %93 in 0 : vector<8x32xf32>, vector<8x32xf32> -> vector<16x32xf32>
    %95 = tpu.concatenate %94, %94 in 0 : vector<16x32xf32>, vector<16x32xf32> -> vector<32x32xf32>
    %96 = vector.extract_strided_slice %86 {offsets = [0, 0], sizes = [1, 32], strides = [1, 1]} : vector<2x32xf32> to vector<1x32xf32>
    %97 = vector.shape_cast %96 : vector<1x32xf32> to vector<1x32xf32>
    %98 = vector.broadcast %97 : vector<1x32xf32> to vector<8x32xf32>
    %99 = vector.extract_strided_slice %86 {offsets = [1, 0], sizes = [1, 32], strides = [1, 1]} : vector<2x32xf32> to vector<1x32xf32>
    %100 = vector.shape_cast %99 : vector<1x32xf32> to vector<1x32xf32>
    %101 = vector.broadcast %100 : vector<1x32xf32> to vector<8x32xf32>
    %102 = tpu.concatenate %98, %101 in 0 : vector<8x32xf32>, vector<8x32xf32> -> vector<16x32xf32>
    %103 = tpu.concatenate %102, %12 in 0 : vector<16x32xf32>, vector<16x32xf32> -> vector<32x32xf32>
    %104 = arith.mulf %87, %95 : vector<32x32xf32>
    %105 = arith.addf %104, %103 : vector<32x32xf32>
    %106 = arith.mulf %105, %105 : vector<32x32xf32>
    %c16_i32_39 = arith.constant 16 : i32
    %107 = tpu.dynamic_rotate %106 by %c16_i32_39 dim 0 : vector<32x32xf32>, i32 -> vector<32x32xf32>
    %108 = arith.addf %106, %107 : vector<32x32xf32>
    %cst_40 = arith.constant 1.000000e-30 : f32
    %109 = vector.broadcast %cst_40 : f32 to vector<32x32xf32>
    %110 = arith.addf %108, %109 : vector<32x32xf32>
    %111 = math.rsqrt %110 : vector<32x32xf32>
    %112 = arith.mulf %108, %111 : vector<32x32xf32>
    %c4 = arith.constant 4 : index
    %c0_41 = arith.constant 0 : index
    %113 = vector.load %arg4[%c4, %c0_41] : memref<38x128xf32, #tpu.memory_space<vmem>>, vector<1x32xf32>
    %114 = vector.broadcast %113 : vector<1x32xf32> to vector<32x32xf32>
    %115 = arith.addf %112, %114 : vector<32x32xf32>
    %cst_42 = arith.constant 0.000000e+00 : f32
    %116 = vector.broadcast %cst_42 : f32 to vector<32x32xf32>
    %117 = arith.maximumf %115, %116 : vector<32x32xf32>
    %cst_43 = arith.constant 0.000000e+00 : f32
    %118 = vector.broadcast %cst_43 : f32 to vector<32x32xf32>
    %119 = arith.cmpf ogt, %108, %118 : vector<32x32xf32>
    %120 = arith.mulf %105, %111 : vector<32x32xf32>
    %121 = arith.select %119, %120, %11 : vector<32x32xi1>, vector<32x32xf32>
    %122 = arith.mulf %117, %121 : vector<32x32xf32>
    %cst_44 = arith.constant dense<0.000000e+00> : vector<16x32xf32>
    %123 = tpu.matmul %6, %122, %cst_44 {dimension_numbers = #tpu.dot_dimension_numbers<[1], [0], [0], [1], [0, 0, 1, 1], [], []>} : vector<16x32xf32>, vector<32x32xf32>, vector<16x32xf32> -> vector<16x32xf32>
    %c12 = arith.constant 12 : index
    %c0_45 = arith.constant 0 : index
    %124 = vector.load %arg4[%c12, %c0_45] : memref<38x128xf32, #tpu.memory_space<vmem>>, vector<1x32xf32>
    %125 = vector.broadcast %124 : vector<1x32xf32> to vector<16x32xf32>
    %126 = arith.mulf %125, %123 : vector<16x32xf32>
    %127 = arith.addf %4, %126 : vector<16x32xf32>
    %c8 = arith.constant 8 : index
    %c0_46 = arith.constant 0 : index
    %128 = vector.load %arg4[%c8, %c0_46] : memref<38x128xf32, #tpu.memory_space<vmem>>, vector<1x32xf32>
    %c9 = arith.constant 9 : index
    %c0_47 = arith.constant 0 : index
    %129 = vector.load %arg4[%c9, %c0_47] : memref<38x128xf32, #tpu.memory_space<vmem>>, vector<1x32xf32>
    %cst_48 = arith.constant dense<0.000000e+00> : vector<16xf32>
    %130 = vector.multi_reduction <add>, %127, %cst_48 [1] : vector<16x32xf32> to vector<16xf32>
    %131 = vector.shape_cast %130 : vector<16xf32> to vector<16x1xf32>
    %cst_49 = arith.constant 3.200000e+01 : f32
    %132 = vector.broadcast %cst_49 : f32 to vector<16x1xf32>
    %133 = arith.divf %131, %132 : vector<16x1xf32>
    %134 = vector.broadcast %133 : vector<16x1xf32> to vector<16x32xf32>
    %135 = arith.subf %127, %134 : vector<16x32xf32>
    %136 = arith.mulf %135, %135 : vector<16x32xf32>
    %cst_50 = arith.constant dense<0.000000e+00> : vector<16xf32>
    %137 = vector.multi_reduction <add>, %136, %cst_50 [1] : vector<16x32xf32> to vector<16xf32>
    %138 = vector.shape_cast %137 : vector<16xf32> to vector<16x1xf32>
    %cst_51 = arith.constant 3.200000e+01 : f32
    %139 = vector.broadcast %cst_51 : f32 to vector<16x1xf32>
    %140 = arith.divf %138, %139 : vector<16x1xf32>
    %141 = vector.broadcast %133 : vector<16x1xf32> to vector<16x32xf32>
    %142 = arith.subf %127, %141 : vector<16x32xf32>
    %cst_52 = arith.constant 9.99999974E-6 : f32
    %143 = vector.broadcast %cst_52 : f32 to vector<16x1xf32>
    %144 = arith.addf %140, %143 : vector<16x1xf32>
    %145 = math.rsqrt %144 : vector<16x1xf32>
    %146 = vector.broadcast %145 : vector<16x1xf32> to vector<16x32xf32>
    %147 = arith.mulf %142, %146 : vector<16x32xf32>
    %148 = vector.broadcast %128 : vector<1x32xf32> to vector<16x32xf32>
    %149 = arith.mulf %147, %148 : vector<16x32xf32>
    %150 = vector.broadcast %129 : vector<1x32xf32> to vector<16x32xf32>
    %151 = arith.addf %149, %150 : vector<16x32xf32>
    %cst_53 = arith.constant dense<0.000000e+00> : vector<16x128xf32>
    %152 = tpu.matmul %151, %18, %cst_53 {dimension_numbers = #tpu.dot_dimension_numbers<[1], [0], [0], [1], [0, 0, 1, 1], [], []>} : vector<16x32xf32>, vector<32x128xf32>, vector<16x128xf32> -> vector<16x128xf32>
    %c10 = arith.constant 10 : index
    %c0_54 = arith.constant 0 : index
    %153 = vector.load %arg4[%c10, %c0_54] : memref<38x128xf32, #tpu.memory_space<vmem>>, vector<1x128xf32>
    %154 = vector.broadcast %153 : vector<1x128xf32> to vector<16x128xf32>
    %155 = arith.addf %152, %154 : vector<16x128xf32>
    %cst_55 = arith.constant 5.000000e-01 : f32
    %156 = vector.broadcast %cst_55 : f32 to vector<16x128xf32>
    %157 = arith.mulf %156, %155 : vector<16x128xf32>
    %cst_56 = arith.constant 0.707106769 : f32
    %158 = vector.broadcast %cst_56 : f32 to vector<16x128xf32>
    %159 = arith.mulf %155, %158 : vector<16x128xf32>
    %160 = math.erf %159 : vector<16x128xf32>
    %cst_57 = arith.constant 1.000000e+00 : f32
    %161 = vector.broadcast %cst_57 : f32 to vector<16x128xf32>
    %162 = arith.addf %161, %160 : vector<16x128xf32>
    %163 = arith.mulf %157, %162 : vector<16x128xf32>
    %cst_58 = arith.constant dense<0.000000e+00> : vector<16x128xf32>
    %164 = tpu.matmul %163, %21, %cst_58 {dimension_numbers = #tpu.dot_dimension_numbers<[1], [0], [0], [1], [0, 0, 1, 1], [], []>} : vector<16x128xf32>, vector<128x128xf32>, vector<16x128xf32> -> vector<16x128xf32>
    %c11 = arith.constant 11 : index
    %c0_59 = arith.constant 0 : index
    %165 = vector.load %arg4[%c11, %c0_59] : memref<38x128xf32, #tpu.memory_space<vmem>>, vector<1x128xf32>
    %166 = vector.broadcast %165 : vector<1x128xf32> to vector<16x128xf32>
    %167 = arith.addf %164, %166 : vector<16x128xf32>
    %168 = vector.extract_strided_slice %167 {offsets = [0, 0], sizes = [16, 32], strides = [1, 1]} : vector<16x128xf32> to vector<16x32xf32>
    %c13 = arith.constant 13 : index
    %c0_60 = arith.constant 0 : index
    %169 = vector.load %arg4[%c13, %c0_60] : memref<38x128xf32, #tpu.memory_space<vmem>>, vector<1x32xf32>
    %170 = vector.broadcast %169 : vector<1x32xf32> to vector<16x32xf32>
    %171 = arith.mulf %170, %168 : vector<16x32xf32>
    %172 = arith.addf %127, %171 : vector<16x32xf32>
    %c14 = arith.constant 14 : index
    %c0_61 = arith.constant 0 : index
    %173 = vector.load %arg4[%c14, %c0_61] : memref<38x128xf32, #tpu.memory_space<vmem>>, vector<1x32xf32>
    %c15 = arith.constant 15 : index
    %c0_62 = arith.constant 0 : index
    %174 = vector.load %arg4[%c15, %c0_62] : memref<38x128xf32, #tpu.memory_space<vmem>>, vector<1x32xf32>
    %cst_63 = arith.constant dense<0.000000e+00> : vector<16xf32>
    %175 = vector.multi_reduction <add>, %172, %cst_63 [1] : vector<16x32xf32> to vector<16xf32>
    %176 = vector.shape_cast %175 : vector<16xf32> to vector<16x1xf32>
    %cst_64 = arith.constant 3.200000e+01 : f32
    %177 = vector.broadcast %cst_64 : f32 to vector<16x1xf32>
    %178 = arith.divf %176, %177 : vector<16x1xf32>
    %179 = vector.broadcast %178 : vector<16x1xf32> to vector<16x32xf32>
    %180 = arith.subf %172, %179 : vector<16x32xf32>
    %181 = arith.mulf %180, %180 : vector<16x32xf32>
    %cst_65 = arith.constant dense<0.000000e+00> : vector<16xf32>
    %182 = vector.multi_reduction <add>, %181, %cst_65 [1] : vector<16x32xf32> to vector<16xf32>
    %183 = vector.shape_cast %182 : vector<16xf32> to vector<16x1xf32>
    %cst_66 = arith.constant 3.200000e+01 : f32
    %184 = vector.broadcast %cst_66 : f32 to vector<16x1xf32>
    %185 = arith.divf %183, %184 : vector<16x1xf32>
    %186 = vector.broadcast %178 : vector<16x1xf32> to vector<16x32xf32>
    %187 = arith.subf %172, %186 : vector<16x32xf32>
    %cst_67 = arith.constant 9.99999974E-6 : f32
    %188 = vector.broadcast %cst_67 : f32 to vector<16x1xf32>
    %189 = arith.addf %185, %188 : vector<16x1xf32>
    %190 = math.rsqrt %189 : vector<16x1xf32>
    %191 = vector.broadcast %190 : vector<16x1xf32> to vector<16x32xf32>
    %192 = arith.mulf %187, %191 : vector<16x32xf32>
    %193 = vector.broadcast %173 : vector<1x32xf32> to vector<16x32xf32>
    %194 = arith.mulf %192, %193 : vector<16x32xf32>
    %195 = vector.broadcast %174 : vector<1x32xf32> to vector<16x32xf32>
    %196 = arith.addf %194, %195 : vector<16x32xf32>
    %197 = vector.extract_strided_slice %196 {offsets = [0, 0], sizes = [8, 32], strides = [1, 1]} : vector<16x32xf32> to vector<8x32xf32>
    %cst_68 = arith.constant dense<0.000000e+00> : vector<32xf32>
    %198 = vector.multi_reduction <add>, %197, %cst_68 [0] : vector<8x32xf32> to vector<32xf32>
    %199 = vector.shape_cast %198 : vector<32xf32> to vector<1x32xf32>
    %cst_69 = arith.constant 8.000000e+00 : f32
    %200 = vector.broadcast %cst_69 : f32 to vector<1x32xf32>
    %201 = arith.divf %199, %200 : vector<1x32xf32>
    %202 = vector.extract_strided_slice %196 {offsets = [8, 0], sizes = [8, 32], strides = [1, 1]} : vector<16x32xf32> to vector<8x32xf32>
    %cst_70 = arith.constant dense<0.000000e+00> : vector<32xf32>
    %203 = vector.multi_reduction <add>, %202, %cst_70 [0] : vector<8x32xf32> to vector<32xf32>
    %204 = vector.shape_cast %203 : vector<32xf32> to vector<1x32xf32>
    %cst_71 = arith.constant 8.000000e+00 : f32
    %205 = vector.broadcast %cst_71 : f32 to vector<1x32xf32>
    %206 = arith.divf %204, %205 : vector<1x32xf32>
    %207 = tpu.concatenate %201, %206 in 0 : vector<1x32xf32>, vector<1x32xf32> -> vector<2x32xf32>
    %cst_72 = arith.constant dense<0.000000e+00> : vector<2x128xf32>
    %208 = tpu.matmul %207, %19, %cst_72 {dimension_numbers = #tpu.dot_dimension_numbers<[1], [0], [0], [1], [0, 0, 1, 1], [], []>} : vector<2x32xf32>, vector<32x128xf32>, vector<2x128xf32> -> vector<2x128xf32>
    %c16 = arith.constant 16 : index
    %c0_73 = arith.constant 0 : index
    %209 = vector.load %arg4[%c16, %c0_73] : memref<38x128xf32, #tpu.memory_space<vmem>>, vector<1x128xf32>
    %210 = vector.broadcast %209 : vector<1x128xf32> to vector<2x128xf32>
    %211 = arith.addf %208, %210 : vector<2x128xf32>
    %cst_74 = arith.constant 5.000000e-01 : f32
    %212 = vector.broadcast %cst_74 : f32 to vector<2x128xf32>
    %213 = arith.mulf %212, %211 : vector<2x128xf32>
    %cst_75 = arith.constant 0.707106769 : f32
    %214 = vector.broadcast %cst_75 : f32 to vector<2x128xf32>
    %215 = arith.mulf %211, %214 : vector<2x128xf32>
    %216 = math.erf %215 : vector<2x128xf32>
    %cst_76 = arith.constant 1.000000e+00 : f32
    %217 = vector.broadcast %cst_76 : f32 to vector<2x128xf32>
    %218 = arith.addf %217, %216 : vector<2x128xf32>
    %219 = arith.mulf %213, %218 : vector<2x128xf32>
    %cst_77 = arith.constant dense<0.000000e+00> : vector<2x128xf32>
    %220 = tpu.matmul %219, %22, %cst_77 {dimension_numbers = #tpu.dot_dimension_numbers<[1], [0], [0], [1], [0, 0, 1, 1], [], []>} : vector<2x128xf32>, vector<128x128xf32>, vector<2x128xf32> -> vector<2x128xf32>
    %c17 = arith.constant 17 : index
    %c0_78 = arith.constant 0 : index
    %221 = vector.load %arg4[%c17, %c0_78] : memref<38x128xf32, #tpu.memory_space<vmem>>, vector<1x128xf32>
    %222 = vector.broadcast %221 : vector<1x128xf32> to vector<2x128xf32>
    %223 = arith.addf %220, %222 : vector<2x128xf32>
    %224 = vector.extract_strided_slice %223 {offsets = [0, 0], sizes = [2, 32], strides = [1, 1]} : vector<2x128xf32> to vector<2x32xf32>
    %225 = arith.negf %224 : vector<2x32xf32>
    %226 = math.exp %225 : vector<2x32xf32>
    %cst_79 = arith.constant 1.000000e+00 : f32
    %227 = vector.broadcast %cst_79 : f32 to vector<2x32xf32>
    %228 = arith.addf %227, %226 : vector<2x32xf32>
    %229 = arith.divf %227, %228 : vector<2x32xf32>
    %230 = vector.extract_strided_slice %229 {offsets = [0, 0], sizes = [1, 32], strides = [1, 1]} : vector<2x32xf32> to vector<1x32xf32>
    %231 = vector.shape_cast %230 : vector<1x32xf32> to vector<1x32xf32>
    %232 = vector.broadcast %231 : vector<1x32xf32> to vector<8x32xf32>
    %233 = vector.extract_strided_slice %229 {offsets = [1, 0], sizes = [1, 32], strides = [1, 1]} : vector<2x32xf32> to vector<1x32xf32>
    %234 = vector.shape_cast %233 : vector<1x32xf32> to vector<1x32xf32>
    %235 = vector.broadcast %234 : vector<1x32xf32> to vector<8x32xf32>
    %236 = tpu.concatenate %232, %235 in 0 : vector<8x32xf32>, vector<8x32xf32> -> vector<16x32xf32>
    %237 = arith.mulf %172, %236 : vector<16x32xf32>
    %c1_80 = arith.constant 1 : index
    %c0_81 = arith.constant 0 : index
    %c0_82 = arith.constant 0 : index
    %238 = vector.load %arg5[%c1_80, %c0_81, %c0_82] : memref<2x32x384xf32, #tpu.memory_space<vmem>>, vector<1x32x384xf32>
    %239 = vector.shape_cast %238 : vector<1x32x384xf32> to vector<32x384xf32>
    %c1_83 = arith.constant 1 : index
    %c0_84 = arith.constant 0 : index
    %c0_85 = arith.constant 0 : index
    %240 = vector.load %arg6[%c1_83, %c0_84, %c0_85] : memref<2x128x512xf32, #tpu.memory_space<vmem>>, vector<1x128x512xf32>
    %241 = vector.shape_cast %240 : vector<1x128x512xf32> to vector<128x512xf32>
    %242 = vector.extract_strided_slice %239 {offsets = [0, 0], sizes = [32, 128], strides = [1, 1]} : vector<32x384xf32> to vector<32x128xf32>
    %243 = vector.extract_strided_slice %239 {offsets = [0, 128], sizes = [32, 128], strides = [1, 1]} : vector<32x384xf32> to vector<32x128xf32>
    %244 = vector.extract_strided_slice %239 {offsets = [0, 256], sizes = [32, 128], strides = [1, 1]} : vector<32x384xf32> to vector<32x128xf32>
    %245 = vector.extract_strided_slice %241 {offsets = [0, 0], sizes = [128, 256], strides = [1, 1]} : vector<128x512xf32> to vector<128x256xf32>
    %246 = vector.extract_strided_slice %241 {offsets = [0, 256], sizes = [128, 128], strides = [1, 1]} : vector<128x512xf32> to vector<128x128xf32>
    %247 = vector.extract_strided_slice %241 {offsets = [0, 384], sizes = [128, 128], strides = [1, 1]} : vector<128x512xf32> to vector<128x128xf32>
    %c18 = arith.constant 18 : index
    %c0_86 = arith.constant 0 : index
    %248 = vector.load %arg4[%c18, %c0_86] : memref<38x128xf32, #tpu.memory_space<vmem>>, vector<1x32xf32>
    %c19 = arith.constant 19 : index
    %c0_87 = arith.constant 0 : index
    %249 = vector.load %arg4[%c19, %c0_87] : memref<38x128xf32, #tpu.memory_space<vmem>>, vector<1x32xf32>
    %cst_88 = arith.constant dense<0.000000e+00> : vector<16xf32>
    %250 = vector.multi_reduction <add>, %237, %cst_88 [1] : vector<16x32xf32> to vector<16xf32>
    %251 = vector.shape_cast %250 : vector<16xf32> to vector<16x1xf32>
    %cst_89 = arith.constant 3.200000e+01 : f32
    %252 = vector.broadcast %cst_89 : f32 to vector<16x1xf32>
    %253 = arith.divf %251, %252 : vector<16x1xf32>
    %254 = vector.broadcast %253 : vector<16x1xf32> to vector<16x32xf32>
    %255 = arith.subf %237, %254 : vector<16x32xf32>
    %256 = arith.mulf %255, %255 : vector<16x32xf32>
    %cst_90 = arith.constant dense<0.000000e+00> : vector<16xf32>
    %257 = vector.multi_reduction <add>, %256, %cst_90 [1] : vector<16x32xf32> to vector<16xf32>
    %258 = vector.shape_cast %257 : vector<16xf32> to vector<16x1xf32>
    %cst_91 = arith.constant 3.200000e+01 : f32
    %259 = vector.broadcast %cst_91 : f32 to vector<16x1xf32>
    %260 = arith.divf %258, %259 : vector<16x1xf32>
    %261 = vector.broadcast %253 : vector<16x1xf32> to vector<16x32xf32>
    %262 = arith.subf %237, %261 : vector<16x32xf32>
    %cst_92 = arith.constant 9.99999974E-6 : f32
    %263 = vector.broadcast %cst_92 : f32 to vector<16x1xf32>
    %264 = arith.addf %260, %263 : vector<16x1xf32>
    %265 = math.rsqrt %264 : vector<16x1xf32>
    %266 = vector.broadcast %265 : vector<16x1xf32> to vector<16x32xf32>
    %267 = arith.mulf %262, %266 : vector<16x32xf32>
    %268 = vector.broadcast %248 : vector<1x32xf32> to vector<16x32xf32>
    %269 = arith.mulf %267, %268 : vector<16x32xf32>
    %270 = vector.broadcast %249 : vector<1x32xf32> to vector<16x32xf32>
    %271 = arith.addf %269, %270 : vector<16x32xf32>
    %272 = vector.extract_strided_slice %271 {offsets = [0, 0], sizes = [8, 32], strides = [1, 1]} : vector<16x32xf32> to vector<8x32xf32>
    %cst_93 = arith.constant dense<0.000000e+00> : vector<32xf32>
    %273 = vector.multi_reduction <add>, %272, %cst_93 [0] : vector<8x32xf32> to vector<32xf32>
    %274 = vector.shape_cast %273 : vector<32xf32> to vector<1x32xf32>
    %cst_94 = arith.constant 8.000000e+00 : f32
    %275 = vector.broadcast %cst_94 : f32 to vector<1x32xf32>
    %276 = arith.divf %274, %275 : vector<1x32xf32>
    %277 = vector.extract_strided_slice %271 {offsets = [8, 0], sizes = [8, 32], strides = [1, 1]} : vector<16x32xf32> to vector<8x32xf32>
    %cst_95 = arith.constant dense<0.000000e+00> : vector<32xf32>
    %278 = vector.multi_reduction <add>, %277, %cst_95 [0] : vector<8x32xf32> to vector<32xf32>
    %279 = vector.shape_cast %278 : vector<32xf32> to vector<1x32xf32>
    %cst_96 = arith.constant 8.000000e+00 : f32
    %280 = vector.broadcast %cst_96 : f32 to vector<1x32xf32>
    %281 = arith.divf %279, %280 : vector<1x32xf32>
    %282 = tpu.concatenate %276, %281 in 0 : vector<1x32xf32>, vector<1x32xf32> -> vector<2x32xf32>
    %cst_97 = arith.constant dense<0.000000e+00> : vector<2x128xf32>
    %283 = tpu.matmul %282, %242, %cst_97 {dimension_numbers = #tpu.dot_dimension_numbers<[1], [0], [0], [1], [0, 0, 1, 1], [], []>} : vector<2x32xf32>, vector<32x128xf32>, vector<2x128xf32> -> vector<2x128xf32>
    %c23 = arith.constant 23 : index
    %c0_98 = arith.constant 0 : index
    %284 = vector.load %arg4[%c23, %c0_98] : memref<38x128xf32, #tpu.memory_space<vmem>>, vector<1x128xf32>
    %285 = vector.broadcast %284 : vector<1x128xf32> to vector<2x128xf32>
    %286 = arith.addf %283, %285 : vector<2x128xf32>
    %cst_99 = arith.constant 5.000000e-01 : f32
    %287 = vector.broadcast %cst_99 : f32 to vector<2x128xf32>
    %288 = arith.mulf %287, %286 : vector<2x128xf32>
    %cst_100 = arith.constant 0.707106769 : f32
    %289 = vector.broadcast %cst_100 : f32 to vector<2x128xf32>
    %290 = arith.mulf %286, %289 : vector<2x128xf32>
    %291 = math.erf %290 : vector<2x128xf32>
    %cst_101 = arith.constant 1.000000e+00 : f32
    %292 = vector.broadcast %cst_101 : f32 to vector<2x128xf32>
    %293 = arith.addf %292, %291 : vector<2x128xf32>
    %294 = arith.mulf %288, %293 : vector<2x128xf32>
    %cst_102 = arith.constant dense<0.000000e+00> : vector<2x256xf32>
    %295 = tpu.matmul %294, %245, %cst_102 {dimension_numbers = #tpu.dot_dimension_numbers<[1], [0], [0], [1], [0, 0, 1, 1], [], []>} : vector<2x128xf32>, vector<128x256xf32>, vector<2x256xf32> -> vector<2x256xf32>
    %296 = vector.extract_strided_slice %295 {offsets = [0, 0], sizes = [2, 32], strides = [1, 1]} : vector<2x256xf32> to vector<2x32xf32>
    %c24 = arith.constant 24 : index
    %c0_103 = arith.constant 0 : index
    %297 = vector.load %arg4[%c24, %c0_103] : memref<38x128xf32, #tpu.memory_space<vmem>>, vector<1x32xf32>
    %298 = vector.broadcast %297 : vector<1x32xf32> to vector<2x32xf32>
    %299 = arith.addf %296, %298 : vector<2x32xf32>
    %300 = vector.extract_strided_slice %295 {offsets = [0, 128], sizes = [2, 32], strides = [1, 1]} : vector<2x256xf32> to vector<2x32xf32>
    %c25 = arith.constant 25 : index
    %c0_104 = arith.constant 0 : index
    %301 = vector.load %arg4[%c25, %c0_104] : memref<38x128xf32, #tpu.memory_space<vmem>>, vector<1x32xf32>
    %302 = vector.broadcast %301 : vector<1x32xf32> to vector<2x32xf32>
    %303 = arith.addf %300, %302 : vector<2x32xf32>
    %c20 = arith.constant 20 : index
    %c0_105 = arith.constant 0 : index
    %304 = vector.load %arg4[%c20, %c0_105] : memref<38x128xf32, #tpu.memory_space<vmem>>, vector<1x32xf32>
    %cst_106 = arith.constant 1.000000e+00 : f32
    %305 = vector.broadcast %cst_106 : f32 to vector<2x32xf32>
    %306 = arith.addf %305, %299 : vector<2x32xf32>
    %307 = vector.broadcast %304 : vector<1x32xf32> to vector<2x32xf32>
    %308 = arith.mulf %307, %306 : vector<2x32xf32>
    %c21 = arith.constant 21 : index
    %c0_107 = arith.constant 0 : index
    %309 = vector.load %arg4[%c21, %c0_107] : memref<38x128xf32, #tpu.memory_space<vmem>>, vector<1x32xf32>
    %310 = vector.broadcast %309 : vector<1x32xf32> to vector<2x32xf32>
    %311 = arith.addf %310, %303 : vector<2x32xf32>
    %cst_108 = arith.constant dense<0.000000e+00> : vector<32x32xf32>
    %312 = tpu.matmul %5, %271, %cst_108 {dimension_numbers = #tpu.dot_dimension_numbers<[1], [0], [0], [1], [0, 0, 1, 1], [], []>} : vector<32x16xf32>, vector<16x32xf32>, vector<32x32xf32> -> vector<32x32xf32>
    %313 = vector.extract_strided_slice %308 {offsets = [0, 0], sizes = [1, 32], strides = [1, 1]} : vector<2x32xf32> to vector<1x32xf32>
    %314 = vector.shape_cast %313 : vector<1x32xf32> to vector<1x32xf32>
    %315 = vector.broadcast %314 : vector<1x32xf32> to vector<8x32xf32>
    %316 = vector.extract_strided_slice %308 {offsets = [1, 0], sizes = [1, 32], strides = [1, 1]} : vector<2x32xf32> to vector<1x32xf32>
    %317 = vector.shape_cast %316 : vector<1x32xf32> to vector<1x32xf32>
    %318 = vector.broadcast %317 : vector<1x32xf32> to vector<8x32xf32>
    %319 = tpu.concatenate %315, %318 in 0 : vector<8x32xf32>, vector<8x32xf32> -> vector<16x32xf32>
    %320 = tpu.concatenate %319, %319 in 0 : vector<16x32xf32>, vector<16x32xf32> -> vector<32x32xf32>
    %321 = vector.extract_strided_slice %311 {offsets = [0, 0], sizes = [1, 32], strides = [1, 1]} : vector<2x32xf32> to vector<1x32xf32>
    %322 = vector.shape_cast %321 : vector<1x32xf32> to vector<1x32xf32>
    %323 = vector.broadcast %322 : vector<1x32xf32> to vector<8x32xf32>
    %324 = vector.extract_strided_slice %311 {offsets = [1, 0], sizes = [1, 32], strides = [1, 1]} : vector<2x32xf32> to vector<1x32xf32>
    %325 = vector.shape_cast %324 : vector<1x32xf32> to vector<1x32xf32>
    %326 = vector.broadcast %325 : vector<1x32xf32> to vector<8x32xf32>
    %327 = tpu.concatenate %323, %326 in 0 : vector<8x32xf32>, vector<8x32xf32> -> vector<16x32xf32>
    %328 = tpu.concatenate %327, %12 in 0 : vector<16x32xf32>, vector<16x32xf32> -> vector<32x32xf32>
    %329 = arith.mulf %312, %320 : vector<32x32xf32>
    %330 = arith.addf %329, %328 : vector<32x32xf32>
    %331 = arith.mulf %330, %330 : vector<32x32xf32>
    %c16_i32_109 = arith.constant 16 : i32
    %332 = tpu.dynamic_rotate %331 by %c16_i32_109 dim 0 : vector<32x32xf32>, i32 -> vector<32x32xf32>
    %333 = arith.addf %331, %332 : vector<32x32xf32>
    %cst_110 = arith.constant 1.000000e-30 : f32
    %334 = vector.broadcast %cst_110 : f32 to vector<32x32xf32>
    %335 = arith.addf %333, %334 : vector<32x32xf32>
    %336 = math.rsqrt %335 : vector<32x32xf32>
    %337 = arith.mulf %333, %336 : vector<32x32xf32>
    %c22 = arith.constant 22 : index
    %c0_111 = arith.constant 0 : index
    %338 = vector.load %arg4[%c22, %c0_111] : memref<38x128xf32, #tpu.memory_space<vmem>>, vector<1x32xf32>
    %339 = vector.broadcast %338 : vector<1x32xf32> to vector<32x32xf32>
    %340 = arith.addf %337, %339 : vector<32x32xf32>
    %cst_112 = arith.constant 0.000000e+00 : f32
    %341 = vector.broadcast %cst_112 : f32 to vector<32x32xf32>
    %342 = arith.maximumf %340, %341 : vector<32x32xf32>
    %cst_113 = arith.constant 0.000000e+00 : f32
    %343 = vector.broadcast %cst_113 : f32 to vector<32x32xf32>
    %344 = arith.cmpf ogt, %333, %343 : vector<32x32xf32>
    %345 = arith.mulf %330, %336 : vector<32x32xf32>
    %346 = arith.select %344, %345, %11 : vector<32x32xi1>, vector<32x32xf32>
    %347 = arith.mulf %342, %346 : vector<32x32xf32>
    %cst_114 = arith.constant dense<0.000000e+00> : vector<16x32xf32>
    %348 = tpu.matmul %6, %347, %cst_114 {dimension_numbers = #tpu.dot_dimension_numbers<[1], [0], [0], [1], [0, 0, 1, 1], [], []>} : vector<16x32xf32>, vector<32x32xf32>, vector<16x32xf32> -> vector<16x32xf32>
    %c30 = arith.constant 30 : index
    %c0_115 = arith.constant 0 : index
    %349 = vector.load %arg4[%c30, %c0_115] : memref<38x128xf32, #tpu.memory_space<vmem>>, vector<1x32xf32>
    %350 = vector.broadcast %349 : vector<1x32xf32> to vector<16x32xf32>
    %351 = arith.mulf %350, %348 : vector<16x32xf32>
    %352 = arith.addf %237, %351 : vector<16x32xf32>
    %c26 = arith.constant 26 : index
    %c0_116 = arith.constant 0 : index
    %353 = vector.load %arg4[%c26, %c0_116] : memref<38x128xf32, #tpu.memory_space<vmem>>, vector<1x32xf32>
    %c27 = arith.constant 27 : index
    %c0_117 = arith.constant 0 : index
    %354 = vector.load %arg4[%c27, %c0_117] : memref<38x128xf32, #tpu.memory_space<vmem>>, vector<1x32xf32>
    %cst_118 = arith.constant dense<0.000000e+00> : vector<16xf32>
    %355 = vector.multi_reduction <add>, %352, %cst_118 [1] : vector<16x32xf32> to vector<16xf32>
    %356 = vector.shape_cast %355 : vector<16xf32> to vector<16x1xf32>
    %cst_119 = arith.constant 3.200000e+01 : f32
    %357 = vector.broadcast %cst_119 : f32 to vector<16x1xf32>
    %358 = arith.divf %356, %357 : vector<16x1xf32>
    %359 = vector.broadcast %358 : vector<16x1xf32> to vector<16x32xf32>
    %360 = arith.subf %352, %359 : vector<16x32xf32>
    %361 = arith.mulf %360, %360 : vector<16x32xf32>
    %cst_120 = arith.constant dense<0.000000e+00> : vector<16xf32>
    %362 = vector.multi_reduction <add>, %361, %cst_120 [1] : vector<16x32xf32> to vector<16xf32>
    %363 = vector.shape_cast %362 : vector<16xf32> to vector<16x1xf32>
    %cst_121 = arith.constant 3.200000e+01 : f32
    %364 = vector.broadcast %cst_121 : f32 to vector<16x1xf32>
    %365 = arith.divf %363, %364 : vector<16x1xf32>
    %366 = vector.broadcast %358 : vector<16x1xf32> to vector<16x32xf32>
    %367 = arith.subf %352, %366 : vector<16x32xf32>
    %cst_122 = arith.constant 9.99999974E-6 : f32
    %368 = vector.broadcast %cst_122 : f32 to vector<16x1xf32>
    %369 = arith.addf %365, %368 : vector<16x1xf32>
    %370 = math.rsqrt %369 : vector<16x1xf32>
    %371 = vector.broadcast %370 : vector<16x1xf32> to vector<16x32xf32>
    %372 = arith.mulf %367, %371 : vector<16x32xf32>
    %373 = vector.broadcast %353 : vector<1x32xf32> to vector<16x32xf32>
    %374 = arith.mulf %372, %373 : vector<16x32xf32>
    %375 = vector.broadcast %354 : vector<1x32xf32> to vector<16x32xf32>
    %376 = arith.addf %374, %375 : vector<16x32xf32>
    %cst_123 = arith.constant dense<0.000000e+00> : vector<16x128xf32>
    %377 = tpu.matmul %376, %243, %cst_123 {dimension_numbers = #tpu.dot_dimension_numbers<[1], [0], [0], [1], [0, 0, 1, 1], [], []>} : vector<16x32xf32>, vector<32x128xf32>, vector<16x128xf32> -> vector<16x128xf32>
    %c28 = arith.constant 28 : index
    %c0_124 = arith.constant 0 : index
    %378 = vector.load %arg4[%c28, %c0_124] : memref<38x128xf32, #tpu.memory_space<vmem>>, vector<1x128xf32>
    %379 = vector.broadcast %378 : vector<1x128xf32> to vector<16x128xf32>
    %380 = arith.addf %377, %379 : vector<16x128xf32>
    %cst_125 = arith.constant 5.000000e-01 : f32
    %381 = vector.broadcast %cst_125 : f32 to vector<16x128xf32>
    %382 = arith.mulf %381, %380 : vector<16x128xf32>
    %cst_126 = arith.constant 0.707106769 : f32
    %383 = vector.broadcast %cst_126 : f32 to vector<16x128xf32>
    %384 = arith.mulf %380, %383 : vector<16x128xf32>
    %385 = math.erf %384 : vector<16x128xf32>
    %cst_127 = arith.constant 1.000000e+00 : f32
    %386 = vector.broadcast %cst_127 : f32 to vector<16x128xf32>
    %387 = arith.addf %386, %385 : vector<16x128xf32>
    %388 = arith.mulf %382, %387 : vector<16x128xf32>
    %cst_128 = arith.constant dense<0.000000e+00> : vector<16x128xf32>
    %389 = tpu.matmul %388, %246, %cst_128 {dimension_numbers = #tpu.dot_dimension_numbers<[1], [0], [0], [1], [0, 0, 1, 1], [], []>} : vector<16x128xf32>, vector<128x128xf32>, vector<16x128xf32> -> vector<16x128xf32>
    %c29 = arith.constant 29 : index
    %c0_129 = arith.constant 0 : index
    %390 = vector.load %arg4[%c29, %c0_129] : memref<38x128xf32, #tpu.memory_space<vmem>>, vector<1x128xf32>
    %391 = vector.broadcast %390 : vector<1x128xf32> to vector<16x128xf32>
    %392 = arith.addf %389, %391 : vector<16x128xf32>
    %393 = vector.extract_strided_slice %392 {offsets = [0, 0], sizes = [16, 32], strides = [1, 1]} : vector<16x128xf32> to vector<16x32xf32>
    %c31 = arith.constant 31 : index
    %c0_130 = arith.constant 0 : index
    %394 = vector.load %arg4[%c31, %c0_130] : memref<38x128xf32, #tpu.memory_space<vmem>>, vector<1x32xf32>
    %395 = vector.broadcast %394 : vector<1x32xf32> to vector<16x32xf32>
    %396 = arith.mulf %395, %393 : vector<16x32xf32>
    %397 = arith.addf %352, %396 : vector<16x32xf32>
    %c32 = arith.constant 32 : index
    %c0_131 = arith.constant 0 : index
    %398 = vector.load %arg4[%c32, %c0_131] : memref<38x128xf32, #tpu.memory_space<vmem>>, vector<1x32xf32>
    %c33 = arith.constant 33 : index
    %c0_132 = arith.constant 0 : index
    %399 = vector.load %arg4[%c33, %c0_132] : memref<38x128xf32, #tpu.memory_space<vmem>>, vector<1x32xf32>
    %cst_133 = arith.constant dense<0.000000e+00> : vector<16xf32>
    %400 = vector.multi_reduction <add>, %397, %cst_133 [1] : vector<16x32xf32> to vector<16xf32>
    %401 = vector.shape_cast %400 : vector<16xf32> to vector<16x1xf32>
    %cst_134 = arith.constant 3.200000e+01 : f32
    %402 = vector.broadcast %cst_134 : f32 to vector<16x1xf32>
    %403 = arith.divf %401, %402 : vector<16x1xf32>
    %404 = vector.broadcast %403 : vector<16x1xf32> to vector<16x32xf32>
    %405 = arith.subf %397, %404 : vector<16x32xf32>
    %406 = arith.mulf %405, %405 : vector<16x32xf32>
    %cst_135 = arith.constant dense<0.000000e+00> : vector<16xf32>
    %407 = vector.multi_reduction <add>, %406, %cst_135 [1] : vector<16x32xf32> to vector<16xf32>
    %408 = vector.shape_cast %407 : vector<16xf32> to vector<16x1xf32>
    %cst_136 = arith.constant 3.200000e+01 : f32
    %409 = vector.broadcast %cst_136 : f32 to vector<16x1xf32>
    %410 = arith.divf %408, %409 : vector<16x1xf32>
    %411 = vector.broadcast %403 : vector<16x1xf32> to vector<16x32xf32>
    %412 = arith.subf %397, %411 : vector<16x32xf32>
    %cst_137 = arith.constant 9.99999974E-6 : f32
    %413 = vector.broadcast %cst_137 : f32 to vector<16x1xf32>
    %414 = arith.addf %410, %413 : vector<16x1xf32>
    %415 = math.rsqrt %414 : vector<16x1xf32>
    %416 = vector.broadcast %415 : vector<16x1xf32> to vector<16x32xf32>
    %417 = arith.mulf %412, %416 : vector<16x32xf32>
    %418 = vector.broadcast %398 : vector<1x32xf32> to vector<16x32xf32>
    %419 = arith.mulf %417, %418 : vector<16x32xf32>
    %420 = vector.broadcast %399 : vector<1x32xf32> to vector<16x32xf32>
    %421 = arith.addf %419, %420 : vector<16x32xf32>
    %422 = vector.extract_strided_slice %421 {offsets = [0, 0], sizes = [8, 32], strides = [1, 1]} : vector<16x32xf32> to vector<8x32xf32>
    %cst_138 = arith.constant dense<0.000000e+00> : vector<32xf32>
    %423 = vector.multi_reduction <add>, %422, %cst_138 [0] : vector<8x32xf32> to vector<32xf32>
    %424 = vector.shape_cast %423 : vector<32xf32> to vector<1x32xf32>
    %cst_139 = arith.constant 8.000000e+00 : f32
    %425 = vector.broadcast %cst_139 : f32 to vector<1x32xf32>
    %426 = arith.divf %424, %425 : vector<1x32xf32>
    %427 = vector.extract_strided_slice %421 {offsets = [8, 0], sizes = [8, 32], strides = [1, 1]} : vector<16x32xf32> to vector<8x32xf32>
    %cst_140 = arith.constant dense<0.000000e+00> : vector<32xf32>
    %428 = vector.multi_reduction <add>, %427, %cst_140 [0] : vector<8x32xf32> to vector<32xf32>
    %429 = vector.shape_cast %428 : vector<32xf32> to vector<1x32xf32>
    %cst_141 = arith.constant 8.000000e+00 : f32
    %430 = vector.broadcast %cst_141 : f32 to vector<1x32xf32>
    %431 = arith.divf %429, %430 : vector<1x32xf32>
    %432 = tpu.concatenate %426, %431 in 0 : vector<1x32xf32>, vector<1x32xf32> -> vector<2x32xf32>
    %cst_142 = arith.constant dense<0.000000e+00> : vector<2x128xf32>
    %433 = tpu.matmul %432, %244, %cst_142 {dimension_numbers = #tpu.dot_dimension_numbers<[1], [0], [0], [1], [0, 0, 1, 1], [], []>} : vector<2x32xf32>, vector<32x128xf32>, vector<2x128xf32> -> vector<2x128xf32>
    %c34 = arith.constant 34 : index
    %c0_143 = arith.constant 0 : index
    %434 = vector.load %arg4[%c34, %c0_143] : memref<38x128xf32, #tpu.memory_space<vmem>>, vector<1x128xf32>
    %435 = vector.broadcast %434 : vector<1x128xf32> to vector<2x128xf32>
    %436 = arith.addf %433, %435 : vector<2x128xf32>
    %cst_144 = arith.constant 5.000000e-01 : f32
    %437 = vector.broadcast %cst_144 : f32 to vector<2x128xf32>
    %438 = arith.mulf %437, %436 : vector<2x128xf32>
    %cst_145 = arith.constant 0.707106769 : f32
    %439 = vector.broadcast %cst_145 : f32 to vector<2x128xf32>
    %440 = arith.mulf %436, %439 : vector<2x128xf32>
    %441 = math.erf %440 : vector<2x128xf32>
    %cst_146 = arith.constant 1.000000e+00 : f32
    %442 = vector.broadcast %cst_146 : f32 to vector<2x128xf32>
    %443 = arith.addf %442, %441 : vector<2x128xf32>
    %444 = arith.mulf %438, %443 : vector<2x128xf32>
    %cst_147 = arith.constant dense<0.000000e+00> : vector<2x128xf32>
    %445 = tpu.matmul %444, %247, %cst_147 {dimension_numbers = #tpu.dot_dimension_numbers<[1], [0], [0], [1], [0, 0, 1, 1], [], []>} : vector<2x128xf32>, vector<128x128xf32>, vector<2x128xf32> -> vector<2x128xf32>
    %c35 = arith.constant 35 : index
    %c0_148 = arith.constant 0 : index
    %446 = vector.load %arg4[%c35, %c0_148] : memref<38x128xf32, #tpu.memory_space<vmem>>, vector<1x128xf32>
    %447 = vector.broadcast %446 : vector<1x128xf32> to vector<2x128xf32>
    %448 = arith.addf %445, %447 : vector<2x128xf32>
    %449 = vector.extract_strided_slice %448 {offsets = [0, 0], sizes = [2, 32], strides = [1, 1]} : vector<2x128xf32> to vector<2x32xf32>
    %450 = arith.negf %449 : vector<2x32xf32>
    %451 = math.exp %450 : vector<2x32xf32>
    %cst_149 = arith.constant 1.000000e+00 : f32
    %452 = vector.broadcast %cst_149 : f32 to vector<2x32xf32>
    %453 = arith.addf %452, %451 : vector<2x32xf32>
    %454 = arith.divf %452, %453 : vector<2x32xf32>
    %455 = vector.extract_strided_slice %454 {offsets = [0, 0], sizes = [1, 32], strides = [1, 1]} : vector<2x32xf32> to vector<1x32xf32>
    %456 = vector.shape_cast %455 : vector<1x32xf32> to vector<1x32xf32>
    %457 = vector.broadcast %456 : vector<1x32xf32> to vector<8x32xf32>
    %458 = vector.extract_strided_slice %454 {offsets = [1, 0], sizes = [1, 32], strides = [1, 1]} : vector<2x32xf32> to vector<1x32xf32>
    %459 = vector.shape_cast %458 : vector<1x32xf32> to vector<1x32xf32>
    %460 = vector.broadcast %459 : vector<1x32xf32> to vector<8x32xf32>
    %461 = tpu.concatenate %457, %460 in 0 : vector<8x32xf32>, vector<8x32xf32> -> vector<16x32xf32>
    %462 = arith.mulf %397, %461 : vector<16x32xf32>
    %c36 = arith.constant 36 : index
    %c0_150 = arith.constant 0 : index
    %463 = vector.load %arg4[%c36, %c0_150] : memref<38x128xf32, #tpu.memory_space<vmem>>, vector<1x32xf32>
    %c37 = arith.constant 37 : index
    %c0_151 = arith.constant 0 : index
    %464 = vector.load %arg4[%c37, %c0_151] : memref<38x128xf32, #tpu.memory_space<vmem>>, vector<1x32xf32>
    %cst_152 = arith.constant dense<0.000000e+00> : vector<16xf32>
    %465 = vector.multi_reduction <add>, %462, %cst_152 [1] : vector<16x32xf32> to vector<16xf32>
    %466 = vector.shape_cast %465 : vector<16xf32> to vector<16x1xf32>
    %cst_153 = arith.constant 3.200000e+01 : f32
    %467 = vector.broadcast %cst_153 : f32 to vector<16x1xf32>
    %468 = arith.divf %466, %467 : vector<16x1xf32>
    %469 = vector.broadcast %468 : vector<16x1xf32> to vector<16x32xf32>
    %470 = arith.subf %462, %469 : vector<16x32xf32>
    %471 = arith.mulf %470, %470 : vector<16x32xf32>
    %cst_154 = arith.constant dense<0.000000e+00> : vector<16xf32>
    %472 = vector.multi_reduction <add>, %471, %cst_154 [1] : vector<16x32xf32> to vector<16xf32>
    %473 = vector.shape_cast %472 : vector<16xf32> to vector<16x1xf32>
    %cst_155 = arith.constant 3.200000e+01 : f32
    %474 = vector.broadcast %cst_155 : f32 to vector<16x1xf32>
    %475 = arith.divf %473, %474 : vector<16x1xf32>
    %476 = vector.broadcast %468 : vector<16x1xf32> to vector<16x32xf32>
    %477 = arith.subf %462, %476 : vector<16x32xf32>
    %cst_156 = arith.constant 9.99999974E-6 : f32
    %478 = vector.broadcast %cst_156 : f32 to vector<16x1xf32>
    %479 = arith.addf %475, %478 : vector<16x1xf32>
    %480 = math.rsqrt %479 : vector<16x1xf32>
    %481 = vector.broadcast %480 : vector<16x1xf32> to vector<16x32xf32>
    %482 = arith.mulf %477, %481 : vector<16x32xf32>
    %483 = vector.broadcast %463 : vector<1x32xf32> to vector<16x32xf32>
    %484 = arith.mulf %482, %483 : vector<16x32xf32>
    %485 = vector.broadcast %464 : vector<1x32xf32> to vector<16x32xf32>
    %486 = arith.addf %484, %485 : vector<16x32xf32>
    %487 = vector.extract_strided_slice %486 {offsets = [0, 0], sizes = [8, 32], strides = [1, 1]} : vector<16x32xf32> to vector<8x32xf32>
    %c0_157 = arith.constant 0 : index
    %c0_158 = arith.constant 0 : index
    %c0_159 = arith.constant 0 : index
    %488 = vector.load %arg7[%c0_157, %c0_158, %c0_159] : memref<2x8x32xf32, #tpu.memory_space<vmem>>, vector<1x8x32xf32>
    %489 = vector.shape_cast %488 : vector<1x8x32xf32> to vector<8x32xf32>
    %490 = vector.shape_cast %487 : vector<8x32xf32> to vector<1x8x32xf32>
    tpu.vector_store %arg7[%c0_157, %c0_158, %c0_159], %490 {strides = array<i32>} : memref<2x8x32xf32, #tpu.memory_space<vmem>>, vector<1x8x32xf32>,
    %491 = vector.extract_strided_slice %486 {offsets = [8, 0], sizes = [8, 32], strides = [1, 1]} : vector<16x32xf32> to vector<8x32xf32>
    %c1_160 = arith.constant 1 : index
    %c0_161 = arith.constant 0 : index
    %c0_162 = arith.constant 0 : index
    %492 = vector.load %arg7[%c1_160, %c0_161, %c0_162] : memref<2x8x32xf32, #tpu.memory_space<vmem>>, vector<1x8x32xf32>
    %493 = vector.shape_cast %492 : vector<1x8x32xf32> to vector<8x32xf32>
    %494 = vector.shape_cast %491 : vector<8x32xf32> to vector<1x8x32xf32>
    tpu.vector_store %arg7[%c1_160, %c0_161, %c0_162], %494 {strides = array<i32>} : memref<2x8x32xf32, #tpu.memory_space<vmem>>, vector<1x8x32xf32>,
    return
  }
  func.func @transform_0(%arg0: i32) -> (i32, i32, i32) {
    %c0_i32 = arith.constant 0 : i32
    %c0_i32_0 = arith.constant 0 : i32
    %c0_i32_1 = arith.constant 0 : i32
    return %arg0, %c0_i32, %c0_i32_0 : i32, i32, i32
  }
  func.func @transform_1(%arg0: i32) -> (i32, i32) {
    %c0_i32 = arith.constant 0 : i32
    %c0_i32_0 = arith.constant 0 : i32
    %c0_i32_1 = arith.constant 0 : i32
    return %c0_i32, %c0_i32_0 : i32, i32
  }
  func.func @transform_2(%arg0: i32) -> (i32, i32) {
    %c0_i32 = arith.constant 0 : i32
    %c0_i32_0 = arith.constant 0 : i32
    %c0_i32_1 = arith.constant 0 : i32
    return %c0_i32, %c0_i32_0 : i32, i32
  }
  func.func @transform_3(%arg0: i32) -> (i32, i32) {
    %c0_i32 = arith.constant 0 : i32
    %c0_i32_0 = arith.constant 0 : i32
    %c0_i32_1 = arith.constant 0 : i32
    return %c0_i32, %c0_i32_0 : i32, i32
  }
  func.func @transform_4(%arg0: i32) -> (i32, i32, i32) {
    %c0_i32 = arith.constant 0 : i32
    %c0_i32_0 = arith.constant 0 : i32
    %c0_i32_1 = arith.constant 0 : i32
    %c0_i32_2 = arith.constant 0 : i32
    return %c0_i32, %c0_i32_0, %c0_i32_1 : i32, i32, i32
  }
  func.func @transform_5(%arg0: i32) -> (i32, i32, i32) {
    %c0_i32 = arith.constant 0 : i32
    %c0_i32_0 = arith.constant 0 : i32
    %c0_i32_1 = arith.constant 0 : i32
    %c0_i32_2 = arith.constant 0 : i32
    return %c0_i32, %c0_i32_0, %c0_i32_1 : i32, i32, i32
  }
  func.func @transform_6(%arg0: i32) -> (i32, i32, i32) {
    %c0_i32 = arith.constant 0 : i32
    %c0_i32_0 = arith.constant 0 : i32
    %c0_i32_1 = arith.constant 0 : i32
    return %arg0, %c0_i32, %c0_i32_0 : i32, i32, i32
  }
}

</mosaic_0001>

<llo_original>
// kernel: _lambda_.1
$region0: #{_lambda_.1}
  #allocation0 [shape = 'u32[]', space=smem, size = 0x4, offset = 0x4, fixed_abs, tag = 'smem constant byte address 0x4 - core index']
  #allocation1 [shape = 'u32[144,128]{1,0:T(1,128)}', space=vmem, size = 0x12000, scoped, tag = 'internal scratch']
  %s0 = inlined_call_operand.vmem [shape: f32[2,8,32], index: 0, kind: input, shape index: {}]
  %s1 = inlined_call_operand.vmem [shape: f32[32,16], index: 1, kind: input, shape index: {}]
  %s2 = inlined_call_operand.hbm [shape: f32[16,32], index: 2, kind: input, shape index: {}]
  %s3 = inlined_call_operand.vmem [shape: f32[38,128], index: 3, kind: input, shape index: {}]
  %s4 = inlined_call_operand.hbm [shape: f32[2,32,384], index: 4, kind: input, shape index: {}]
  %s5 = inlined_call_operand.hbm [shape: f32[2,128,512], index: 5, kind: input, shape index: {}]
  %s6 = inlined_call_operand.hbm [shape: f32[2,8,32], index: 6, kind: output, shape index: {}]
  %s7 = sld [smem:[#allocation0]]
  $region46: #{_lambda_.1} parent=0
    _
  %s9 = ssub.s32 1, %s7
  %s10 = scalar_select 0, %s9, %s7
  $region1: #{_lambda_.1} parent=0
    #allocation2 [shape = 'u8[8192]{0}', space=vmem, size = 0x2000, scoped, tag = 'input window, operand 2, single buffered']
    #allocation3 [shape = 's32[1]{0}', space=sflag, size = 0x4, scoped, tag = 'scoped memory for _lambda_.1']
    #allocation4 [shape = 's32[1]{0}', space=sflag, size = 0x4, scoped, tag = 'scoped memory for _lambda_.1']
    #allocation5 [shape = 'u8[98304]{0}', space=vmem, size = 0x18000, scoped, tag = 'input window, operand 4, single buffered']
    #allocation6 [shape = 's32[1]{0}', space=sflag, size = 0x4, scoped, tag = 'scoped memory for _lambda_.1']
    #allocation7 [shape = 'u8[524288]{0}', space=vmem, size = 0x80000, scoped, tag = 'input window, operand 5, single buffered']
    #allocation8 [shape = 'u8[8192]{0}', space=vmem, size = 0x2000, scoped, tag = 'output window, operand 0, single buffered']
    %11 = vsyncpa [#allocation3], 0
    %12 = vsyncpa [#allocation6], 0
    %13 = vsyncpa [#allocation4], 0
    // Predicated region
    $region2: #{_lambda_.1} parent=1 // pred_check
      _
    $region3: #{_lambda_.1} parent=1 // pred_check_branch
      %15 = sbr.rel (0) target = $region5
    $region4: #{_lambda_.1} parent=1 // pred_region
      _
    $region5: #{_lambda_.1} parent=1 // pred_fallthru
      _
    // Predicated region
    $region6: #{_lambda_.1} parent=1 // pred_check
      _
    $region7: #{_lambda_.1} parent=1 // pred_check_branch
      %17 = sbr.rel (0) target = $region9
    $region8: #{_lambda_.1} parent=1 // pred_region
      _
    $region9: #{_lambda_.1} parent=1 // pred_fallthru
      _
    // Predicated region
    $region10: #{_lambda_.1} parent=1 // pred_check
      _
    $region11: #{_lambda_.1} parent=1 // pred_check_branch
      %19 = sbr.rel (0) target = $region13
    $region12: #{_lambda_.1} parent=1 // pred_region
      %s21 = ssub.s32 256, 256
      %22 = vsyncadd [#allocation3], %s21
      %s23 = sshll.u32 [#allocation2], 4
      %s24 = int_to_ptr.vmem [resolvable:$true] %s23
      %29 = dma.hbm_to_vmem [thread:$0]  %s2, 256, %s24, [#allocation3], 128, 128, 8
    $region13: #{_lambda_.1} parent=1 // pred_fallthru
      _
    // Predicated region
    $region14: #{_lambda_.1} parent=1 // pred_check
      _
    $region15: #{_lambda_.1} parent=1 // pred_check_branch
      %31 = sbr.rel (0) target = $region17
    $region16: #{_lambda_.1} parent=1 // pred_region
      _
    $region17: #{_lambda_.1} parent=1 // pred_fallthru
      _
    // Predicated region
    $region18: #{_lambda_.1} parent=1 // pred_check
      _
    $region19: #{_lambda_.1} parent=1 // pred_check_branch
      %33 = sbr.rel (0) target = $region21
    $region20: #{_lambda_.1} parent=1 // pred_region
      %s35 = ssub.s32 3072, 3072
      %36 = vsyncadd [#allocation6], %s35
      %s37 = sshll.u32 [#allocation5], 4
      %s38 = int_to_ptr.vmem [resolvable:$true] %s37
      %43 = dma.hbm_to_vmem [thread:$0]  %s4, 3072, %s38, [#allocation6], 384, 384, 24
    $region21: #{_lambda_.1} parent=1 // pred_fallthru
      _
    // Predicated region
    $region22: #{_lambda_.1} parent=1 // pred_check
      _
    $region23: #{_lambda_.1} parent=1 // pred_check_branch
      %45 = sbr.rel (0) target = $region25
    $region24: #{_lambda_.1} parent=1 // pred_region
      %s47 = ssub.s32 16384, 16384
      %48 = vsyncadd [#allocation6], %s47
      %s49 = sshll.u32 [#allocation7], 4
      %s50 = int_to_ptr.vmem [resolvable:$true] %s49
      %55 = dma.hbm_to_vmem [thread:$0]  %s5, 16384, %s50, [#allocation6], 512, 512, 32
    $region25: #{_lambda_.1} parent=1 // pred_fallthru
      _
    // Predicated region
    $region26: #{_lambda_.1} parent=1 // pred_check
      _
    $region27: #{_lambda_.1} parent=1 // pred_check_branch
      %57 = sbr.rel (0) target = $region29
    $region28: #{_lambda_.1} parent=1 // pred_region
      %58 = dma.done [#allocation3], 256
    $region29: #{_lambda_.1} parent=1 // pred_fallthru
      _
    // Predicated region
    $region30: #{_lambda_.1} parent=1 // pred_check
      _
    $region31: #{_lambda_.1} parent=1 // pred_check_branch
      %60 = sbr.rel (0) target = $region33
    $region32: #{_lambda_.1} parent=1 // pred_region
      %61 = dma.done [#allocation6], 3072
    $region33: #{_lambda_.1} parent=1 // pred_fallthru
      _
    // Predicated region
    $region34: #{_lambda_.1} parent=1 // pred_check
      _
    $region35: #{_lambda_.1} parent=1 // pred_check_branch
      %63 = sbr.rel (0) target = $region37
    $region36: #{_lambda_.1} parent=1 // pred_region
      %64 = dma.done [#allocation6], 16384
    $region37: #{_lambda_.1} parent=1 // pred_fallthru
      _
    %v65 = vld [vmem:[%s0] sm:$0xff]
    %s66 = scalar_lea.vmem %s0, 8
    %v67 = vld [vmem:[%s66] sm:$0xff]
    %v68 = vld [vmem:[%s1] sm:$0xff]
    %v69 = vld [vmem:[%s1 + $0x8] sm:$0xff]
    %v70 = vld [vmem:[%s1 + $0x10] sm:$0xff]
    %v71 = vld [vmem:[%s1 + $0x18] sm:$0xff]
    %v72 = vld [vmem:[#allocation2] sm:$0xff]
    %v73 = vld [vmem:[#allocation2 + $0x8] sm:$0xff]
    %v74 = vlaneseq
    %v75 = vshrl.u32 %v74, 7
    %v76 = vadd.s32 %v75, 8
    %v77 = vadd.s32 %v75, 16
    %v78 = vadd.s32 %v75, 24
    %vm79 = vcmp.lt.s32.totalorder %v75, 16
    %vm80 = vcmp.lt.s32.totalorder %v76, 16
    %vm81 = vcmp.lt.s32.totalorder %v77, 16
    %vm82 = vcmp.lt.s32.totalorder %v78, 16
    %v83 = vsel %vm79, 1, 0
    %v84 = vsel %vm80, 1, 0
    %v85 = vsel %vm81, 1, 0
    %v86 = vsel %vm82, 1, 0
    %v87 = vcvt.s32.f32 %v83
    %v88 = vcvt.s32.f32 %v84
    %v89 = vcvt.s32.f32 %v85
    %v90 = vcvt.s32.f32 %v86
    %v91 = vld [vmem:[#allocation5] sm:$0xff]
    %v92 = vld [vmem:[#allocation5 + $0x8] sm:$0xff]
    %v93 = vld [vmem:[#allocation5 + $0x10] sm:$0xff]
    %v94 = vld [vmem:[#allocation5 + $0x18] sm:$0xff]
    %v95 = vld [vmem:[#allocation5 + $0x20] sm:$0xff]
    %v96 = vld [vmem:[#allocation5 + $0x28] sm:$0xff]
    %v97 = vld [vmem:[#allocation5 + $0x30] sm:$0xff]
    %v98 = vld [vmem:[#allocation5 + $0x38] sm:$0xff]
    %v99 = vld [vmem:[#allocation5 + $0x40] sm:$0xff]
    %v100 = vld [vmem:[#allocation5 + $0x48] sm:$0xff]
    %v101 = vld [vmem:[#allocation5 + $0x50] sm:$0xff]
    %v102 = vld [vmem:[#allocation5 + $0x58] sm:$0xff]
    %v103 = vld [vmem:[#allocation7] sm:$0xff]
    %v104 = vld [vmem:[#allocation7 + $0x8] sm:$0xff]
    %v105 = vld [vmem:[#allocation7 + $0x10] sm:$0xff]
    %v106 = vld [vmem:[#allocation7 + $0x18] sm:$0xff]
    %v107 = vld [vmem:[#allocation7 + $0x20] sm:$0xff]
    %v108 = vld [vmem:[#allocation7 + $0x28] sm:$0xff]
    %v109 = vld [vmem:[#allocation7 + $0x30] sm:$0xff]
    %v110 = vld [vmem:[#allocation7 + $0x38] sm:$0xff]
    %v111 = vld [vmem:[#allocation7 + $0x40] sm:$0xff]
    %v112 = vld [vmem:[#allocation7 + $0x48] sm:$0xff]
    %v113 = vld [vmem:[#allocation7 + $0x50] sm:$0xff]
    %v114 = vld [vmem:[#allocation7 + $0x58] sm:$0xff]
    %v115 = vld [vmem:[#allocation7 + $0x60] sm:$0xff]
    %v116 = vld [vmem:[#allocation7 + $0x68] sm:$0xff]
    %v117 = vld [vmem:[#allocation7 + $0x70] sm:$0xff]
    %v118 = vld [vmem:[#allocation7 + $0x78] sm:$0xff]
    %v119 = vld [vmem:[#allocation7 + $0x80] sm:$0xff]
    %v120 = vld [vmem:[#allocation7 + $0x88] sm:$0xff]
    %v121 = vld [vmem:[#allocation7 + $0x90] sm:$0xff]
    %v122 = vld [vmem:[#allocation7 + $0x98] sm:$0xff]
    %v123 = vld [vmem:[#allocation7 + $0xa0] sm:$0xff]
    %v124 = vld [vmem:[#allocation7 + $0xa8] sm:$0xff]
    %v125 = vld [vmem:[#allocation7 + $0xb0] sm:$0xff]
    %v126 = vld [vmem:[#allocation7 + $0xb8] sm:$0xff]
    %v127 = vld [vmem:[#allocation7 + $0xc0] sm:$0xff]
    %v128 = vld [vmem:[#allocation7 + $0xc8] sm:$0xff]
    %v129 = vld [vmem:[#allocation7 + $0xd0] sm:$0xff]
    %v130 = vld [vmem:[#allocation7 + $0xd8] sm:$0xff]
    %v131 = vld [vmem:[#allocation7 + $0xe0] sm:$0xff]
    %v132 = vld [vmem:[#allocation7 + $0xe8] sm:$0xff]
    %v133 = vld [vmem:[#allocation7 + $0xf0] sm:$0xff]
    %v134 = vld [vmem:[#allocation7 + $0xf8] sm:$0xff]
    %v135 = vld [vmem:[#allocation7 + $0x100] sm:$0xff]
    %v136 = vld [vmem:[#allocation7 + $0x108] sm:$0xff]
    %v137 = vld [vmem:[#allocation7 + $0x110] sm:$0xff]
    %v138 = vld [vmem:[#allocation7 + $0x118] sm:$0xff]
    %v139 = vld [vmem:[#allocation7 + $0x120] sm:$0xff]
    %v140 = vld [vmem:[#allocation7 + $0x128] sm:$0xff]
    %v141 = vld [vmem:[#allocation7 + $0x130] sm:$0xff]
    %v142 = vld [vmem:[#allocation7 + $0x138] sm:$0xff]
    %v143 = vld [vmem:[#allocation7 + $0x140] sm:$0xff]
    %v144 = vld [vmem:[#allocation7 + $0x148] sm:$0xff]
    %v145 = vld [vmem:[#allocation7 + $0x150] sm:$0xff]
    %v146 = vld [vmem:[#allocation7 + $0x158] sm:$0xff]
    %v147 = vld [vmem:[#allocation7 + $0x160] sm:$0xff]
    %v148 = vld [vmem:[#allocation7 + $0x168] sm:$0xff]
    %v149 = vld [vmem:[#allocation7 + $0x170] sm:$0xff]
    %v150 = vld [vmem:[#allocation7 + $0x178] sm:$0xff]
    %v151 = vld [vmem:[#allocation7 + $0x180] sm:$0xff]
    %v152 = vld [vmem:[#allocation7 + $0x188] sm:$0xff]
    %v153 = vld [vmem:[#allocation7 + $0x190] sm:$0xff]
    %v154 = vld [vmem:[#allocation7 + $0x198] sm:$0xff]
    %v155 = vld [vmem:[#allocation7 + $0x1a0] sm:$0xff]
    %v156 = vld [vmem:[#allocation7 + $0x1a8] sm:$0xff]
    %v157 = vld [vmem:[#allocation7 + $0x1b0] sm:$0xff]
    %v158 = vld [vmem:[#allocation7 + $0x1b8] sm:$0xff]
    %v159 = vld [vmem:[#allocation7 + $0x1c0] sm:$0xff]
    %v160 = vld [vmem:[#allocation7 + $0x1c8] sm:$0xff]
    %v161 = vld [vmem:[#allocation7 + $0x1d0] sm:$0xff]
    %v162 = vld [vmem:[#allocation7 + $0x1d8] sm:$0xff]
    %v163 = vld [vmem:[#allocation7 + $0x1e0] sm:$0xff]
    %v164 = vld [vmem:[#allocation7 + $0x1e8] sm:$0xff]
    %v165 = vld [vmem:[#allocation7 + $0x1f0] sm:$0xff]
    %v166 = vld [vmem:[#allocation7 + $0x1f8] sm:$0xff]
    %v167 = vld [vmem:[%s3] sm:$0x1]
    %v168 = vld [vmem:[%s3 + $0x1] sm:$0x1]
    %vm169 = vcmask 261120
    %v170 = vsel %vm169, %v65, 0.0
    %171 = vadd.xlane.f32.xlu0 %v170
    %v172 = vpop.xlane.xlu0 %171
    %v173 = vsel %vm169, %v67, 0.0
    %174 = vadd.xlane.f32.xlu0 %v173
    %v175 = vpop.xlane.xlu0 %174
    %v176 = vrcp.pop 32.0
    %v177 = vmul.f32 %v172, %v176
    %v178 = vmul.f32 %v175, %v176
    %v179 = vsub.f32 %v65, %v177
    %v180 = vsub.f32 %v67, %v178
    %v181 = vmul.f32 %v179, %v179
    %v182 = vmul.f32 %v180, %v180
    %v183 = vsel %vm169, %v181, 0.0
    %184 = vadd.xlane.f32.xlu0 %v183
    %v185 = vpop.xlane.xlu0 %184
    %v186 = vsel %vm169, %v182, 0.0
    %187 = vadd.xlane.f32.xlu0 %v186
    %v188 = vpop.xlane.xlu0 %187
    %v189 = vmul.f32 %v185, %v176
    %v190 = vmul.f32 %v188, %v176
    %v191 = vadd.f32 %v189, 1e-05
    %v192 = vadd.f32 %v190, 1e-05
    %v193 = vrsqrt.pop %v191
    %v194 = vrsqrt.pop %v192
    %v195 = vmul.f32 %v179, %v193
    %v196 = vmul.f32 %v180, %v194
    %v197 = vlaneseq
    %v198 = vshrl.u32 %v197, 7
    %v199 = vsub.s32 0, %v198
    %v200 = vrot.slane %v167, %v199
    %v201 = vmul.f32 %v195, %v200
    %v202 = vmul.f32 %v196, %v200
    %v203 = vlaneseq
    %v204 = vshrl.u32 %v203, 7
    %v205 = vsub.s32 0, %v204
    %v206 = vrot.slane %v168, %v205
    %v207 = vadd.f32 %v201, %v206
    %v208 = vadd.f32 %v202, %v206
    %v209 = vsel %vm169, %v207, 0.0
    %v210 = vrot.slane %v209, 4
    %v211 = vadd.f32 %v209, %v210
    %v212 = vrot.slane %v211, 2
    %v213 = vadd.f32 %v211, %v212
    %v214 = vrot.slane %v213, 1
    %v215 = vadd.f32 %v213, %v214
    %v216 = vrcp.pop 8.0
    %v217 = vmul.f32 %v215, %v216
    %v218 = vsel %vm169, %v208, 0.0
    %v219 = vrot.slane %v218, 4
    %v220 = vadd.f32 %v218, %v219
    %v221 = vrot.slane %v220, 2
    %v222 = vadd.f32 %v220, %v221
    %v223 = vrot.slane %v222, 1
    %v224 = vadd.f32 %v222, %v223
    %v225 = vmul.f32 %v224, %v216
    %vm226 = vcmask 1040384
    %v227 = vsel %vm226, %v217, %v225
    %v228 = vld [vmem:[%s3 + $0x5] sm:$0x1]
    %v229 = vlaneseq
    %v230 = vshrl.u32 %v229, 7
    %v231 = vsub.s32 0, %v230
    %v232 = vrot.slane %v228, %v231
    %v234 = vsel %vm169, %v227, 0
    %236 = vmatprep.subr.mxu0 0.0
    %237 = vmatpush1.msra.mxu0 %v91
    %238 = vmatprep.subr.mxu0 0.0
    %239 = vmatpush1.msra.mxu0 %v94
    %240 = vmatprep.subr.mxu0 0.0
    %241 = vmatpush1.msra.mxu0 %v97
    %242 = vmatprep.subr.mxu0 0.0
    %243 = vmatpush1.msra.mxu0 %v100
    %244 = vmatprep.subr.mxu0 0.0
    %245 = vmatpush1.msra.mxu0 0.0
    %246 = vmatprep.subr.mxu0 0.0
    %247 = vmatpush1.msra.mxu0 0.0
    %248 = vmatprep.subr.mxu0 0.0
    %249 = vmatpush1.msra.mxu0 0.0
    %250 = vmatprep.subr.mxu0 0.0
    %251 = vmatpush1.msra.mxu0 0.0
    %252 = vmatprep.subr.mxu0 0.0
    %253 = vmatpush1.msra.mxu0 0.0
    %254 = vmatprep.subr.mxu0 0.0
    %255 = vmatpush1.msra.mxu0 0.0
    %256 = vmatprep.subr.mxu0 0.0
    %257 = vmatpush1.msra.mxu0 0.0
    %258 = vmatprep.subr.mxu0 0.0
    %259 = vmatpush1.msra.mxu0 0.0
    %260 = vmatprep.subr.mxu0 0.0
    %261 = vmatpush1.msra.mxu0 0.0
    %262 = vmatprep.subr.mxu0 0.0
    %263 = vmatpush1.msra.mxu0 0.0
    %264 = vmatprep.subr.mxu0 0.0
    %265 = vmatpush1.msra.mxu0 0.0
    %266 = vmatprep.subr.mxu0 0.0
    %267 = vmatpush1.msra.mxu0 0.0
    %268 = vmatprep.subr.mxu0 0.0
    %269 = vmatpush1.msra.mxu0 0.0
    %270 = vmatprep.subr.mxu0 0.0
    %271 = vmatpush1.msra.mxu0 0.0
    %272 = vmatprep.subr.mxu0 0.0
    %273 = vmatpush1.msra.mxu0 0.0
    %274 = vmatprep.subr.mxu0 0.0
    %275 = vmatpush1.msra.mxu0 0.0
    %276 = vmatprep.subr.mxu0 0.0
    %277 = vmatpush1.msra.mxu0 0.0
    %278 = vmatprep.subr.mxu0 0.0
    %279 = vmatpush1.msra.mxu0 0.0
    %280 = vmatprep.subr.mxu0 0.0
    %281 = vmatpush1.msra.mxu0 0.0
    %282 = vmatprep.subr.mxu0 0.0
    %283 = vmatpush1.msra.mxu0 0.0
    %284 = vmatprep.subr.mxu0 0.0
    %285 = vmatpush1.msra.mxu0 0.0
    %286 = vmatprep.subr.mxu0 0.0
    %287 = vmatpush1.msra.mxu0 0.0
    %288 = vmatprep.subr.mxu0 0.0
    %289 = vmatpush1.msra.mxu0 0.0
    %290 = vmatprep.subr.mxu0 0.0
    %291 = vmatpush1.msra.mxu0 0.0
    %292 = vmatprep.subr.mxu0 0.0
    %293 = vmatpush1.msra.mxu0 0.0
    %294 = vmatprep.subr.mxu0 0.0
    %295 = vmatpush1.msra.mxu0 0.0
    %296 = vmatprep.subr.mxu0 0.0
    %297 = vmatpush1.msra.mxu0 0.0
    %298 = vmatprep.subr.mxu0 0.0
    %299 = vmatpush1.msra.mxu0 0.0
    %300 = vmatprep.mubr.f32.mxu0 0.0
    %301 = vmatmul.mubr.f32.gmra.mrb[0].mxu0 %v234
    %v302 = vpop.f32.mrb[0].mxu0
    %v303 = vadd.f32 %v232, %v302
    %v304 = vpop.f32.mrb[0].mxu0
    %305 = vdwg.mxu0
    %v306 = vmul.f32 %v303, 0.5
    %v307 = vmul.f32 %v303, 0.70710677
    %v308 = verf.f32.pop %v307
    %v309 = vadd.f32 %v308, 1.0
    %v310 = vmul.f32 %v306, %v309
    %311 = vmatprep.subr.mxu0 %v104
    %312 = vmatpush1.msra.mxu0 %v103
    %313 = vmatprep.subr.mxu0 %v108
    %314 = vmatpush1.msra.mxu0 %v107
    %315 = vmatprep.subr.mxu0 %v112
    %316 = vmatpush1.msra.mxu0 %v111
    %317 = vmatprep.subr.mxu0 %v116
    %318 = vmatpush1.msra.mxu0 %v115
    %319 = vmatprep.subr.mxu0 %v120
    %320 = vmatpush1.msra.mxu0 %v119
    %321 = vmatprep.subr.mxu0 %v124
    %322 = vmatpush1.msra.mxu0 %v123
    %323 = vmatprep.subr.mxu0 %v128
    %324 = vmatpush1.msra.mxu0 %v127
    %325 = vmatprep.subr.mxu0 %v132
    %326 = vmatpush1.msra.mxu0 %v131
    %327 = vmatprep.subr.mxu0 %v136
    %328 = vmatpush1.msra.mxu0 %v135
    %329 = vmatprep.subr.mxu0 %v140
    %330 = vmatpush1.msra.mxu0 %v139
    %331 = vmatprep.subr.mxu0 %v144
    %332 = vmatpush1.msra.mxu0 %v143
    %333 = vmatprep.subr.mxu0 %v148
    %334 = vmatpush1.msra.mxu0 %v147
    %335 = vmatprep.subr.mxu0 %v152
    %336 = vmatpush1.msra.mxu0 %v151
    %337 = vmatprep.subr.mxu0 %v156
    %338 = vmatpush1.msra.mxu0 %v155
    %339 = vmatprep.subr.mxu0 %v160
    %340 = vmatpush1.msra.mxu0 %v159
    %341 = vmatprep.subr.mxu0 %v164
    %342 = vmatpush1.msra.mxu0 %v163
    %343 = vmatprep.subr.mxu0 0.0
    %344 = vmatpush1.msra.mxu0 0.0
    %345 = vmatprep.subr.mxu0 0.0
    %346 = vmatpush1.msra.mxu0 0.0
    %347 = vmatprep.subr.mxu0 0.0
    %348 = vmatpush1.msra.mxu0 0.0
    %349 = vmatprep.subr.mxu0 0.0
    %350 = vmatpush1.msra.mxu0 0.0
    %351 = vmatprep.subr.mxu0 0.0
    %352 = vmatpush1.msra.mxu0 0.0
    %353 = vmatprep.subr.mxu0 0.0
    %354 = vmatpush1.msra.mxu0 0.0
    %355 = vmatprep.subr.mxu0 0.0
    %356 = vmatpush1.msra.mxu0 0.0
    %357 = vmatprep.subr.mxu0 0.0
    %358 = vmatpush1.msra.mxu0 0.0
    %359 = vmatprep.subr.mxu0 0.0
    %360 = vmatpush1.msra.mxu0 0.0
    %361 = vmatprep.subr.mxu0 0.0
    %362 = vmatpush1.msra.mxu0 0.0
    %363 = vmatprep.subr.mxu0 0.0
    %364 = vmatpush1.msra.mxu0 0.0
    %365 = vmatprep.subr.mxu0 0.0
    %366 = vmatpush1.msra.mxu0 0.0
    %367 = vmatprep.subr.mxu0 0.0
    %368 = vmatpush1.msra.mxu0 0.0
    %369 = vmatprep.subr.mxu0 0.0
    %370 = vmatpush1.msra.mxu0 0.0
    %371 = vmatprep.subr.mxu0 0.0
    %372 = vmatpush1.msra.mxu0 0.0
    %373 = vmatprep.subr.mxu0 0.0
    %374 = vmatpush1.msra.mxu0 0.0
    %375 = vmatprep.mubr.f32.mxu0 0.0
    %376 = vmatmul.mubr.f32.gmra.mrb[0].mxu0 %v310
    %v377 = vpop.f32.mrb[0].mxu0
    %v378 = vadd.f32 0.0, %v377
    %v379 = vpop.f32.mrb[0].mxu0
    %v380 = vadd.f32 0.0, %v379
    %381 = vdwg.mxu0
    %v382 = vld [vmem:[%s3 + $0x6] sm:$0x1]
    %v383 = vlaneseq
    %v384 = vshrl.u32 %v383, 7
    %v385 = vsub.s32 0, %v384
    %v386 = vrot.slane %v382, %v385
    %v387 = vadd.f32 %v378, %v386
    %v388 = vld [vmem:[%s3 + $0x7] sm:$0x1]
    %v389 = vlaneseq
    %v390 = vshrl.u32 %v389, 7
    %v391 = vsub.s32 0, %v390
    %v392 = vrot.slane %v388, %v391
    %v393 = vadd.f32 %v380, %v392
    %v394 = vld [vmem:[%s3 + $0x2] sm:$0x1]
    %v395 = vadd.f32 %v387, 1.0
    %v396 = vlaneseq
    %v397 = vshrl.u32 %v396, 7
    %v398 = vsub.s32 0, %v397
    %v399 = vrot.slane %v394, %v398
    %v400 = vmul.f32 %v399, %v395
    %v401 = vld [vmem:[%s3 + $0x3] sm:$0x1]
    %v402 = vlaneseq
    %v403 = vshrl.u32 %v402, 7
    %v404 = vsub.s32 0, %v403
    %v405 = vrot.slane %v401, %v404
    %v406 = vadd.f32 %v405, %v393
    %vm407 = vcmask 130048
    %v409 = vsel %vm407, %v68, 0
    %v412 = vsel %vm407, %v69, 0
    %v415 = vsel %vm407, %v70, 0
    %v418 = vsel %vm407, %v71, 0
    %420 = vmatprep.subr.mxu0 0.0
    %421 = vmatpush1.msra.mxu0 %v207
    %422 = vmatprep.subr.mxu0 0.0
    %423 = vmatpush1.msra.mxu0 %v208
    %424 = vmatprep.subr.mxu0 0.0
    %425 = vmatpush1.msra.mxu0 0.0
    %426 = vmatprep.subr.mxu0 0.0
    %427 = vmatpush1.msra.mxu0 0.0
    %428 = vmatprep.subr.mxu0 0.0
    %429 = vmatpush1.msra.mxu0 0.0
    %430 = vmatprep.subr.mxu0 0.0
    %431 = vmatpush1.msra.mxu0 0.0
    %432 = vmatprep.subr.mxu0 0.0
    %433 = vmatpush1.msra.mxu0 0.0
    %434 = vmatprep.subr.mxu0 0.0
    %435 = vmatpush1.msra.mxu0 0.0
    %436 = vmatprep.subr.mxu0 0.0
    %437 = vmatpush1.msra.mxu0 0.0
    %438 = vmatprep.subr.mxu0 0.0
    %439 = vmatpush1.msra.mxu0 0.0
    %440 = vmatprep.subr.mxu0 0.0
    %441 = vmatpush1.msra.mxu0 0.0
    %442 = vmatprep.subr.mxu0 0.0
    %443 = vmatpush1.msra.mxu0 0.0
    %444 = vmatprep.subr.mxu0 0.0
    %445 = vmatpush1.msra.mxu0 0.0
    %446 = vmatprep.subr.mxu0 0.0
    %447 = vmatpush1.msra.mxu0 0.0
    %448 = vmatprep.subr.mxu0 0.0
    %449 = vmatpush1.msra.mxu0 0.0
    %450 = vmatprep.subr.mxu0 0.0
    %451 = vmatpush1.msra.mxu0 0.0
    %452 = vmatprep.subr.mxu0 0.0
    %453 = vmatpush1.msra.mxu0 0.0
    %454 = vmatprep.subr.mxu0 0.0
    %455 = vmatpush1.msra.mxu0 0.0
    %456 = vmatprep.subr.mxu0 0.0
    %457 = vmatpush1.msra.mxu0 0.0
    %458 = vmatprep.subr.mxu0 0.0
    %459 = vmatpush1.msra.mxu0 0.0
    %460 = vmatprep.subr.mxu0 0.0
    %461 = vmatpush1.msra.mxu0 0.0
    %462 = vmatprep.subr.mxu0 0.0
    %463 = vmatpush1.msra.mxu0 0.0
    %464 = vmatprep.subr.mxu0 0.0
    %465 = vmatpush1.msra.mxu0 0.0
    %466 = vmatprep.subr.mxu0 0.0
    %467 = vmatpush1.msra.mxu0 0.0
    %468 = vmatprep.subr.mxu0 0.0
    %469 = vmatpush1.msra.mxu0 0.0
    %470 = vmatprep.subr.mxu0 0.0
    %471 = vmatpush1.msra.mxu0 0.0
    %472 = vmatprep.subr.mxu0 0.0
    %473 = vmatpush1.msra.mxu0 0.0
    %474 = vmatprep.subr.mxu0 0.0
    %475 = vmatpush1.msra.mxu0 0.0
    %476 = vmatprep.subr.mxu0 0.0
    %477 = vmatpush1.msra.mxu0 0.0
    %478 = vmatprep.subr.mxu0 0.0
    %479 = vmatpush1.msra.mxu0 0.0
    %480 = vmatprep.subr.mxu0 0.0
    %481 = vmatpush1.msra.mxu0 0.0
    %482 = vmatprep.subr.mxu0 0.0
    %483 = vmatpush1.msra.mxu0 0.0
    %484 = vmatprep.mubr.f32.mxu0 0.0
    %485 = vmatmul.mubr.f32.gmra.mrb[0].mxu0 %v409
    %v486 = vpop.f32.mrb[0].mxu0
    %v487 = vadd.f32 0.0, %v486
    %v488 = vpop.f32.mrb[0].mxu0
    %489 = vmatprep.mubr.f32.mxu0 0.0
    %490 = vmatmul.mubr.f32.gmra.mrb[0].mxu0 %v412
    %v491 = vpop.f32.mrb[0].mxu0
    %v492 = vadd.f32 0.0, %v491
    %v493 = vpop.f32.mrb[0].mxu0
    %494 = vmatprep.mubr.f32.mxu0 0.0
    %495 = vmatmul.mubr.f32.gmra.mrb[0].mxu0 %v415
    %v496 = vpop.f32.mrb[0].mxu0
    %v497 = vadd.f32 0.0, %v496
    %v498 = vpop.f32.mrb[0].mxu0
    %499 = vmatprep.mubr.f32.mxu0 0.0
    %500 = vmatmul.mubr.f32.gmra.mrb[0].mxu0 %v418
    %v501 = vpop.f32.mrb[0].mxu0
    %v502 = vadd.f32 0.0, %v501
    %v503 = vpop.f32.mrb[0].mxu0
    %504 = vdwg.mxu0
    %v505 = vlaneseq
    %v506 = vshrl.u32 %v505, 7
    %v507 = vsub.s32 0, %v506
    %v508 = vrot.slane %v400, %v507
    %v509 = vlaneseq
    %v510 = vshrl.u32 %v509, 7
    %v511 = vsub.s32 1, %v510
    %v512 = vrot.slane %v400, %v511
    %v513 = vlaneseq
    %v514 = vshrl.u32 %v513, 7
    %v515 = vsub.s32 0, %v514
    %v516 = vrot.slane %v406, %v515
    %v517 = vlaneseq
    %v518 = vshrl.u32 %v517, 7
    %v519 = vsub.s32 1, %v518
    %v520 = vrot.slane %v406, %v519
    %v521 = vmul.f32 %v487, %v508
    %v522 = vmul.f32 %v492, %v512
    %v523 = vmul.f32 %v497, %v508
    %v524 = vmul.f32 %v502, %v512
    %v525 = vadd.f32 %v521, %v516
    %v526 = vadd.f32 %v522, %v520
    %v527 = vadd.f32 %v523, 0.0
    %v528 = vadd.f32 %v524, 0.0
    %v529 = vmul.f32 %v525, %v525
    %v530 = vmul.f32 %v526, %v526
    %v531 = vmul.f32 %v527, %v527
    %v532 = vmul.f32 %v528, %v528
    %v533 = vadd.f32 %v529, %v531
    %v534 = vadd.f32 %v530, %v532
    %v535 = vadd.f32 %v533, 1e-30
    %v536 = vadd.f32 %v534, 1e-30
    %v537 = vrsqrt.pop %v535
    %v538 = vrsqrt.pop %v536
    %v539 = vmul.f32 %v533, %v537
    %v540 = vmul.f32 %v534, %v538
    %v541 = vld [vmem:[%s3 + $0x4] sm:$0x1]
    %v542 = vlaneseq
    %v543 = vshrl.u32 %v542, 7
    %v544 = vsub.s32 0, %v543
    %v545 = vrot.slane %v541, %v544
    %v546 = vadd.f32 %v539, %v545
    %v547 = vadd.f32 %v540, %v545
    %v548 = vmax.f32 %v546, 0.0
    %v549 = vmax.f32 %v547, 0.0
    %vm550 = vcmp.gt.f32.partialorder %v533, 0.0
    %vm551 = vcmp.gt.f32.partialorder %v534, 0.0
    %v552 = vmul.f32 %v525, %v537
    %v553 = vmul.f32 %v526, %v538
    %v554 = vmul.f32 %v527, %v537
    %v555 = vmul.f32 %v528, %v538
    %v556 = vsel %vm550, %v552, %v87
    %v557 = vsel %vm551, %v553, %v88
    %v558 = vsel %vm550, %v554, %v89
    %v559 = vsel %vm551, %v555, %v90
    %v560 = vmul.f32 %v548, %v556
    %v561 = vmul.f32 %v549, %v557
    %v562 = vmul.f32 %v548, %v558
    %v563 = vmul.f32 %v549, %v559
    %v565 = vsel %vm169, %v72, 0
    %v568 = vsel %vm169, %v73, 0
    %570 = vmatprep.subr.mxu0 0.0
    %571 = vmatpush1.msra.mxu0 %v560
    %572 = vmatprep.subr.mxu0 0.0
    %573 = vmatpush1.msra.mxu0 %v561
    %574 = vmatprep.subr.mxu0 0.0
    %575 = vmatpush1.msra.mxu0 %v562
    %576 = vmatprep.subr.mxu0 0.0
    %577 = vmatpush1.msra.mxu0 %v563
    %578 = vmatprep.subr.mxu0 0.0
    %579 = vmatpush1.msra.mxu0 0.0
    %580 = vmatprep.subr.mxu0 0.0
    %581 = vmatpush1.msra.mxu0 0.0
    %582 = vmatprep.subr.mxu0 0.0
    %583 = vmatpush1.msra.mxu0 0.0
    %584 = vmatprep.subr.mxu0 0.0
    %585 = vmatpush1.msra.mxu0 0.0
    %586 = vmatprep.subr.mxu0 0.0
    %587 = vmatpush1.msra.mxu0 0.0
    %588 = vmatprep.subr.mxu0 0.0
    %589 = vmatpush1.msra.mxu0 0.0
    %590 = vmatprep.subr.mxu0 0.0
    %591 = vmatpush1.msra.mxu0 0.0
    %592 = vmatprep.subr.mxu0 0.0
    %593 = vmatpush1.msra.mxu0 0.0
    %594 = vmatprep.subr.mxu0 0.0
    %595 = vmatpush1.msra.mxu0 0.0
    %596 = vmatprep.subr.mxu0 0.0
    %597 = vmatpush1.msra.mxu0 0.0
    %598 = vmatprep.subr.mxu0 0.0
    %599 = vmatpush1.msra.mxu0 0.0
    %600 = vmatprep.subr.mxu0 0.0
    %601 = vmatpush1.msra.mxu0 0.0
    %602 = vmatprep.subr.mxu0 0.0
    %603 = vmatpush1.msra.mxu0 0.0
    %604 = vmatprep.subr.mxu0 0.0
    %605 = vmatpush1.msra.mxu0 0.0
    %606 = vmatprep.subr.mxu0 0.0
    %607 = vmatpush1.msra.mxu0 0.0
    %608 = vmatprep.subr.mxu0 0.0
    %609 = vmatpush1.msra.mxu0 0.0
    %610 = vmatprep.subr.mxu0 0.0
    %611 = vmatpush1.msra.mxu0 0.0
    %612 = vmatprep.subr.mxu0 0.0
    %613 = vmatpush1.msra.mxu0 0.0
    %614 = vmatprep.subr.mxu0 0.0
    %615 = vmatpush1.msra.mxu0 0.0
    %616 = vmatprep.subr.mxu0 0.0
    %617 = vmatpush1.msra.mxu0 0.0
    %618 = vmatprep.subr.mxu0 0.0
    %619 = vmatpush1.msra.mxu0 0.0
    %620 = vmatprep.subr.mxu0 0.0
    %621 = vmatpush1.msra.mxu0 0.0
    %622 = vmatprep.subr.mxu0 0.0
    %623 = vmatpush1.msra.mxu0 0.0
    %624 = vmatprep.subr.mxu0 0.0
    %625 = vmatpush1.msra.mxu0 0.0
    %626 = vmatprep.subr.mxu0 0.0
    %627 = vmatpush1.msra.mxu0 0.0
    %628 = vmatprep.subr.mxu0 0.0
    %629 = vmatpush1.msra.mxu0 0.0
    %630 = vmatprep.subr.mxu0 0.0
    %631 = vmatpush1.msra.mxu0 0.0
    %632 = vmatprep.subr.mxu0 0.0
    %633 = vmatpush1.msra.mxu0 0.0
    %634 = vmatprep.mubr.f32.mxu0 0.0
    %635 = vmatmul.mubr.f32.gmra.mrb[0].mxu0 %v565
    %v636 = vpop.f32.mrb[0].mxu0
    %v637 = vadd.f32 0.0, %v636
    %v638 = vpop.f32.mrb[0].mxu0
    %639 = vmatprep.mubr.f32.mxu0 0.0
    %640 = vmatmul.mubr.f32.gmra.mrb[0].mxu0 %v568
    %v641 = vpop.f32.mrb[0].mxu0
    %v642 = vadd.f32 0.0, %v641
    %v643 = vpop.f32.mrb[0].mxu0
    %644 = vdwg.mxu0
    %v645 = vld [vmem:[%s3 + $0xc] sm:$0x1]
    %v646 = vlaneseq
    %v647 = vshrl.u32 %v646, 7
    %v648 = vsub.s32 0, %v647
    %v649 = vrot.slane %v645, %v648
    %v650 = vmul.f32 %v649, %v637
    %v651 = vmul.f32 %v649, %v642
    %v652 = vadd.f32 %v65, %v650
    %v653 = vadd.f32 %v67, %v651
    %v654 = vld [vmem:[%s3 + $0x8] sm:$0x1]
    %v655 = vld [vmem:[%s3 + $0x9] sm:$0x1]
    %v656 = vsel %vm169, %v652, 0.0
    %657 = vadd.xlane.f32.xlu0 %v656
    %v658 = vpop.xlane.xlu0 %657
    %v659 = vsel %vm169, %v653, 0.0
    %660 = vadd.xlane.f32.xlu0 %v659
    %v661 = vpop.xlane.xlu0 %660
    %v662 = vmul.f32 %v658, %v176
    %v663 = vmul.f32 %v661, %v176
    %v664 = vsub.f32 %v652, %v662
    %v665 = vsub.f32 %v653, %v663
    %v666 = vmul.f32 %v664, %v664
    %v667 = vmul.f32 %v665, %v665
    %v668 = vsel %vm169, %v666, 0.0
    %669 = vadd.xlane.f32.xlu0 %v668
    %v670 = vpop.xlane.xlu0 %669
    %v671 = vsel %vm169, %v667, 0.0
    %672 = vadd.xlane.f32.xlu0 %v671
    %v673 = vpop.xlane.xlu0 %672
    %v674 = vmul.f32 %v670, %v176
    %v675 = vmul.f32 %v673, %v176
    %v676 = vadd.f32 %v674, 1e-05
    %v677 = vadd.f32 %v675, 1e-05
    %v678 = vrsqrt.pop %v676
    %v679 = vrsqrt.pop %v677
    %v680 = vmul.f32 %v664, %v678
    %v681 = vmul.f32 %v665, %v679
    %v682 = vlaneseq
    %v683 = vshrl.u32 %v682, 7
    %v684 = vsub.s32 0, %v683
    %v685 = vrot.slane %v654, %v684
    %v686 = vmul.f32 %v680, %v685
    %v687 = vmul.f32 %v681, %v685
    %v688 = vlaneseq
    %v689 = vshrl.u32 %v688, 7
    %v690 = vsub.s32 0, %v689
    %v691 = vrot.slane %v655, %v690
    %v692 = vadd.f32 %v686, %v691
    %v693 = vadd.f32 %v687, %v691
    %v694 = vld [vmem:[%s3 + $0xa] sm:$0x1]
    %v695 = vlaneseq
    %v696 = vshrl.u32 %v695, 7
    %v697 = vsub.s32 0, %v696
    %v698 = vrot.slane %v694, %v697
    %v700 = vsel %vm169, %v692, 0
    %v703 = vsel %vm169, %v693, 0
    %705 = vmatprep.subr.mxu0 0.0
    %706 = vmatpush1.msra.mxu0 %v92
    %707 = vmatprep.subr.mxu0 0.0
    %708 = vmatpush1.msra.mxu0 %v95
    %709 = vmatprep.subr.mxu0 0.0
    %710 = vmatpush1.msra.mxu0 %v98
    %711 = vmatprep.subr.mxu0 0.0
    %712 = vmatpush1.msra.mxu0 %v101
    %713 = vmatprep.subr.mxu0 0.0
    %714 = vmatpush1.msra.mxu0 0.0
    %715 = vmatprep.subr.mxu0 0.0
    %716 = vmatpush1.msra.mxu0 0.0
    %717 = vmatprep.subr.mxu0 0.0
    %718 = vmatpush1.msra.mxu0 0.0
    %719 = vmatprep.subr.mxu0 0.0
    %720 = vmatpush1.msra.mxu0 0.0
    %721 = vmatprep.subr.mxu0 0.0
    %722 = vmatpush1.msra.mxu0 0.0
    %723 = vmatprep.subr.mxu0 0.0
    %724 = vmatpush1.msra.mxu0 0.0
    %725 = vmatprep.subr.mxu0 0.0
    %726 = vmatpush1.msra.mxu0 0.0
    %727 = vmatprep.subr.mxu0 0.0
    %728 = vmatpush1.msra.mxu0 0.0
    %729 = vmatprep.subr.mxu0 0.0
    %730 = vmatpush1.msra.mxu0 0.0
    %731 = vmatprep.subr.mxu0 0.0
    %732 = vmatpush1.msra.mxu0 0.0
    %733 = vmatprep.subr.mxu0 0.0
    %734 = vmatpush1.msra.mxu0 0.0
    %735 = vmatprep.subr.mxu0 0.0
    %736 = vmatpush1.msra.mxu0 0.0
    %737 = vmatprep.subr.mxu0 0.0
    %738 = vmatpush1.msra.mxu0 0.0
    %739 = vmatprep.subr.mxu0 0.0
    %740 = vmatpush1.msra.mxu0 0.0
    %741 = vmatprep.subr.mxu0 0.0
    %742 = vmatpush1.msra.mxu0 0.0
    %743 = vmatprep.subr.mxu0 0.0
    %744 = vmatpush1.msra.mxu0 0.0
    %745 = vmatprep.subr.mxu0 0.0
    %746 = vmatpush1.msra.mxu0 0.0
    %747 = vmatprep.subr.mxu0 0.0
    %748 = vmatpush1.msra.mxu0 0.0
    %749 = vmatprep.subr.mxu0 0.0
    %750 = vmatpush1.msra.mxu0 0.0
    %751 = vmatprep.subr.mxu0 0.0
    %752 = vmatpush1.msra.mxu0 0.0
    %753 = vmatprep.subr.mxu0 0.0
    %754 = vmatpush1.msra.mxu0 0.0
    %755 = vmatprep.subr.mxu0 0.0
    %756 = vmatpush1.msra.mxu0 0.0
    %757 = vmatprep.subr.mxu0 0.0
    %758 = vmatpush1.msra.mxu0 0.0
    %759 = vmatprep.subr.mxu0 0.0
    %760 = vmatpush1.msra.mxu0 0.0
    %761 = vmatprep.subr.mxu0 0.0
    %762 = vmatpush1.msra.mxu0 0.0
    %763 = vmatprep.subr.mxu0 0.0
    %764 = vmatpush1.msra.mxu0 0.0
    %765 = vmatprep.subr.mxu0 0.0
    %766 = vmatpush1.msra.mxu0 0.0
    %767 = vmatprep.subr.mxu0 0.0
    %768 = vmatpush1.msra.mxu0 0.0
    %769 = vmatprep.mubr.f32.mxu0 0.0
    %770 = vmatmul.mubr.f32.gmra.mrb[0].mxu0 %v700
    %v771 = vpop.f32.mrb[0].mxu0
    %v772 = vadd.f32 %v698, %v771
    %v773 = vpop.f32.mrb[0].mxu0
    %774 = vmatprep.mubr.f32.mxu0 0.0
    %775 = vmatmul.mubr.f32.gmra.mrb[0].mxu0 %v703
    %v776 = vpop.f32.mrb[0].mxu0
    %v777 = vadd.f32 %v698, %v776
    %v778 = vpop.f32.mrb[0].mxu0
    %779 = vdwg.mxu0
    %v780 = vmul.f32 %v772, 0.5
    %v781 = vmul.f32 %v777, 0.5
    %v782 = vmul.f32 %v772, 0.70710677
    %v783 = vmul.f32 %v777, 0.70710677
    %v784 = verf.f32.pop %v782
    %v785 = verf.f32.pop %v783
    %v786 = vadd.f32 %v784, 1.0
    %v787 = vadd.f32 %v785, 1.0
    %v788 = vmul.f32 %v780, %v786
    %v789 = vmul.f32 %v781, %v787
    %v790 = vld [vmem:[%s3 + $0xb] sm:$0x1]
    %v791 = vlaneseq
    %v792 = vshrl.u32 %v791, 7
    %v793 = vsub.s32 0, %v792
    %v794 = vrot.slane %v790, %v793
    %795 = vmatprep.subr.mxu0 0.0
    %796 = vmatpush1.msra.mxu0 %v105
    %797 = vmatprep.subr.mxu0 0.0
    %798 = vmatpush1.msra.mxu0 %v109
    %799 = vmatprep.subr.mxu0 0.0
    %800 = vmatpush1.msra.mxu0 %v113
    %801 = vmatprep.subr.mxu0 0.0
    %802 = vmatpush1.msra.mxu0 %v117
    %803 = vmatprep.subr.mxu0 0.0
    %804 = vmatpush1.msra.mxu0 %v121
    %805 = vmatprep.subr.mxu0 0.0
    %806 = vmatpush1.msra.mxu0 %v125
    %807 = vmatprep.subr.mxu0 0.0
    %808 = vmatpush1.msra.mxu0 %v129
    %809 = vmatprep.subr.mxu0 0.0
    %810 = vmatpush1.msra.mxu0 %v133
    %811 = vmatprep.subr.mxu0 0.0
    %812 = vmatpush1.msra.mxu0 %v137
    %813 = vmatprep.subr.mxu0 0.0
    %814 = vmatpush1.msra.mxu0 %v141
    %815 = vmatprep.subr.mxu0 0.0
    %816 = vmatpush1.msra.mxu0 %v145
    %817 = vmatprep.subr.mxu0 0.0
    %818 = vmatpush1.msra.mxu0 %v149
    %819 = vmatprep.subr.mxu0 0.0
    %820 = vmatpush1.msra.mxu0 %v153
    %821 = vmatprep.subr.mxu0 0.0
    %822 = vmatpush1.msra.mxu0 %v157
    %823 = vmatprep.subr.mxu0 0.0
    %824 = vmatpush1.msra.mxu0 %v161
    %825 = vmatprep.subr.mxu0 0.0
    %826 = vmatpush1.msra.mxu0 %v165
    %827 = vmatprep.subr.mxu0 0.0
    %828 = vmatpush1.msra.mxu0 0.0
    %829 = vmatprep.subr.mxu0 0.0
    %830 = vmatpush1.msra.mxu0 0.0
    %831 = vmatprep.subr.mxu0 0.0
    %832 = vmatpush1.msra.mxu0 0.0
    %833 = vmatprep.subr.mxu0 0.0
    %834 = vmatpush1.msra.mxu0 0.0
    %835 = vmatprep.subr.mxu0 0.0
    %836 = vmatpush1.msra.mxu0 0.0
    %837 = vmatprep.subr.mxu0 0.0
    %838 = vmatpush1.msra.mxu0 0.0
    %839 = vmatprep.subr.mxu0 0.0
    %840 = vmatpush1.msra.mxu0 0.0
    %841 = vmatprep.subr.mxu0 0.0
    %842 = vmatpush1.msra.mxu0 0.0
    %843 = vmatprep.subr.mxu0 0.0
    %844 = vmatpush1.msra.mxu0 0.0
    %845 = vmatprep.subr.mxu0 0.0
    %846 = vmatpush1.msra.mxu0 0.0
    %847 = vmatprep.subr.mxu0 0.0
    %848 = vmatpush1.msra.mxu0 0.0
    %849 = vmatprep.subr.mxu0 0.0
    %850 = vmatpush1.msra.mxu0 0.0
    %851 = vmatprep.subr.mxu0 0.0
    %852 = vmatpush1.msra.mxu0 0.0
    %853 = vmatprep.subr.mxu0 0.0
    %854 = vmatpush1.msra.mxu0 0.0
    %855 = vmatprep.subr.mxu0 0.0
    %856 = vmatpush1.msra.mxu0 0.0
    %857 = vmatprep.subr.mxu0 0.0
    %858 = vmatpush1.msra.mxu0 0.0
    %859 = vmatprep.mubr.f32.mxu0 0.0
    %860 = vmatmul.mubr.f32.gmra.mrb[0].mxu0 %v788
    %v861 = vpop.f32.mrb[0].mxu0
    %v862 = vadd.f32 %v794, %v861
    %v863 = vpop.f32.mrb[0].mxu0
    %864 = vmatprep.mubr.f32.mxu0 0.0
    %865 = vmatmul.mubr.f32.gmra.mrb[0].mxu0 %v789
    %v866 = vpop.f32.mrb[0].mxu0
    %v867 = vadd.f32 %v794, %v866
    %v868 = vpop.f32.mrb[0].mxu0
    %869 = vdwg.mxu0
    %v870 = vld [vmem:[%s3 + $0xd] sm:$0x1]
    %v871 = vlaneseq
    %v872 = vshrl.u32 %v871, 7
    %v873 = vsub.s32 0, %v872
    %v874 = vrot.slane %v870, %v873
    %v875 = vmul.f32 %v874, %v862
    %v876 = vmul.f32 %v874, %v867
    %v877 = vadd.f32 %v652, %v875
    %v878 = vadd.f32 %v653, %v876
    %v879 = vld [vmem:[%s3 + $0xe] sm:$0x1]
    %v880 = vld [vmem:[%s3 + $0xf] sm:$0x1]
    %v881 = vsel %vm169, %v877, 0.0
    %882 = vadd.xlane.f32.xlu0 %v881
    %v883 = vpop.xlane.xlu0 %882
    %v884 = vsel %vm169, %v878, 0.0
    %885 = vadd.xlane.f32.xlu0 %v884
    %v886 = vpop.xlane.xlu0 %885
    %v887 = vmul.f32 %v883, %v176
    %v888 = vmul.f32 %v886, %v176
    %v889 = vsub.f32 %v877, %v887
    %v890 = vsub.f32 %v878, %v888
    %v891 = vmul.f32 %v889, %v889
    %v892 = vmul.f32 %v890, %v890
    %v893 = vsel %vm169, %v891, 0.0
    %894 = vadd.xlane.f32.xlu0 %v893
    %v895 = vpop.xlane.xlu0 %894
    %v896 = vsel %vm169, %v892, 0.0
    %897 = vadd.xlane.f32.xlu0 %v896
    %v898 = vpop.xlane.xlu0 %897
    %v899 = vmul.f32 %v895, %v176
    %v900 = vmul.f32 %v898, %v176
    %v901 = vadd.f32 %v899, 1e-05
    %v902 = vadd.f32 %v900, 1e-05
    %v903 = vrsqrt.pop %v901
    %v904 = vrsqrt.pop %v902
    %v905 = vmul.f32 %v889, %v903
    %v906 = vmul.f32 %v890, %v904
    %v907 = vlaneseq
    %v908 = vshrl.u32 %v907, 7
    %v909 = vsub.s32 0, %v908
    %v910 = vrot.slane %v879, %v909
    %v911 = vmul.f32 %v905, %v910
    %v912 = vmul.f32 %v906, %v910
    %v913 = vlaneseq
    %v914 = vshrl.u32 %v913, 7
    %v915 = vsub.s32 0, %v914
    %v916 = vrot.slane %v880, %v915
    %v917 = vadd.f32 %v911, %v916
    %v918 = vadd.f32 %v912, %v916
    %v919 = vsel %vm169, %v917, 0.0
    %v920 = vrot.slane %v919, 4
    %v921 = vadd.f32 %v919, %v920
    %v922 = vrot.slane %v921, 2
    %v923 = vadd.f32 %v921, %v922
    %v924 = vrot.slane %v923, 1
    %v925 = vadd.f32 %v923, %v924
    %v926 = vmul.f32 %v925, %v216
    %v927 = vsel %vm169, %v918, 0.0
    %v928 = vrot.slane %v927, 4
    %v929 = vadd.f32 %v927, %v928
    %v930 = vrot.slane %v929, 2
    %v931 = vadd.f32 %v929, %v930
    %v932 = vrot.slane %v931, 1
    %v933 = vadd.f32 %v931, %v932
    %v934 = vmul.f32 %v933, %v216
    %v935 = vsel %vm226, %v926, %v934
    %v936 = vld [vmem:[%s3 + $0x10] sm:$0x1]
    %v937 = vlaneseq
    %v938 = vshrl.u32 %v937, 7
    %v939 = vsub.s32 0, %v938
    %v940 = vrot.slane %v936, %v939
    %v942 = vsel %vm169, %v935, 0
    %944 = vmatprep.subr.mxu0 0.0
    %945 = vmatpush1.msra.mxu0 %v93
    %946 = vmatprep.subr.mxu0 0.0
    %947 = vmatpush1.msra.mxu0 %v96
    %948 = vmatprep.subr.mxu0 0.0
    %949 = vmatpush1.msra.mxu0 %v99
    %950 = vmatprep.subr.mxu0 0.0
    %951 = vmatpush1.msra.mxu0 %v102
    %952 = vmatprep.subr.mxu0 0.0
    %953 = vmatpush1.msra.mxu0 0.0
    %954 = vmatprep.subr.mxu0 0.0
    %955 = vmatpush1.msra.mxu0 0.0
    %956 = vmatprep.subr.mxu0 0.0
    %957 = vmatpush1.msra.mxu0 0.0
    %958 = vmatprep.subr.mxu0 0.0
    %959 = vmatpush1.msra.mxu0 0.0
    %960 = vmatprep.subr.mxu0 0.0
    %961 = vmatpush1.msra.mxu0 0.0
    %962 = vmatprep.subr.mxu0 0.0
    %963 = vmatpush1.msra.mxu0 0.0
    %964 = vmatprep.subr.mxu0 0.0
    %965 = vmatpush1.msra.mxu0 0.0
    %966 = vmatprep.subr.mxu0 0.0
    %967 = vmatpush1.msra.mxu0 0.0
    %968 = vmatprep.subr.mxu0 0.0
    %969 = vmatpush1.msra.mxu0 0.0
    %970 = vmatprep.subr.mxu0 0.0
    %971 = vmatpush1.msra.mxu0 0.0
    %972 = vmatprep.subr.mxu0 0.0
    %973 = vmatpush1.msra.mxu0 0.0
    %974 = vmatprep.subr.mxu0 0.0
    %975 = vmatpush1.msra.mxu0 0.0
    %976 = vmatprep.subr.mxu0 0.0
    %977 = vmatpush1.msra.mxu0 0.0
    %978 = vmatprep.subr.mxu0 0.0
    %979 = vmatpush1.msra.mxu0 0.0
    %980 = vmatprep.subr.mxu0 0.0
    %981 = vmatpush1.msra.mxu0 0.0
    %982 = vmatprep.subr.mxu0 0.0
    %983 = vmatpush1.msra.mxu0 0.0
    %984 = vmatprep.subr.mxu0 0.0
    %985 = vmatpush1.msra.mxu0 0.0
    %986 = vmatprep.subr.mxu0 0.0
    %987 = vmatpush1.msra.mxu0 0.0
    %988 = vmatprep.subr.mxu0 0.0
    %989 = vmatpush1.msra.mxu0 0.0
    %990 = vmatprep.subr.mxu0 0.0
    %991 = vmatpush1.msra.mxu0 0.0
    %992 = vmatprep.subr.mxu0 0.0
    %993 = vmatpush1.msra.mxu0 0.0
    %994 = vmatprep.subr.mxu0 0.0
    %995 = vmatpush1.msra.mxu0 0.0
    %996 = vmatprep.subr.mxu0 0.0
    %997 = vmatpush1.msra.mxu0 0.0
    %998 = vmatprep.subr.mxu0 0.0
    %999 = vmatpush1.msra.mxu0 0.0
    %1000 = vmatprep.subr.mxu0 0.0
    %1001 = vmatpush1.msra.mxu0 0.0
    %1002 = vmatprep.subr.mxu0 0.0
    %1003 = vmatpush1.msra.mxu0 0.0
    %1004 = vmatprep.subr.mxu0 0.0
    %1005 = vmatpush1.msra.mxu0 0.0
    %1006 = vmatprep.subr.mxu0 0.0
    %1007 = vmatpush1.msra.mxu0 0.0
    %1008 = vmatprep.mubr.f32.mxu0 0.0
    %1009 = vmatmul.mubr.f32.gmra.mrb[0].mxu0 %v942
    %v1010 = vpop.f32.mrb[0].mxu0
    %v1011 = vadd.f32 %v940, %v1010
    %v1012 = vpop.f32.mrb[0].mxu0
    %1013 = vdwg.mxu0
    %v1014 = vmul.f32 %v1011, 0.5
    %v1015 = vmul.f32 %v1011, 0.70710677
    %v1016 = verf.f32.pop %v1015
    %v1017 = vadd.f32 %v1016, 1.0
    %v1018 = vmul.f32 %v1014, %v1017
    %v1019 = vld [vmem:[%s3 + $0x11] sm:$0x1]
    %v1020 = vlaneseq
    %v1021 = vshrl.u32 %v1020, 7
    %v1022 = vsub.s32 0, %v1021
    %v1023 = vrot.slane %v1019, %v1022
    %1024 = vmatprep.subr.mxu0 0.0
    %1025 = vmatpush1.msra.mxu0 %v106
    %1026 = vmatprep.subr.mxu0 0.0
    %1027 = vmatpush1.msra.mxu0 %v110
    %1028 = vmatprep.subr.mxu0 0.0
    %1029 = vmatpush1.msra.mxu0 %v114
    %1030 = vmatprep.subr.mxu0 0.0
    %1031 = vmatpush1.msra.mxu0 %v118
    %1032 = vmatprep.subr.mxu0 0.0
    %1033 = vmatpush1.msra.mxu0 %v122
    %1034 = vmatprep.subr.mxu0 0.0
    %1035 = vmatpush1.msra.mxu0 %v126
    %1036 = vmatprep.subr.mxu0 0.0
    %1037 = vmatpush1.msra.mxu0 %v130
    %1038 = vmatprep.subr.mxu0 0.0
    %1039 = vmatpush1.msra.mxu0 %v134
    %1040 = vmatprep.subr.mxu0 0.0
    %1041 = vmatpush1.msra.mxu0 %v138
    %1042 = vmatprep.subr.mxu0 0.0
    %1043 = vmatpush1.msra.mxu0 %v142
    %1044 = vmatprep.subr.mxu0 0.0
    %1045 = vmatpush1.msra.mxu0 %v146
    %1046 = vmatprep.subr.mxu0 0.0
    %1047 = vmatpush1.msra.mxu0 %v150
    %1048 = vmatprep.subr.mxu0 0.0
    %1049 = vmatpush1.msra.mxu0 %v154
    %1050 = vmatprep.subr.mxu0 0.0
    %1051 = vmatpush1.msra.mxu0 %v158
    %1052 = vmatprep.subr.mxu0 0.0
    %1053 = vmatpush1.msra.mxu0 %v162
    %1054 = vmatprep.subr.mxu0 0.0
    %1055 = vmatpush1.msra.mxu0 %v166
    %1056 = vmatprep.subr.mxu0 0.0
    %1057 = vmatpush1.msra.mxu0 0.0
    %1058 = vmatprep.subr.mxu0 0.0
    %1059 = vmatpush1.msra.mxu0 0.0
    %1060 = vmatprep.subr.mxu0 0.0
    %1061 = vmatpush1.msra.mxu0 0.0
    %1062 = vmatprep.subr.mxu0 0.0
    %1063 = vmatpush1.msra.mxu0 0.0
    %1064 = vmatprep.subr.mxu0 0.0
    %1065 = vmatpush1.msra.mxu0 0.0
    %1066 = vmatprep.subr.mxu0 0.0
    %1067 = vmatpush1.msra.mxu0 0.0
    %1068 = vmatprep.subr.mxu0 0.0
    %1069 = vmatpush1.msra.mxu0 0.0
    %1070 = vmatprep.subr.mxu0 0.0
    %1071 = vmatpush1.msra.mxu0 0.0
    %1072 = vmatprep.subr.mxu0 0.0
    %1073 = vmatpush1.msra.mxu0 0.0
    %1074 = vmatprep.subr.mxu0 0.0
    %1075 = vmatpush1.msra.mxu0 0.0
    %1076 = vmatprep.subr.mxu0 0.0
    %1077 = vmatpush1.msra.mxu0 0.0
    %1078 = vmatprep.subr.mxu0 0.0
    %1079 = vmatpush1.msra.mxu0 0.0
    %1080 = vmatprep.subr.mxu0 0.0
    %1081 = vmatpush1.msra.mxu0 0.0
    %1082 = vmatprep.subr.mxu0 0.0
    %1083 = vmatpush1.msra.mxu0 0.0
    %1084 = vmatprep.subr.mxu0 0.0
    %1085 = vmatpush1.msra.mxu0 0.0
    %1086 = vmatprep.subr.mxu0 0.0
    %1087 = vmatpush1.msra.mxu0 0.0
    %1088 = vmatprep.mubr.f32.mxu0 0.0
    %1089 = vmatmul.mubr.f32.gmra.mrb[0].mxu0 %v1018
    %v1090 = vpop.f32.mrb[0].mxu0
    %v1091 = vadd.f32 %v1023, %v1090
    %v1092 = vpop.f32.mrb[0].mxu0
    %1093 = vdwg.mxu0
    %v1094 = vxor.u32 %v1091, 2147483648
    %v1095 = vmul.f32 %v1094, 1.442695
    %v1096 = vpow.pop %v1095
    %v1097 = vadd.f32 %v1096, 1.0
    %v1098 = vrcp.pop %v1097
    %v1099 = vmul.f32 1.0, %v1098
    %v1100 = vlaneseq
    %v1101 = vshrl.u32 %v1100, 7
    %v1102 = vsub.s32 0, %v1101
    %v1103 = vrot.slane %v1099, %v1102
    %v1104 = vlaneseq
    %v1105 = vshrl.u32 %v1104, 7
    %v1106 = vsub.s32 1, %v1105
    %v1107 = vrot.slane %v1099, %v1106
    %v1108 = vmul.f32 %v877, %v1103
    %v1109 = vmul.f32 %v878, %v1107
    %s1110 = scalar_lea.vmem [#allocation5], 96
    %v1111 = vld [vmem:[%s1110] sm:$0xff]
    %v1112 = vld [vmem:[%s1110 + $0x8] sm:$0xff]
    %v1113 = vld [vmem:[%s1110 + $0x10] sm:$0xff]
    %v1114 = vld [vmem:[%s1110 + $0x18] sm:$0xff]
    %v1115 = vld [vmem:[%s1110 + $0x20] sm:$0xff]
    %v1116 = vld [vmem:[%s1110 + $0x28] sm:$0xff]
    %v1117 = vld [vmem:[%s1110 + $0x30] sm:$0xff]
    %v1118 = vld [vmem:[%s1110 + $0x38] sm:$0xff]
    %v1119 = vld [vmem:[%s1110 + $0x40] sm:$0xff]
    %v1120 = vld [vmem:[%s1110 + $0x48] sm:$0xff]
    %v1121 = vld [vmem:[%s1110 + $0x50] sm:$0xff]
    %v1122 = vld [vmem:[%s1110 + $0x58] sm:$0xff]
    %s1123 = scalar_lea.vmem [#allocation7], 512
    %v1124 = vld [vmem:[%s1123] sm:$0xff]
    %v1125 = vld [vmem:[%s1123 + $0x8] sm:$0xff]
    %v1126 = vld [vmem:[%s1123 + $0x10] sm:$0xff]
    %v1127 = vld [vmem:[%s1123 + $0x18] sm:$0xff]
    %v1128 = vld [vmem:[%s1123 + $0x20] sm:$0xff]
    %v1129 = vld [vmem:[%s1123 + $0x28] sm:$0xff]
    %v1130 = vld [vmem:[%s1123 + $0x30] sm:$0xff]
    %v1131 = vld [vmem:[%s1123 + $0x38] sm:$0xff]
    %v1132 = vld [vmem:[%s1123 + $0x40] sm:$0xff]
    %v1133 = vld [vmem:[%s1123 + $0x48] sm:$0xff]
    %v1134 = vld [vmem:[%s1123 + $0x50] sm:$0xff]
    %v1135 = vld [vmem:[%s1123 + $0x58] sm:$0xff]
    %v1136 = vld [vmem:[%s1123 + $0x60] sm:$0xff]
    %v1137 = vld [vmem:[%s1123 + $0x68] sm:$0xff]
    %v1138 = vld [vmem:[%s1123 + $0x70] sm:$0xff]
    %v1139 = vld [vmem:[%s1123 + $0x78] sm:$0xff]
    %v1140 = vld [vmem:[%s1123 + $0x80] sm:$0xff]
    %v1141 = vld [vmem:[%s1123 + $0x88] sm:$0xff]
    %v1142 = vld [vmem:[%s1123 + $0x90] sm:$0xff]
    %v1143 = vld [vmem:[%s1123 + $0x98] sm:$0xff]
    %v1144 = vld [vmem:[%s1123 + $0xa0] sm:$0xff]
    %v1145 = vld [vmem:[%s1123 + $0xa8] sm:$0xff]
    %v1146 = vld [vmem:[%s1123 + $0xb0] sm:$0xff]
    %v1147 = vld [vmem:[%s1123 + $0xb8] sm:$0xff]
    %v1148 = vld [vmem:[%s1123 + $0xc0] sm:$0xff]
    %v1149 = vld [vmem:[%s1123 + $0xc8] sm:$0xff]
    %v1150 = vld [vmem:[%s1123 + $0xd0] sm:$0xff]
    %v1151 = vld [vmem:[%s1123 + $0xd8] sm:$0xff]
    %v1152 = vld [vmem:[%s1123 + $0xe0] sm:$0xff]
    %v1153 = vld [vmem:[%s1123 + $0xe8] sm:$0xff]
    %v1154 = vld [vmem:[%s1123 + $0xf0] sm:$0xff]
    %v1155 = vld [vmem:[%s1123 + $0xf8] sm:$0xff]
    %v1156 = vld [vmem:[%s1123 + $0x100] sm:$0xff]
    %v1157 = vld [vmem:[%s1123 + $0x108] sm:$0xff]
    %v1158 = vld [vmem:[%s1123 + $0x110] sm:$0xff]
    %v1159 = vld [vmem:[%s1123 + $0x118] sm:$0xff]
    %v1160 = vld [vmem:[%s1123 + $0x120] sm:$0xff]
    %v1161 = vld [vmem:[%s1123 + $0x128] sm:$0xff]
    %v1162 = vld [vmem:[%s1123 + $0x130] sm:$0xff]
    %v1163 = vld [vmem:[%s1123 + $0x138] sm:$0xff]
    %v1164 = vld [vmem:[%s1123 + $0x140] sm:$0xff]
    %v1165 = vld [vmem:[%s1123 + $0x148] sm:$0xff]
    %v1166 = vld [vmem:[%s1123 + $0x150] sm:$0xff]
    %v1167 = vld [vmem:[%s1123 + $0x158] sm:$0xff]
    %v1168 = vld [vmem:[%s1123 + $0x160] sm:$0xff]
    %v1169 = vld [vmem:[%s1123 + $0x168] sm:$0xff]
    %v1170 = vld [vmem:[%s1123 + $0x170] sm:$0xff]
    %v1171 = vld [vmem:[%s1123 + $0x178] sm:$0xff]
    %v1172 = vld [vmem:[%s1123 + $0x180] sm:$0xff]
    %v1173 = vld [vmem:[%s1123 + $0x188] sm:$0xff]
    %v1174 = vld [vmem:[%s1123 + $0x190] sm:$0xff]
    %v1175 = vld [vmem:[%s1123 + $0x198] sm:$0xff]
    %v1176 = vld [vmem:[%s1123 + $0x1a0] sm:$0xff]
    %v1177 = vld [vmem:[%s1123 + $0x1a8] sm:$0xff]
    %v1178 = vld [vmem:[%s1123 + $0x1b0] sm:$0xff]
    %v1179 = vld [vmem:[%s1123 + $0x1b8] sm:$0xff]
    %v1180 = vld [vmem:[%s1123 + $0x1c0] sm:$0xff]
    %v1181 = vld [vmem:[%s1123 + $0x1c8] sm:$0xff]
    %v1182 = vld [vmem:[%s1123 + $0x1d0] sm:$0xff]
    %v1183 = vld [vmem:[%s1123 + $0x1d8] sm:$0xff]
    %v1184 = vld [vmem:[%s1123 + $0x1e0] sm:$0xff]
    %v1185 = vld [vmem:[%s1123 + $0x1e8] sm:$0xff]
    %v1186 = vld [vmem:[%s1123 + $0x1f0] sm:$0xff]
    %v1187 = vld [vmem:[%s1123 + $0x1f8] sm:$0xff]
    %v1188 = vld [vmem:[%s3 + $0x12] sm:$0x1]
    %v1189 = vld [vmem:[%s3 + $0x13] sm:$0x1]
    %v1190 = vsel %vm169, %v1108, 0.0
    %1191 = vadd.xlane.f32.xlu0 %v1190
    %v1192 = vpop.xlane.xlu0 %1191
    %v1193 = vsel %vm169, %v1109, 0.0
    %1194 = vadd.xlane.f32.xlu0 %v1193
    %v1195 = vpop.xlane.xlu0 %1194
    %v1196 = vmul.f32 %v1192, %v176
    %v1197 = vmul.f32 %v1195, %v176
    %v1198 = vsub.f32 %v1108, %v1196
    %v1199 = vsub.f32 %v1109, %v1197
    %v1200 = vmul.f32 %v1198, %v1198
    %v1201 = vmul.f32 %v1199, %v1199
    %v1202 = vsel %vm169, %v1200, 0.0
    %1203 = vadd.xlane.f32.xlu0 %v1202
    %v1204 = vpop.xlane.xlu0 %1203
    %v1205 = vsel %vm169, %v1201, 0.0
    %1206 = vadd.xlane.f32.xlu0 %v1205
    %v1207 = vpop.xlane.xlu0 %1206
    %v1208 = vmul.f32 %v1204, %v176
    %v1209 = vmul.f32 %v1207, %v176
    %v1210 = vadd.f32 %v1208, 1e-05
    %v1211 = vadd.f32 %v1209, 1e-05
    %v1212 = vrsqrt.pop %v1210
    %v1213 = vrsqrt.pop %v1211
    %v1214 = vmul.f32 %v1198, %v1212
    %v1215 = vmul.f32 %v1199, %v1213
    %v1216 = vlaneseq
    %v1217 = vshrl.u32 %v1216, 7
    %v1218 = vsub.s32 0, %v1217
    %v1219 = vrot.slane %v1188, %v1218
    %v1220 = vmul.f32 %v1214, %v1219
    %v1221 = vmul.f32 %v1215, %v1219
    %v1222 = vlaneseq
    %v1223 = vshrl.u32 %v1222, 7
    %v1224 = vsub.s32 0, %v1223
    %v1225 = vrot.slane %v1189, %v1224
    %v1226 = vadd.f32 %v1220, %v1225
    %v1227 = vadd.f32 %v1221, %v1225
    %v1228 = vsel %vm169, %v1226, 0.0
    %v1229 = vrot.slane %v1228, 4
    %v1230 = vadd.f32 %v1228, %v1229
    %v1231 = vrot.slane %v1230, 2
    %v1232 = vadd.f32 %v1230, %v1231
    %v1233 = vrot.slane %v1232, 1
    %v1234 = vadd.f32 %v1232, %v1233
    %v1235 = vmul.f32 %v1234, %v216
    %v1236 = vsel %vm169, %v1227, 0.0
    %v1237 = vrot.slane %v1236, 4
    %v1238 = vadd.f32 %v1236, %v1237
    %v1239 = vrot.slane %v1238, 2
    %v1240 = vadd.f32 %v1238, %v1239
    %v1241 = vrot.slane %v1240, 1
    %v1242 = vadd.f32 %v1240, %v1241
    %v1243 = vmul.f32 %v1242, %v216
    %v1244 = vsel %vm226, %v1235, %v1243
    %v1245 = vld [vmem:[%s3 + $0x17] sm:$0x1]
    %v1246 = vlaneseq
    %v1247 = vshrl.u32 %v1246, 7
    %v1248 = vsub.s32 0, %v1247
    %v1249 = vrot.slane %v1245, %v1248
    %v1251 = vsel %vm169, %v1244, 0
    %1253 = vmatprep.subr.mxu0 0.0
    %1254 = vmatpush1.msra.mxu0 %v1111
    %1255 = vmatprep.subr.mxu0 0.0
    %1256 = vmatpush1.msra.mxu0 %v1114
    %1257 = vmatprep.subr.mxu0 0.0
    %1258 = vmatpush1.msra.mxu0 %v1117
    %1259 = vmatprep.subr.mxu0 0.0
    %1260 = vmatpush1.msra.mxu0 %v1120
    %1261 = vmatprep.subr.mxu0 0.0
    %1262 = vmatpush1.msra.mxu0 0.0
    %1263 = vmatprep.subr.mxu0 0.0
    %1264 = vmatpush1.msra.mxu0 0.0
    %1265 = vmatprep.subr.mxu0 0.0
    %1266 = vmatpush1.msra.mxu0 0.0
    %1267 = vmatprep.subr.mxu0 0.0
    %1268 = vmatpush1.msra.mxu0 0.0
    %1269 = vmatprep.subr.mxu0 0.0
    %1270 = vmatpush1.msra.mxu0 0.0
    %1271 = vmatprep.subr.mxu0 0.0
    %1272 = vmatpush1.msra.mxu0 0.0
    %1273 = vmatprep.subr.mxu0 0.0
    %1274 = vmatpush1.msra.mxu0 0.0
    %1275 = vmatprep.subr.mxu0 0.0
    %1276 = vmatpush1.msra.mxu0 0.0
    %1277 = vmatprep.subr.mxu0 0.0
    %1278 = vmatpush1.msra.mxu0 0.0
    %1279 = vmatprep.subr.mxu0 0.0
    %1280 = vmatpush1.msra.mxu0 0.0
    %1281 = vmatprep.subr.mxu0 0.0
    %1282 = vmatpush1.msra.mxu0 0.0
    %1283 = vmatprep.subr.mxu0 0.0
    %1284 = vmatpush1.msra.mxu0 0.0
    %1285 = vmatprep.subr.mxu0 0.0
    %1286 = vmatpush1.msra.mxu0 0.0
    %1287 = vmatprep.subr.mxu0 0.0
    %1288 = vmatpush1.msra.mxu0 0.0
    %1289 = vmatprep.subr.mxu0 0.0
    %1290 = vmatpush1.msra.mxu0 0.0
    %1291 = vmatprep.subr.mxu0 0.0
    %1292 = vmatpush1.msra.mxu0 0.0
    %1293 = vmatprep.subr.mxu0 0.0
    %1294 = vmatpush1.msra.mxu0 0.0
    %1295 = vmatprep.subr.mxu0 0.0
    %1296 = vmatpush1.msra.mxu0 0.0
    %1297 = vmatprep.subr.mxu0 0.0
    %1298 = vmatpush1.msra.mxu0 0.0
    %1299 = vmatprep.subr.mxu0 0.0
    %1300 = vmatpush1.msra.mxu0 0.0
    %1301 = vmatprep.subr.mxu0 0.0
    %1302 = vmatpush1.msra.mxu0 0.0
    %1303 = vmatprep.subr.mxu0 0.0
    %1304 = vmatpush1.msra.mxu0 0.0
    %1305 = vmatprep.subr.mxu0 0.0
    %1306 = vmatpush1.msra.mxu0 0.0
    %1307 = vmatprep.subr.mxu0 0.0
    %1308 = vmatpush1.msra.mxu0 0.0
    %1309 = vmatprep.subr.mxu0 0.0
    %1310 = vmatpush1.msra.mxu0 0.0
    %1311 = vmatprep.subr.mxu0 0.0
    %1312 = vmatpush1.msra.mxu0 0.0
    %1313 = vmatprep.subr.mxu0 0.0
    %1314 = vmatpush1.msra.mxu0 0.0
    %1315 = vmatprep.subr.mxu0 0.0
    %1316 = vmatpush1.msra.mxu0 0.0
    %1317 = vmatprep.mubr.f32.mxu0 0.0
    %1318 = vmatmul.mubr.f32.gmra.mrb[0].mxu0 %v1251
    %v1319 = vpop.f32.mrb[0].mxu0
    %v1320 = vadd.f32 %v1249, %v1319
    %v1321 = vpop.f32.mrb[0].mxu0
    %1322 = vdwg.mxu0
    %v1323 = vmul.f32 %v1320, 0.5
    %v1324 = vmul.f32 %v1320, 0.70710677
    %v1325 = verf.f32.pop %v1324
    %v1326 = vadd.f32 %v1325, 1.0
    %v1327 = vmul.f32 %v1323, %v1326
    %1328 = vmatprep.subr.mxu0 %v1125
    %1329 = vmatpush1.msra.mxu0 %v1124
    %1330 = vmatprep.subr.mxu0 %v1129
    %1331 = vmatpush1.msra.mxu0 %v1128
    %1332 = vmatprep.subr.mxu0 %v1133
    %1333 = vmatpush1.msra.mxu0 %v1132
    %1334 = vmatprep.subr.mxu0 %v1137
    %1335 = vmatpush1.msra.mxu0 %v1136
    %1336 = vmatprep.subr.mxu0 %v1141
    %1337 = vmatpush1.msra.mxu0 %v1140
    %1338 = vmatprep.subr.mxu0 %v1145
    %1339 = vmatpush1.msra.mxu0 %v1144
    %1340 = vmatprep.subr.mxu0 %v1149
    %1341 = vmatpush1.msra.mxu0 %v1148
    %1342 = vmatprep.subr.mxu0 %v1153
    %1343 = vmatpush1.msra.mxu0 %v1152
    %1344 = vmatprep.subr.mxu0 %v1157
    %1345 = vmatpush1.msra.mxu0 %v1156
    %1346 = vmatprep.subr.mxu0 %v1161
    %1347 = vmatpush1.msra.mxu0 %v1160
    %1348 = vmatprep.subr.mxu0 %v1165
    %1349 = vmatpush1.msra.mxu0 %v1164
    %1350 = vmatprep.subr.mxu0 %v1169
    %1351 = vmatpush1.msra.mxu0 %v1168
    %1352 = vmatprep.subr.mxu0 %v1173
    %1353 = vmatpush1.msra.mxu0 %v1172
    %1354 = vmatprep.subr.mxu0 %v1177
    %1355 = vmatpush1.msra.mxu0 %v1176
    %1356 = vmatprep.subr.mxu0 %v1181
    %1357 = vmatpush1.msra.mxu0 %v1180
    %1358 = vmatprep.subr.mxu0 %v1185
    %1359 = vmatpush1.msra.mxu0 %v1184
    %1360 = vmatprep.subr.mxu0 0.0
    %1361 = vmatpush1.msra.mxu0 0.0
    %1362 = vmatprep.subr.mxu0 0.0
    %1363 = vmatpush1.msra.mxu0 0.0
    %1364 = vmatprep.subr.mxu0 0.0
    %1365 = vmatpush1.msra.mxu0 0.0
    %1366 = vmatprep.subr.mxu0 0.0
    %1367 = vmatpush1.msra.mxu0 0.0
    %1368 = vmatprep.subr.mxu0 0.0
    %1369 = vmatpush1.msra.mxu0 0.0
    %1370 = vmatprep.subr.mxu0 0.0
    %1371 = vmatpush1.msra.mxu0 0.0
    %1372 = vmatprep.subr.mxu0 0.0
    %1373 = vmatpush1.msra.mxu0 0.0
    %1374 = vmatprep.subr.mxu0 0.0
    %1375 = vmatpush1.msra.mxu0 0.0
    %1376 = vmatprep.subr.mxu0 0.0
    %1377 = vmatpush1.msra.mxu0 0.0
    %1378 = vmatprep.subr.mxu0 0.0
    %1379 = vmatpush1.msra.mxu0 0.0
    %1380 = vmatprep.subr.mxu0 0.0
    %1381 = vmatpush1.msra.mxu0 0.0
    %1382 = vmatprep.subr.mxu0 0.0
    %1383 = vmatpush1.msra.mxu0 0.0
    %1384 = vmatprep.subr.mxu0 0.0
    %1385 = vmatpush1.msra.mxu0 0.0
    %1386 = vmatprep.subr.mxu0 0.0
    %1387 = vmatpush1.msra.mxu0 0.0
    %1388 = vmatprep.subr.mxu0 0.0
    %1389 = vmatpush1.msra.mxu0 0.0
    %1390 = vmatprep.subr.mxu0 0.0
    %1391 = vmatpush1.msra.mxu0 0.0
    %1392 = vmatprep.mubr.f32.mxu0 0.0
    %1393 = vmatmul.mubr.f32.gmra.mrb[0].mxu0 %v1327
    %v1394 = vpop.f32.mrb[0].mxu0
    %v1395 = vadd.f32 0.0, %v1394
    %v1396 = vpop.f32.mrb[0].mxu0
    %v1397 = vadd.f32 0.0, %v1396
    %1398 = vdwg.mxu0
    %v1399 = vld [vmem:[%s3 + $0x18] sm:$0x1]
    %v1400 = vlaneseq
    %v1401 = vshrl.u32 %v1400, 7
    %v1402 = vsub.s32 0, %v1401
    %v1403 = vrot.slane %v1399, %v1402
    %v1404 = vadd.f32 %v1395, %v1403
    %v1405 = vld [vmem:[%s3 + $0x19] sm:$0x1]
    %v1406 = vlaneseq
    %v1407 = vshrl.u32 %v1406, 7
    %v1408 = vsub.s32 0, %v1407
    %v1409 = vrot.slane %v1405, %v1408
    %v1410 = vadd.f32 %v1397, %v1409
    %v1411 = vld [vmem:[%s3 + $0x14] sm:$0x1]
    %v1412 = vadd.f32 %v1404, 1.0
    %v1413 = vlaneseq
    %v1414 = vshrl.u32 %v1413, 7
    %v1415 = vsub.s32 0, %v1414
    %v1416 = vrot.slane %v1411, %v1415
    %v1417 = vmul.f32 %v1416, %v1412
    %v1418 = vld [vmem:[%s3 + $0x15] sm:$0x1]
    %v1419 = vlaneseq
    %v1420 = vshrl.u32 %v1419, 7
    %v1421 = vsub.s32 0, %v1420
    %v1422 = vrot.slane %v1418, %v1421
    %v1423 = vadd.f32 %v1422, %v1410
    %1424 = vmatprep.subr.mxu0 0.0
    %1425 = vmatpush1.msra.mxu0 %v1226
    %1426 = vmatprep.subr.mxu0 0.0
    %1427 = vmatpush1.msra.mxu0 %v1227
    %1428 = vmatprep.subr.mxu0 0.0
    %1429 = vmatpush1.msra.mxu0 0.0
    %1430 = vmatprep.subr.mxu0 0.0
    %1431 = vmatpush1.msra.mxu0 0.0
    %1432 = vmatprep.subr.mxu0 0.0
    %1433 = vmatpush1.msra.mxu0 0.0
    %1434 = vmatprep.subr.mxu0 0.0
    %1435 = vmatpush1.msra.mxu0 0.0
    %1436 = vmatprep.subr.mxu0 0.0
    %1437 = vmatpush1.msra.mxu0 0.0
    %1438 = vmatprep.subr.mxu0 0.0
    %1439 = vmatpush1.msra.mxu0 0.0
    %1440 = vmatprep.subr.mxu0 0.0
    %1441 = vmatpush1.msra.mxu0 0.0
    %1442 = vmatprep.subr.mxu0 0.0
    %1443 = vmatpush1.msra.mxu0 0.0
    %1444 = vmatprep.subr.mxu0 0.0
    %1445 = vmatpush1.msra.mxu0 0.0
    %1446 = vmatprep.subr.mxu0 0.0
    %1447 = vmatpush1.msra.mxu0 0.0
    %1448 = vmatprep.subr.mxu0 0.0
    %1449 = vmatpush1.msra.mxu0 0.0
    %1450 = vmatprep.subr.mxu0 0.0
    %1451 = vmatpush1.msra.mxu0 0.0
    %1452 = vmatprep.subr.mxu0 0.0
    %1453 = vmatpush1.msra.mxu0 0.0
    %1454 = vmatprep.subr.mxu0 0.0
    %1455 = vmatpush1.msra.mxu0 0.0
    %1456 = vmatprep.subr.mxu0 0.0
    %1457 = vmatpush1.msra.mxu0 0.0
    %1458 = vmatprep.subr.mxu0 0.0
    %1459 = vmatpush1.msra.mxu0 0.0
    %1460 = vmatprep.subr.mxu0 0.0
    %1461 = vmatpush1.msra.mxu0 0.0
    %1462 = vmatprep.subr.mxu0 0.0
    %1463 = vmatpush1.msra.mxu0 0.0
    %1464 = vmatprep.subr.mxu0 0.0
    %1465 = vmatpush1.msra.mxu0 0.0
    %1466 = vmatprep.subr.mxu0 0.0
    %1467 = vmatpush1.msra.mxu0 0.0
    %1468 = vmatprep.subr.mxu0 0.0
    %1469 = vmatpush1.msra.mxu0 0.0
    %1470 = vmatprep.subr.mxu0 0.0
    %1471 = vmatpush1.msra.mxu0 0.0
    %1472 = vmatprep.subr.mxu0 0.0
    %1473 = vmatpush1.msra.mxu0 0.0
    %1474 = vmatprep.subr.mxu0 0.0
    %1475 = vmatpush1.msra.mxu0 0.0
    %1476 = vmatprep.subr.mxu0 0.0
    %1477 = vmatpush1.msra.mxu0 0.0
    %1478 = vmatprep.subr.mxu0 0.0
    %1479 = vmatpush1.msra.mxu0 0.0
    %1480 = vmatprep.subr.mxu0 0.0
    %1481 = vmatpush1.msra.mxu0 0.0
    %1482 = vmatprep.subr.mxu0 0.0
    %1483 = vmatpush1.msra.mxu0 0.0
    %1484 = vmatprep.subr.mxu0 0.0
    %1485 = vmatpush1.msra.mxu0 0.0
    %1486 = vmatprep.subr.mxu0 0.0
    %1487 = vmatpush1.msra.mxu0 0.0
    %1488 = vmatprep.mubr.f32.mxu0 0.0
    %1489 = vmatmul.mubr.f32.gmra.mrb[0].mxu0 %v409
    %v1490 = vpop.f32.mrb[0].mxu0
    %v1491 = vadd.f32 0.0, %v1490
    %v1492 = vpop.f32.mrb[0].mxu0
    %1493 = vmatprep.mubr.f32.mxu0 0.0
    %1494 = vmatmul.mubr.f32.gmra.mrb[0].mxu0 %v412
    %v1495 = vpop.f32.mrb[0].mxu0
    %v1496 = vadd.f32 0.0, %v1495
    %v1497 = vpop.f32.mrb[0].mxu0
    %1498 = vmatprep.mubr.f32.mxu0 0.0
    %1499 = vmatmul.mubr.f32.gmra.mrb[0].mxu0 %v415
    %v1500 = vpop.f32.mrb[0].mxu0
    %v1501 = vadd.f32 0.0, %v1500
    %v1502 = vpop.f32.mrb[0].mxu0
    %1503 = vmatprep.mubr.f32.mxu0 0.0
    %1504 = vmatmul.mubr.f32.gmra.mrb[0].mxu0 %v418
    %v1505 = vpop.f32.mrb[0].mxu0
    %v1506 = vadd.f32 0.0, %v1505
    %v1507 = vpop.f32.mrb[0].mxu0
    %1508 = vdwg.mxu0
    %v1509 = vlaneseq
    %v1510 = vshrl.u32 %v1509, 7
    %v1511 = vsub.s32 0, %v1510
    %v1512 = vrot.slane %v1417, %v1511
    %v1513 = vlaneseq
    %v1514 = vshrl.u32 %v1513, 7
    %v1515 = vsub.s32 1, %v1514
    %v1516 = vrot.slane %v1417, %v1515
    %v1517 = vlaneseq
    %v1518 = vshrl.u32 %v1517, 7
    %v1519 = vsub.s32 0, %v1518
    %v1520 = vrot.slane %v1423, %v1519
    %v1521 = vlaneseq
    %v1522 = vshrl.u32 %v1521, 7
    %v1523 = vsub.s32 1, %v1522
    %v1524 = vrot.slane %v1423, %v1523
    %v1525 = vmul.f32 %v1491, %v1512
    %v1526 = vmul.f32 %v1496, %v1516
    %v1527 = vmul.f32 %v1501, %v1512
    %v1528 = vmul.f32 %v1506, %v1516
    %v1529 = vadd.f32 %v1525, %v1520
    %v1530 = vadd.f32 %v1526, %v1524
    %v1531 = vadd.f32 %v1527, 0.0
    %v1532 = vadd.f32 %v1528, 0.0
    %v1533 = vmul.f32 %v1529, %v1529
    %v1534 = vmul.f32 %v1530, %v1530
    %v1535 = vmul.f32 %v1531, %v1531
    %v1536 = vmul.f32 %v1532, %v1532
    %v1537 = vadd.f32 %v1533, %v1535
    %v1538 = vadd.f32 %v1534, %v1536
    %v1539 = vadd.f32 %v1537, 1e-30
    %v1540 = vadd.f32 %v1538, 1e-30
    %v1541 = vrsqrt.pop %v1539
    %v1542 = vrsqrt.pop %v1540
    %v1543 = vmul.f32 %v1537, %v1541
    %v1544 = vmul.f32 %v1538, %v1542
    %v1545 = vld [vmem:[%s3 + $0x16] sm:$0x1]
    %v1546 = vlaneseq
    %v1547 = vshrl.u32 %v1546, 7
    %v1548 = vsub.s32 0, %v1547
    %v1549 = vrot.slane %v1545, %v1548
    %v1550 = vadd.f32 %v1543, %v1549
    %v1551 = vadd.f32 %v1544, %v1549
    %v1552 = vmax.f32 %v1550, 0.0
    %v1553 = vmax.f32 %v1551, 0.0
    %vm1554 = vcmp.gt.f32.partialorder %v1537, 0.0
    %vm1555 = vcmp.gt.f32.partialorder %v1538, 0.0
    %v1556 = vmul.f32 %v1529, %v1541
    %v1557 = vmul.f32 %v1530, %v1542
    %v1558 = vmul.f32 %v1531, %v1541
    %v1559 = vmul.f32 %v1532, %v1542
    %v1560 = vsel %vm1554, %v1556, %v87
    %v1561 = vsel %vm1555, %v1557, %v88
    %v1562 = vsel %vm1554, %v1558, %v89
    %v1563 = vsel %vm1555, %v1559, %v90
    %v1564 = vmul.f32 %v1552, %v1560
    %v1565 = vmul.f32 %v1553, %v1561
    %v1566 = vmul.f32 %v1552, %v1562
    %v1567 = vmul.f32 %v1553, %v1563
    %1568 = vmatprep.subr.mxu0 0.0
    %1569 = vmatpush1.msra.mxu0 %v1564
    %1570 = vmatprep.subr.mxu0 0.0
    %1571 = vmatpush1.msra.mxu0 %v1565
    %1572 = vmatprep.subr.mxu0 0.0
    %1573 = vmatpush1.msra.mxu0 %v1566
    %1574 = vmatprep.subr.mxu0 0.0
    %1575 = vmatpush1.msra.mxu0 %v1567
    %1576 = vmatprep.subr.mxu0 0.0
    %1577 = vmatpush1.msra.mxu0 0.0
    %1578 = vmatprep.subr.mxu0 0.0
    %1579 = vmatpush1.msra.mxu0 0.0
    %1580 = vmatprep.subr.mxu0 0.0
    %1581 = vmatpush1.msra.mxu0 0.0
    %1582 = vmatprep.subr.mxu0 0.0
    %1583 = vmatpush1.msra.mxu0 0.0
    %1584 = vmatprep.subr.mxu0 0.0
    %1585 = vmatpush1.msra.mxu0 0.0
    %1586 = vmatprep.subr.mxu0 0.0
    %1587 = vmatpush1.msra.mxu0 0.0
    %1588 = vmatprep.subr.mxu0 0.0
    %1589 = vmatpush1.msra.mxu0 0.0
    %1590 = vmatprep.subr.mxu0 0.0
    %1591 = vmatpush1.msra.mxu0 0.0
    %1592 = vmatprep.subr.mxu0 0.0
    %1593 = vmatpush1.msra.mxu0 0.0
    %1594 = vmatprep.subr.mxu0 0.0
    %1595 = vmatpush1.msra.mxu0 0.0
    %1596 = vmatprep.subr.mxu0 0.0
    %1597 = vmatpush1.msra.mxu0 0.0
    %1598 = vmatprep.subr.mxu0 0.0
    %1599 = vmatpush1.msra.mxu0 0.0
    %1600 = vmatprep.subr.mxu0 0.0
    %1601 = vmatpush1.msra.mxu0 0.0
    %1602 = vmatprep.subr.mxu0 0.0
    %1603 = vmatpush1.msra.mxu0 0.0
    %1604 = vmatprep.subr.mxu0 0.0
    %1605 = vmatpush1.msra.mxu0 0.0
    %1606 = vmatprep.subr.mxu0 0.0
    %1607 = vmatpush1.msra.mxu0 0.0
    %1608 = vmatprep.subr.mxu0 0.0
    %1609 = vmatpush1.msra.mxu0 0.0
    %1610 = vmatprep.subr.mxu0 0.0
    %1611 = vmatpush1.msra.mxu0 0.0
    %1612 = vmatprep.subr.mxu0 0.0
    %1613 = vmatpush1.msra.mxu0 0.0
    %1614 = vmatprep.subr.mxu0 0.0
    %1615 = vmatpush1.msra.mxu0 0.0
    %1616 = vmatprep.subr.mxu0 0.0
    %1617 = vmatpush1.msra.mxu0 0.0
    %1618 = vmatprep.subr.mxu0 0.0
    %1619 = vmatpush1.msra.mxu0 0.0
    %1620 = vmatprep.subr.mxu0 0.0
    %1621 = vmatpush1.msra.mxu0 0.0
    %1622 = vmatprep.subr.mxu0 0.0
    %1623 = vmatpush1.msra.mxu0 0.0
    %1624 = vmatprep.subr.mxu0 0.0
    %1625 = vmatpush1.msra.mxu0 0.0
    %1626 = vmatprep.subr.mxu0 0.0
    %1627 = vmatpush1.msra.mxu0 0.0
    %1628 = vmatprep.subr.mxu0 0.0
    %1629 = vmatpush1.msra.mxu0 0.0
    %1630 = vmatprep.subr.mxu0 0.0
    %1631 = vmatpush1.msra.mxu0 0.0
    %1632 = vmatprep.mubr.f32.mxu0 0.0
    %1633 = vmatmul.mubr.f32.gmra.mrb[0].mxu0 %v565
    %v1634 = vpop.f32.mrb[0].mxu0
    %v1635 = vadd.f32 0.0, %v1634
    %v1636 = vpop.f32.mrb[0].mxu0
    %1637 = vmatprep.mubr.f32.mxu0 0.0
    %1638 = vmatmul.mubr.f32.gmra.mrb[0].mxu0 %v568
    %v1639 = vpop.f32.mrb[0].mxu0
    %v1640 = vadd.f32 0.0, %v1639
    %v1641 = vpop.f32.mrb[0].mxu0
    %1642 = vdwg.mxu0
    %v1643 = vld [vmem:[%s3 + $0x1e] sm:$0x1]
    %v1644 = vlaneseq
    %v1645 = vshrl.u32 %v1644, 7
    %v1646 = vsub.s32 0, %v1645
    %v1647 = vrot.slane %v1643, %v1646
    %v1648 = vmul.f32 %v1647, %v1635
    %v1649 = vmul.f32 %v1647, %v1640
    %v1650 = vadd.f32 %v1108, %v1648
    %v1651 = vadd.f32 %v1109, %v1649
    %v1652 = vld [vmem:[%s3 + $0x1a] sm:$0x1]
    %v1653 = vld [vmem:[%s3 + $0x1b] sm:$0x1]
    %v1654 = vsel %vm169, %v1650, 0.0
    %1655 = vadd.xlane.f32.xlu0 %v1654
    %v1656 = vpop.xlane.xlu0 %1655
    %v1657 = vsel %vm169, %v1651, 0.0
    %1658 = vadd.xlane.f32.xlu0 %v1657
    %v1659 = vpop.xlane.xlu0 %1658
    %v1660 = vmul.f32 %v1656, %v176
    %v1661 = vmul.f32 %v1659, %v176
    %v1662 = vsub.f32 %v1650, %v1660
    %v1663 = vsub.f32 %v1651, %v1661
    %v1664 = vmul.f32 %v1662, %v1662
    %v1665 = vmul.f32 %v1663, %v1663
    %v1666 = vsel %vm169, %v1664, 0.0
    %1667 = vadd.xlane.f32.xlu0 %v1666
    %v1668 = vpop.xlane.xlu0 %1667
    %v1669 = vsel %vm169, %v1665, 0.0
    %1670 = vadd.xlane.f32.xlu0 %v1669
    %v1671 = vpop.xlane.xlu0 %1670
    %v1672 = vmul.f32 %v1668, %v176
    %v1673 = vmul.f32 %v1671, %v176
    %v1674 = vadd.f32 %v1672, 1e-05
    %v1675 = vadd.f32 %v1673, 1e-05
    %v1676 = vrsqrt.pop %v1674
    %v1677 = vrsqrt.pop %v1675
    %v1678 = vmul.f32 %v1662, %v1676
    %v1679 = vmul.f32 %v1663, %v1677
    %v1680 = vlaneseq
    %v1681 = vshrl.u32 %v1680, 7
    %v1682 = vsub.s32 0, %v1681
    %v1683 = vrot.slane %v1652, %v1682
    %v1684 = vmul.f32 %v1678, %v1683
    %v1685 = vmul.f32 %v1679, %v1683
    %v1686 = vlaneseq
    %v1687 = vshrl.u32 %v1686, 7
    %v1688 = vsub.s32 0, %v1687
    %v1689 = vrot.slane %v1653, %v1688
    %v1690 = vadd.f32 %v1684, %v1689
    %v1691 = vadd.f32 %v1685, %v1689
    %v1692 = vld [vmem:[%s3 + $0x1c] sm:$0x1]
    %v1693 = vlaneseq
    %v1694 = vshrl.u32 %v1693, 7
    %v1695 = vsub.s32 0, %v1694
    %v1696 = vrot.slane %v1692, %v1695
    %v1698 = vsel %vm169, %v1690, 0
    %v1701 = vsel %vm169, %v1691, 0
    %1703 = vmatprep.subr.mxu0 0.0
    %1704 = vmatpush1.msra.mxu0 %v1112
    %1705 = vmatprep.subr.mxu0 0.0
    %1706 = vmatpush1.msra.mxu0 %v1115
    %1707 = vmatprep.subr.mxu0 0.0
    %1708 = vmatpush1.msra.mxu0 %v1118
    %1709 = vmatprep.subr.mxu0 0.0
    %1710 = vmatpush1.msra.mxu0 %v1121
    %1711 = vmatprep.subr.mxu0 0.0
    %1712 = vmatpush1.msra.mxu0 0.0
    %1713 = vmatprep.subr.mxu0 0.0
    %1714 = vmatpush1.msra.mxu0 0.0
    %1715 = vmatprep.subr.mxu0 0.0
    %1716 = vmatpush1.msra.mxu0 0.0
    %1717 = vmatprep.subr.mxu0 0.0
    %1718 = vmatpush1.msra.mxu0 0.0
    %1719 = vmatprep.subr.mxu0 0.0
    %1720 = vmatpush1.msra.mxu0 0.0
    %1721 = vmatprep.subr.mxu0 0.0
    %1722 = vmatpush1.msra.mxu0 0.0
    %1723 = vmatprep.subr.mxu0 0.0
    %1724 = vmatpush1.msra.mxu0 0.0
    %1725 = vmatprep.subr.mxu0 0.0
    %1726 = vmatpush1.msra.mxu0 0.0
    %1727 = vmatprep.subr.mxu0 0.0
    %1728 = vmatpush1.msra.mxu0 0.0
    %1729 = vmatprep.subr.mxu0 0.0
    %1730 = vmatpush1.msra.mxu0 0.0
    %1731 = vmatprep.subr.mxu0 0.0
    %1732 = vmatpush1.msra.mxu0 0.0
    %1733 = vmatprep.subr.mxu0 0.0
    %1734 = vmatpush1.msra.mxu0 0.0
    %1735 = vmatprep.subr.mxu0 0.0
    %1736 = vmatpush1.msra.mxu0 0.0
    %1737 = vmatprep.subr.mxu0 0.0
    %1738 = vmatpush1.msra.mxu0 0.0
    %1739 = vmatprep.subr.mxu0 0.0
    %1740 = vmatpush1.msra.mxu0 0.0
    %1741 = vmatprep.subr.mxu0 0.0
    %1742 = vmatpush1.msra.mxu0 0.0
    %1743 = vmatprep.subr.mxu0 0.0
    %1744 = vmatpush1.msra.mxu0 0.0
    %1745 = vmatprep.subr.mxu0 0.0
    %1746 = vmatpush1.msra.mxu0 0.0
    %1747 = vmatprep.subr.mxu0 0.0
    %1748 = vmatpush1.msra.mxu0 0.0
    %1749 = vmatprep.subr.mxu0 0.0
    %1750 = vmatpush1.msra.mxu0 0.0
    %1751 = vmatprep.subr.mxu0 0.0
    %1752 = vmatpush1.msra.mxu0 0.0
    %1753 = vmatprep.subr.mxu0 0.0
    %1754 = vmatpush1.msra.mxu0 0.0
    %1755 = vmatprep.subr.mxu0 0.0
    %1756 = vmatpush1.msra.mxu0 0.0
    %1757 = vmatprep.subr.mxu0 0.0
    %1758 = vmatpush1.msra.mxu0 0.0
    %1759 = vmatprep.subr.mxu0 0.0
    %1760 = vmatpush1.msra.mxu0 0.0
    %1761 = vmatprep.subr.mxu0 0.0
    %1762 = vmatpush1.msra.mxu0 0.0
    %1763 = vmatprep.subr.mxu0 0.0
    %1764 = vmatpush1.msra.mxu0 0.0
    %1765 = vmatprep.subr.mxu0 0.0
    %1766 = vmatpush1.msra.mxu0 0.0
    %1767 = vmatprep.mubr.f32.mxu0 0.0
    %1768 = vmatmul.mubr.f32.gmra.mrb[0].mxu0 %v1698
    %v1769 = vpop.f32.mrb[0].mxu0
    %v1770 = vadd.f32 %v1696, %v1769
    %v1771 = vpop.f32.mrb[0].mxu0
    %1772 = vmatprep.mubr.f32.mxu0 0.0
    %1773 = vmatmul.mubr.f32.gmra.mrb[0].mxu0 %v1701
    %v1774 = vpop.f32.mrb[0].mxu0
    %v1775 = vadd.f32 %v1696, %v1774
    %v1776 = vpop.f32.mrb[0].mxu0
    %1777 = vdwg.mxu0
    %v1778 = vmul.f32 %v1770, 0.5
    %v1779 = vmul.f32 %v1775, 0.5
    %v1780 = vmul.f32 %v1770, 0.70710677
    %v1781 = vmul.f32 %v1775, 0.70710677
    %v1782 = verf.f32.pop %v1780
    %v1783 = verf.f32.pop %v1781
    %v1784 = vadd.f32 %v1782, 1.0
    %v1785 = vadd.f32 %v1783, 1.0
    %v1786 = vmul.f32 %v1778, %v1784
    %v1787 = vmul.f32 %v1779, %v1785
    %v1788 = vld [vmem:[%s3 + $0x1d] sm:$0x1]
    %v1789 = vlaneseq
    %v1790 = vshrl.u32 %v1789, 7
    %v1791 = vsub.s32 0, %v1790
    %v1792 = vrot.slane %v1788, %v1791
    %1793 = vmatprep.subr.mxu0 0.0
    %1794 = vmatpush1.msra.mxu0 %v1126
    %1795 = vmatprep.subr.mxu0 0.0
    %1796 = vmatpush1.msra.mxu0 %v1130
    %1797 = vmatprep.subr.mxu0 0.0
    %1798 = vmatpush1.msra.mxu0 %v1134
    %1799 = vmatprep.subr.mxu0 0.0
    %1800 = vmatpush1.msra.mxu0 %v1138
    %1801 = vmatprep.subr.mxu0 0.0
    %1802 = vmatpush1.msra.mxu0 %v1142
    %1803 = vmatprep.subr.mxu0 0.0
    %1804 = vmatpush1.msra.mxu0 %v1146
    %1805 = vmatprep.subr.mxu0 0.0
    %1806 = vmatpush1.msra.mxu0 %v1150
    %1807 = vmatprep.subr.mxu0 0.0
    %1808 = vmatpush1.msra.mxu0 %v1154
    %1809 = vmatprep.subr.mxu0 0.0
    %1810 = vmatpush1.msra.mxu0 %v1158
    %1811 = vmatprep.subr.mxu0 0.0
    %1812 = vmatpush1.msra.mxu0 %v1162
    %1813 = vmatprep.subr.mxu0 0.0
    %1814 = vmatpush1.msra.mxu0 %v1166
    %1815 = vmatprep.subr.mxu0 0.0
    %1816 = vmatpush1.msra.mxu0 %v1170
    %1817 = vmatprep.subr.mxu0 0.0
    %1818 = vmatpush1.msra.mxu0 %v1174
    %1819 = vmatprep.subr.mxu0 0.0
    %1820 = vmatpush1.msra.mxu0 %v1178
    %1821 = vmatprep.subr.mxu0 0.0
    %1822 = vmatpush1.msra.mxu0 %v1182
    %1823 = vmatprep.subr.mxu0 0.0
    %1824 = vmatpush1.msra.mxu0 %v1186
    %1825 = vmatprep.subr.mxu0 0.0
    %1826 = vmatpush1.msra.mxu0 0.0
    %1827 = vmatprep.subr.mxu0 0.0
    %1828 = vmatpush1.msra.mxu0 0.0
    %1829 = vmatprep.subr.mxu0 0.0
    %1830 = vmatpush1.msra.mxu0 0.0
    %1831 = vmatprep.subr.mxu0 0.0
    %1832 = vmatpush1.msra.mxu0 0.0
    %1833 = vmatprep.subr.mxu0 0.0
    %1834 = vmatpush1.msra.mxu0 0.0
    %1835 = vmatprep.subr.mxu0 0.0
    %1836 = vmatpush1.msra.mxu0 0.0
    %1837 = vmatprep.subr.mxu0 0.0
    %1838 = vmatpush1.msra.mxu0 0.0
    %1839 = vmatprep.subr.mxu0 0.0
    %1840 = vmatpush1.msra.mxu0 0.0
    %1841 = vmatprep.subr.mxu0 0.0
    %1842 = vmatpush1.msra.mxu0 0.0
    %1843 = vmatprep.subr.mxu0 0.0
    %1844 = vmatpush1.msra.mxu0 0.0
    %1845 = vmatprep.subr.mxu0 0.0
    %1846 = vmatpush1.msra.mxu0 0.0
    %1847 = vmatprep.subr.mxu0 0.0
    %1848 = vmatpush1.msra.mxu0 0.0
    %1849 = vmatprep.subr.mxu0 0.0
    %1850 = vmatpush1.msra.mxu0 0.0
    %1851 = vmatprep.subr.mxu0 0.0
    %1852 = vmatpush1.msra.mxu0 0.0
    %1853 = vmatprep.subr.mxu0 0.0
    %1854 = vmatpush1.msra.mxu0 0.0
    %1855 = vmatprep.subr.mxu0 0.0
    %1856 = vmatpush1.msra.mxu0 0.0
    %1857 = vmatprep.mubr.f32.mxu0 0.0
    %1858 = vmatmul.mubr.f32.gmra.mrb[0].mxu0 %v1786
    %v1859 = vpop.f32.mrb[0].mxu0
    %v1860 = vadd.f32 %v1792, %v1859
    %v1861 = vpop.f32.mrb[0].mxu0
    %1862 = vmatprep.mubr.f32.mxu0 0.0
    %1863 = vmatmul.mubr.f32.gmra.mrb[0].mxu0 %v1787
    %v1864 = vpop.f32.mrb[0].mxu0
    %v1865 = vadd.f32 %v1792, %v1864
    %v1866 = vpop.f32.mrb[0].mxu0
    %1867 = vdwg.mxu0
    %v1868 = vld [vmem:[%s3 + $0x1f] sm:$0x1]
    %v1869 = vlaneseq
    %v1870 = vshrl.u32 %v1869, 7
    %v1871 = vsub.s32 0, %v1870
    %v1872 = vrot.slane %v1868, %v1871
    %v1873 = vmul.f32 %v1872, %v1860
    %v1874 = vmul.f32 %v1872, %v1865
    %v1875 = vadd.f32 %v1650, %v1873
    %v1876 = vadd.f32 %v1651, %v1874
    %v1877 = vld [vmem:[%s3 + $0x20] sm:$0x1]
    %v1878 = vld [vmem:[%s3 + $0x21] sm:$0x1]
    %v1879 = vsel %vm169, %v1875, 0.0
    %1880 = vadd.xlane.f32.xlu0 %v1879
    %v1881 = vpop.xlane.xlu0 %1880
    %v1882 = vsel %vm169, %v1876, 0.0
    %1883 = vadd.xlane.f32.xlu0 %v1882
    %v1884 = vpop.xlane.xlu0 %1883
    %v1885 = vmul.f32 %v1881, %v176
    %v1886 = vmul.f32 %v1884, %v176
    %v1887 = vsub.f32 %v1875, %v1885
    %v1888 = vsub.f32 %v1876, %v1886
    %v1889 = vmul.f32 %v1887, %v1887
    %v1890 = vmul.f32 %v1888, %v1888
    %v1891 = vsel %vm169, %v1889, 0.0
    %1892 = vadd.xlane.f32.xlu0 %v1891
    %v1893 = vpop.xlane.xlu0 %1892
    %v1894 = vsel %vm169, %v1890, 0.0
    %1895 = vadd.xlane.f32.xlu0 %v1894
    %v1896 = vpop.xlane.xlu0 %1895
    %v1897 = vmul.f32 %v1893, %v176
    %v1898 = vmul.f32 %v1896, %v176
    %v1899 = vadd.f32 %v1897, 1e-05
    %v1900 = vadd.f32 %v1898, 1e-05
    %v1901 = vrsqrt.pop %v1899
    %v1902 = vrsqrt.pop %v1900
    %v1903 = vmul.f32 %v1887, %v1901
    %v1904 = vmul.f32 %v1888, %v1902
    %v1905 = vlaneseq
    %v1906 = vshrl.u32 %v1905, 7
    %v1907 = vsub.s32 0, %v1906
    %v1908 = vrot.slane %v1877, %v1907
    %v1909 = vmul.f32 %v1903, %v1908
    %v1910 = vmul.f32 %v1904, %v1908
    %v1911 = vlaneseq
    %v1912 = vshrl.u32 %v1911, 7
    %v1913 = vsub.s32 0, %v1912
    %v1914 = vrot.slane %v1878, %v1913
    %v1915 = vadd.f32 %v1909, %v1914
    %v1916 = vadd.f32 %v1910, %v1914
    %v1917 = vsel %vm169, %v1915, 0.0
    %v1918 = vrot.slane %v1917, 4
    %v1919 = vadd.f32 %v1917, %v1918
    %v1920 = vrot.slane %v1919, 2
    %v1921 = vadd.f32 %v1919, %v1920
    %v1922 = vrot.slane %v1921, 1
    %v1923 = vadd.f32 %v1921, %v1922
    %v1924 = vmul.f32 %v1923, %v216
    %v1925 = vsel %vm169, %v1916, 0.0
    %v1926 = vrot.slane %v1925, 4
    %v1927 = vadd.f32 %v1925, %v1926
    %v1928 = vrot.slane %v1927, 2
    %v1929 = vadd.f32 %v1927, %v1928
    %v1930 = vrot.slane %v1929, 1
    %v1931 = vadd.f32 %v1929, %v1930
    %v1932 = vmul.f32 %v1931, %v216
    %v1933 = vsel %vm226, %v1924, %v1932
    %v1934 = vld [vmem:[%s3 + $0x22] sm:$0x1]
    %v1935 = vlaneseq
    %v1936 = vshrl.u32 %v1935, 7
    %v1937 = vsub.s32 0, %v1936
    %v1938 = vrot.slane %v1934, %v1937
    %v1940 = vsel %vm169, %v1933, 0
    %1942 = vmatprep.subr.mxu0 0.0
    %1943 = vmatpush1.msra.mxu0 %v1113
    %1944 = vmatprep.subr.mxu0 0.0
    %1945 = vmatpush1.msra.mxu0 %v1116
    %1946 = vmatprep.subr.mxu0 0.0
    %1947 = vmatpush1.msra.mxu0 %v1119
    %1948 = vmatprep.subr.mxu0 0.0
    %1949 = vmatpush1.msra.mxu0 %v1122
    %1950 = vmatprep.subr.mxu0 0.0
    %1951 = vmatpush1.msra.mxu0 0.0
    %1952 = vmatprep.subr.mxu0 0.0
    %1953 = vmatpush1.msra.mxu0 0.0
    %1954 = vmatprep.subr.mxu0 0.0
    %1955 = vmatpush1.msra.mxu0 0.0
    %1956 = vmatprep.subr.mxu0 0.0
    %1957 = vmatpush1.msra.mxu0 0.0
    %1958 = vmatprep.subr.mxu0 0.0
    %1959 = vmatpush1.msra.mxu0 0.0
    %1960 = vmatprep.subr.mxu0 0.0
    %1961 = vmatpush1.msra.mxu0 0.0
    %1962 = vmatprep.subr.mxu0 0.0
    %1963 = vmatpush1.msra.mxu0 0.0
    %1964 = vmatprep.subr.mxu0 0.0
    %1965 = vmatpush1.msra.mxu0 0.0
    %1966 = vmatprep.subr.mxu0 0.0
    %1967 = vmatpush1.msra.mxu0 0.0
    %1968 = vmatprep.subr.mxu0 0.0
    %1969 = vmatpush1.msra.mxu0 0.0
    %1970 = vmatprep.subr.mxu0 0.0
    %1971 = vmatpush1.msra.mxu0 0.0
    %1972 = vmatprep.subr.mxu0 0.0
    %1973 = vmatpush1.msra.mxu0 0.0
    %1974 = vmatprep.subr.mxu0 0.0
    %1975 = vmatpush1.msra.mxu0 0.0
    %1976 = vmatprep.subr.mxu0 0.0
    %1977 = vmatpush1.msra.mxu0 0.0
    %1978 = vmatprep.subr.mxu0 0.0
    %1979 = vmatpush1.msra.mxu0 0.0
    %1980 = vmatprep.subr.mxu0 0.0
    %1981 = vmatpush1.msra.mxu0 0.0
    %1982 = vmatprep.subr.mxu0 0.0
    %1983 = vmatpush1.msra.mxu0 0.0
    %1984 = vmatprep.subr.mxu0 0.0
    %1985 = vmatpush1.msra.mxu0 0.0
    %1986 = vmatprep.subr.mxu0 0.0
    %1987 = vmatpush1.msra.mxu0 0.0
    %1988 = vmatprep.subr.mxu0 0.0
    %1989 = vmatpush1.msra.mxu0 0.0
    %1990 = vmatprep.subr.mxu0 0.0
    %1991 = vmatpush1.msra.mxu0 0.0
    %1992 = vmatprep.subr.mxu0 0.0
    %1993 = vmatpush1.msra.mxu0 0.0
    %1994 = vmatprep.subr.mxu0 0.0
    %1995 = vmatpush1.msra.mxu0 0.0
    %1996 = vmatprep.subr.mxu0 0.0
    %1997 = vmatpush1.msra.mxu0 0.0
    %1998 = vmatprep.subr.mxu0 0.0
    %1999 = vmatpush1.msra.mxu0 0.0
    %2000 = vmatprep.subr.mxu0 0.0
    %2001 = vmatpush1.msra.mxu0 0.0
    %2002 = vmatprep.subr.mxu0 0.0
    %2003 = vmatpush1.msra.mxu0 0.0
    %2004 = vmatprep.subr.mxu0 0.0
    %2005 = vmatpush1.msra.mxu0 0.0
    %2006 = vmatprep.mubr.f32.mxu0 0.0
    %2007 = vmatmul.mubr.f32.gmra.mrb[0].mxu0 %v1940
    %v2008 = vpop.f32.mrb[0].mxu0
    %v2009 = vadd.f32 %v1938, %v2008
    %v2010 = vpop.f32.mrb[0].mxu0
    %2011 = vdwg.mxu0
    %v2012 = vmul.f32 %v2009, 0.5
    %v2013 = vmul.f32 %v2009, 0.70710677
    %v2014 = verf.f32.pop %v2013
    %v2015 = vadd.f32 %v2014, 1.0
    %v2016 = vmul.f32 %v2012, %v2015
    %v2017 = vld [vmem:[%s3 + $0x23] sm:$0x1]
    %v2018 = vlaneseq
    %v2019 = vshrl.u32 %v2018, 7
    %v2020 = vsub.s32 0, %v2019
    %v2021 = vrot.slane %v2017, %v2020
    %2022 = vmatprep.subr.mxu0 0.0
    %2023 = vmatpush1.msra.mxu0 %v1127
    %2024 = vmatprep.subr.mxu0 0.0
    %2025 = vmatpush1.msra.mxu0 %v1131
    %2026 = vmatprep.subr.mxu0 0.0
    %2027 = vmatpush1.msra.mxu0 %v1135
    %2028 = vmatprep.subr.mxu0 0.0
    %2029 = vmatpush1.msra.mxu0 %v1139
    %2030 = vmatprep.subr.mxu0 0.0
    %2031 = vmatpush1.msra.mxu0 %v1143
    %2032 = vmatprep.subr.mxu0 0.0
    %2033 = vmatpush1.msra.mxu0 %v1147
    %2034 = vmatprep.subr.mxu0 0.0
    %2035 = vmatpush1.msra.mxu0 %v1151
    %2036 = vmatprep.subr.mxu0 0.0
    %2037 = vmatpush1.msra.mxu0 %v1155
    %2038 = vmatprep.subr.mxu0 0.0
    %2039 = vmatpush1.msra.mxu0 %v1159
    %2040 = vmatprep.subr.mxu0 0.0
    %2041 = vmatpush1.msra.mxu0 %v1163
    %2042 = vmatprep.subr.mxu0 0.0
    %2043 = vmatpush1.msra.mxu0 %v1167
    %2044 = vmatprep.subr.mxu0 0.0
    %2045 = vmatpush1.msra.mxu0 %v1171
    %2046 = vmatprep.subr.mxu0 0.0
    %2047 = vmatpush1.msra.mxu0 %v1175
    %2048 = vmatprep.subr.mxu0 0.0
    %2049 = vmatpush1.msra.mxu0 %v1179
    %2050 = vmatprep.subr.mxu0 0.0
    %2051 = vmatpush1.msra.mxu0 %v1183
    %2052 = vmatprep.subr.mxu0 0.0
    %2053 = vmatpush1.msra.mxu0 %v1187
    %2054 = vmatprep.subr.mxu0 0.0
    %2055 = vmatpush1.msra.mxu0 0.0
    %2056 = vmatprep.subr.mxu0 0.0
    %2057 = vmatpush1.msra.mxu0 0.0
    %2058 = vmatprep.subr.mxu0 0.0
    %2059 = vmatpush1.msra.mxu0 0.0
    %2060 = vmatprep.subr.mxu0 0.0
    %2061 = vmatpush1.msra.mxu0 0.0
    %2062 = vmatprep.subr.mxu0 0.0
    %2063 = vmatpush1.msra.mxu0 0.0
    %2064 = vmatprep.subr.mxu0 0.0
    %2065 = vmatpush1.msra.mxu0 0.0
    %2066 = vmatprep.subr.mxu0 0.0
    %2067 = vmatpush1.msra.mxu0 0.0
    %2068 = vmatprep.subr.mxu0 0.0
    %2069 = vmatpush1.msra.mxu0 0.0
    %2070 = vmatprep.subr.mxu0 0.0
    %2071 = vmatpush1.msra.mxu0 0.0
    %2072 = vmatprep.subr.mxu0 0.0
    %2073 = vmatpush1.msra.mxu0 0.0
    %2074 = vmatprep.subr.mxu0 0.0
    %2075 = vmatpush1.msra.mxu0 0.0
    %2076 = vmatprep.subr.mxu0 0.0
    %2077 = vmatpush1.msra.mxu0 0.0
    %2078 = vmatprep.subr.mxu0 0.0
    %2079 = vmatpush1.msra.mxu0 0.0
    %2080 = vmatprep.subr.mxu0 0.0
    %2081 = vmatpush1.msra.mxu0 0.0
    %2082 = vmatprep.subr.mxu0 0.0
    %2083 = vmatpush1.msra.mxu0 0.0
    %2084 = vmatprep.subr.mxu0 0.0
    %2085 = vmatpush1.msra.mxu0 0.0
    %2086 = vmatprep.mubr.f32.mxu0 0.0
    %2087 = vmatmul.mubr.f32.gmra.mrb[0].mxu0 %v2016
    %v2088 = vpop.f32.mrb[0].mxu0
    %v2089 = vadd.f32 %v2021, %v2088
    %v2090 = vpop.f32.mrb[0].mxu0
    %2091 = vdwg.mxu0
    %v2092 = vxor.u32 %v2089, 2147483648
    %v2093 = vmul.f32 %v2092, 1.442695
    %v2094 = vpow.pop %v2093
    %v2095 = vadd.f32 %v2094, 1.0
    %v2096 = vrcp.pop %v2095
    %v2097 = vmul.f32 1.0, %v2096
    %v2098 = vlaneseq
    %v2099 = vshrl.u32 %v2098, 7
    %v2100 = vsub.s32 0, %v2099
    %v2101 = vrot.slane %v2097, %v2100
    %v2102 = vlaneseq
    %v2103 = vshrl.u32 %v2102, 7
    %v2104 = vsub.s32 1, %v2103
    %v2105 = vrot.slane %v2097, %v2104
    %v2106 = vmul.f32 %v1875, %v2101
    %v2107 = vmul.f32 %v1876, %v2105
    %v2108 = vld [vmem:[%s3 + $0x24] sm:$0x1]
    %v2109 = vld [vmem:[%s3 + $0x25] sm:$0x1]
    %v2110 = vsel %vm169, %v2106, 0.0
    %2111 = vadd.xlane.f32.xlu0 %v2110
    %v2112 = vpop.xlane.xlu0 %2111
    %v2113 = vsel %vm169, %v2107, 0.0
    %2114 = vadd.xlane.f32.xlu0 %v2113
    %v2115 = vpop.xlane.xlu0 %2114
    %v2116 = vmul.f32 %v2112, %v176
    %v2117 = vmul.f32 %v2115, %v176
    %v2118 = vsub.f32 %v2106, %v2116
    %v2119 = vsub.f32 %v2107, %v2117
    %v2120 = vmul.f32 %v2118, %v2118
    %v2121 = vmul.f32 %v2119, %v2119
    %v2122 = vsel %vm169, %v2120, 0.0
    %2123 = vadd.xlane.f32.xlu0 %v2122
    %v2124 = vpop.xlane.xlu0 %2123
    %v2125 = vsel %vm169, %v2121, 0.0
    %2126 = vadd.xlane.f32.xlu0 %v2125
    %v2127 = vpop.xlane.xlu0 %2126
    %v2128 = vmul.f32 %v2124, %v176
    %v2129 = vmul.f32 %v2127, %v176
    %v2130 = vadd.f32 %v2128, 1e-05
    %v2131 = vadd.f32 %v2129, 1e-05
    %v2132 = vrsqrt.pop %v2130
    %v2133 = vrsqrt.pop %v2131
    %v2134 = vmul.f32 %v2118, %v2132
    %v2135 = vmul.f32 %v2119, %v2133
    %v2136 = vlaneseq
    %v2137 = vshrl.u32 %v2136, 7
    %v2138 = vsub.s32 0, %v2137
    %v2139 = vrot.slane %v2108, %v2138
    %v2140 = vmul.f32 %v2134, %v2139
    %v2141 = vmul.f32 %v2135, %v2139
    %v2142 = vlaneseq
    %v2143 = vshrl.u32 %v2142, 7
    %v2144 = vsub.s32 0, %v2143
    %v2145 = vrot.slane %v2109, %v2144
    %v2146 = vadd.f32 %v2140, %v2145
    %v2147 = vadd.f32 %v2141, %v2145
    %2148 = vst.msk [vmem:[#allocation8] sm:$0xff] %vm169, %v2146
    %s2149 = scalar_lea.vmem [#allocation8], 8
    %2150 = vst.msk [vmem:[%s2149] sm:$0xff] %vm169, %v2147
    // Predicated region
    $region38: #{_lambda_.1} parent=1 // pred_check
      _
    $region39: #{_lambda_.1} parent=1 // pred_check_branch
      %2152 = sbr.rel (0) target = $region41
    $region40: #{_lambda_.1} parent=1 // pred_region
      %s2154 = ssub.s32 256, 256
      %2155 = vsyncadd [#allocation4], %s2154
      %s2156 = sshll.u32 [#allocation8], 4
      %s2157 = int_to_ptr.vmem [resolvable:$true] %s2156
      %2162 = dma.vmem_to_hbm [thread:$0]  %s2157, 256, %s6, [#allocation4], 128, 128, 8
    $region41: #{_lambda_.1} parent=1 // pred_fallthru
      _
    // Predicated region
    $region42: #{_lambda_.1} parent=1 // pred_check
      _
    $region43: #{_lambda_.1} parent=1 // pred_check_branch
      %2164 = sbr.rel (0) target = $region45
    $region44: #{_lambda_.1} parent=1 // pred_region
      %2165 = dma.done [#allocation4], 256
    $region45: #{_lambda_.1} parent=1 // pred_fallthru
      _
    %2166 = vsyncpa [#allocation3], 1
    %2167 = vsyncpa [#allocation6], 1
    %2168 = vsyncpa [#allocation4], 1

</llo_original>
